<compile_context>
chip_gen: v5e
topology: v5e:2x2
jax: 0.10.0
libtpu: 0.0.40
codegen_flags: <defaults>
</compile_context>

<pallas_src>
import functools
import math

import jax
import jax.numpy as jnp
from jax.experimental import pallas as pl
from jax.experimental.pallas import tpu as pltpu


# ----------------------------- helpers --------------------------------------

def _pick_tile(dim, target, align):
    """Largest multiple of `align` <= target dividing dim, else the full dim."""
    if dim <= target:
        return dim
    t = (target // align) * align
    while t >= align:
        if dim % t == 0:
            return t
        t -= align
    return dim


def _activate(y, activation):
    if activation == "gelu":          # exact erf GELU, matches HF BERT
        return 0.5 * y * (1.0 + jax.lax.erf(y * (1.0 / math.sqrt(2.0))))
    if activation == "gelu_tanh":     # cheaper (EUP tanh) option for v6e/v7x
        c = math.sqrt(2.0 / math.pi)
        return 0.5 * y * (1.0 + jnp.tanh(c * (y + 0.044715 * y * y * y)))
    return y


# ----------------------------- Pallas kernels -------------------------------

def _linear_nok_kernel(x_ref, w_ref, b_ref, o_ref, *, activation):
    """Single-pass linear (K fits one tile): bf16 matmul, f32 bias + act."""
    y = jnp.dot(x_ref[...], w_ref[...], preferred_element_type=jnp.float32)
    y = _activate(y + b_ref[...], activation)
    o_ref[...] = y.astype(o_ref.dtype)


def _linear_k_kernel(x_ref, w_ref, b_ref, o_ref, acc_ref, *, activation):
    """K-split linear: f32 VMEM accumulator, epilogue on last k step."""
    k = pl.program_id(2)

    @pl.when(k == 0)
    def _():
        acc_ref[...] = jnp.zeros_like(acc_ref)

    acc_ref[...] += jnp.dot(x_ref[...], w_ref[...],
                            preferred_element_type=jnp.float32)

    @pl.when(k == pl.num_programs(2) - 1)
    def _():
        y = _activate(acc_ref[...] + b_ref[...], activation)
        o_ref[...] = y.astype(o_ref.dtype)


def _linear_add_ln_nok_kernel(x_ref, w_ref, b_ref, r_ref, g_ref, bb_ref,
                              o_ref, *, eps):
    """Single-pass linear with fused residual add + LayerNorm epilogue."""
    y = jnp.dot(x_ref[...], w_ref[...], preferred_element_type=jnp.float32)
    y = y + b_ref[...] + r_ref[...].astype(jnp.float32)
    mean = jnp.mean(y, axis=-1, keepdims=True)
    yc = y - mean
    var = jnp.mean(yc * yc, axis=-1, keepdims=True)
    out = yc * jax.lax.rsqrt(var + eps) * g_ref[...] + bb_ref[...]
    o_ref[...] = out.astype(o_ref.dtype)


def _linear_add_ln_k_kernel(x_ref, w_ref, b_ref, r_ref, g_ref, bb_ref,
                            o_ref, acc_ref, *, eps):
    """K-split linear with fused residual add + LayerNorm on the last k step."""
    k = pl.program_id(1)

    @pl.when(k == 0)
    def _():
        acc_ref[...] = jnp.zeros_like(acc_ref)

    acc_ref[...] += jnp.dot(x_ref[...], w_ref[...],
                            preferred_element_type=jnp.float32)

    @pl.when(k == pl.num_programs(1) - 1)
    def _():
        y = acc_ref[...] + b_ref[...] + r_ref[...].astype(jnp.float32)
        mean = jnp.mean(y, axis=-1, keepdims=True)
        yc = y - mean
        var = jnp.mean(yc * yc, axis=-1, keepdims=True)
        out = yc * jax.lax.rsqrt(var + eps) * g_ref[...] + bb_ref[...]
        o_ref[...] = out.astype(o_ref.dtype)


def _layernorm_kernel(x_ref, g_ref, b_ref, o_ref, *, eps):
    x = x_ref[...].astype(jnp.float32)
    mean = jnp.mean(x, axis=-1, keepdims=True)
    xc = x - mean
    var = jnp.mean(xc * xc, axis=-1, keepdims=True)
    y = xc * jax.lax.rsqrt(var + eps) * g_ref[...] + b_ref[...]
    o_ref[...] = y.astype(o_ref.dtype)


def _attention_kernel(mask_ref, q_ref, k_ref, v_ref, o_ref, *, n_heads,
                      head_dim):
    # One (batch row, query tile) per grid step:
    #   q_ref: (tq, H) bf16  (1/sqrt(Dh) already folded into the weights)
    #   k_ref, v_ref: (S, H) bf16
    #   mask_ref: (1, S) f32 additive mask (already (1-m)*-1e4)
    #   o_ref: (tq, H) lane-dense output block
    tq = q_ref.shape[0]
    S = k_ref.shape[0]
    # hoist the (1,S)->(tq,S) mask broadcast out of the per-head loop
    mb = jnp.broadcast_to(mask_ref[...], (tq, S))

    pair, base = [], 0
    for hd in range(n_heads):                                   # static unroll
        sl = slice(hd * head_dim, (hd + 1) * head_dim)
        q = q_ref[:, sl]
        k = k_ref[:, sl]
        v = v_ref[:, sl]
        s = jax.lax.dot_general(q, k, (((1,), (1,)), ((), ())),
                                preferred_element_type=jnp.float32)
        s = s + mb
        s = s - jnp.max(s, axis=-1, keepdims=True)
        p = jnp.exp(s)
        p = p * pl.reciprocal(jnp.sum(p, axis=-1, keepdims=True), approx=True)
        pair.append(jnp.dot(p.astype(v.dtype), v,
                            preferred_element_type=jnp.float32))
        # store head *pairs* -> 128-lane aligned, unmasked stores (Dh=64)
        if len(pair) == 2 or hd == n_heads - 1:
            blk = pair[0] if len(pair) == 1 else jnp.concatenate(pair, axis=-1)
            o_ref[:, base:base + blk.shape[-1]] = blk.astype(o_ref.dtype)
            base += blk.shape[-1]
            pair = []


# ----------------------------- kernel wrappers ------------------------------

def pallas_linear(x, w, b, *, activation=None, out_dtype=None,
                  tm=None, tn=1024, tk=1024):
    M, K = x.shape
    _, N = w.shape
    out_dtype = out_dtype or x.dtype
    if tm is None:
        tm = 1024 if M >= 2048 else 512
    tm = _pick_tile(M, tm, 16)
    tn = _pick_tile(N, tn, 128)
    b2 = b.reshape(1, N)

    if K <= tk:  # single K pass: no accumulator, no init/finalize machinery
        return pl.pallas_call(
            functools.partial(_linear_nok_kernel, activation=activation),
            out_shape=jax.ShapeDtypeStruct((M, N), out_dtype),
            grid=(M // tm, N // tn),
            in_specs=[pl.BlockSpec((tm, K), lambda i, j: (i, 0)),
                      pl.BlockSpec((K, tn), lambda i, j: (0, j)),
                      pl.BlockSpec((1, tn), lambda i, j: (0, j))],
            out_specs=pl.BlockSpec((tm, tn), lambda i, j: (i, j)),
            compiler_params=pltpu.CompilerParams(
                dimension_semantics=("parallel", "parallel")),
        )(x, w, b2)

    tk = _pick_tile(K, tk, 128)
    return pl.pallas_call(
        functools.partial(_linear_k_kernel, activation=activation),
        out_shape=jax.ShapeDtypeStruct((M, N), out_dtype),
        grid=(M // tm, N // tn, K // tk),
        in_specs=[pl.BlockSpec((tm, tk), lambda i, j, k: (i, k)),
                  pl.BlockSpec((tk, tn), lambda i, j, k: (k, j)),
                  pl.BlockSpec((1, tn), lambda i, j, k: (0, j))],
        out_specs=pl.BlockSpec((tm, tn), lambda i, j, k: (i, j)),
        scratch_shapes=[pltpu.VMEM((tm, tn), jnp.float32)],
        compiler_params=pltpu.CompilerParams(
            dimension_semantics=("parallel", "parallel", "arbitrary")),
    )(x, w, b2)


def pallas_linear_add_ln(x, w, b, res, g, beta, *, eps=1e-12, out_dtype=None,
                         tm=None, tk=1024):
    """y = LayerNorm(x @ w + b + res); the full output row (tn = N) lives in
    one block so the LN reduction can run in the matmul epilogue."""
    M, K = x.shape
    _, N = w.shape
    out_dtype = out_dtype or res.dtype
    if tm is None:
        tm = 1024 if M >= 2048 else 512
    tm = _pick_tile(M, tm, 16)
    b2, g2, be2 = b.reshape(1, N), g.reshape(1, N), beta.reshape(1, N)

    if K <= tk:
        return pl.pallas_call(
            functools.partial(_linear_add_ln_nok_kernel, eps=eps),
            out_shape=jax.ShapeDtypeStruct((M, N), out_dtype),
            grid=(M // tm,),
            in_specs=[pl.BlockSpec((tm, K), lambda i: (i, 0)),
                      pl.BlockSpec((K, N), lambda i: (0, 0)),
                      pl.BlockSpec((1, N), lambda i: (0, 0)),
                      pl.BlockSpec((tm, N), lambda i: (i, 0)),
                      pl.BlockSpec((1, N), lambda i: (0, 0)),
                      pl.BlockSpec((1, N), lambda i: (0, 0))],
            out_specs=pl.BlockSpec((tm, N), lambda i: (i, 0)),
            compiler_params=pltpu.CompilerParams(
                dimension_semantics=("parallel",)),
        )(x, w, b2, res, g2, be2)

    tk = _pick_tile(K, tk, 128)
    return pl.pallas_call(
        functools.partial(_linear_add_ln_k_kernel, eps=eps),
        out_shape=jax.ShapeDtypeStruct((M, N), out_dtype),
        grid=(M // tm, K // tk),
        in_specs=[pl.BlockSpec((tm, tk), lambda i, k: (i, k)),
                  pl.BlockSpec((tk, N), lambda i, k: (k, 0)),
                  pl.BlockSpec((1, N), lambda i, k: (0, 0)),
                  pl.BlockSpec((tm, N), lambda i, k: (i, 0)),
                  pl.BlockSpec((1, N), lambda i, k: (0, 0)),
                  pl.BlockSpec((1, N), lambda i, k: (0, 0))],
        out_specs=pl.BlockSpec((tm, N), lambda i, k: (i, 0)),
        scratch_shapes=[pltpu.VMEM((tm, N), jnp.float32)],
        compiler_params=pltpu.CompilerParams(
            dimension_semantics=("parallel", "arbitrary")),
    )(x, w, b2, res, g2, be2)


def pallas_layernorm(x, g, b, *, eps=1e-12, out_dtype=None, tm=1024):
    M, H = x.shape
    out_dtype = out_dtype or x.dtype
    tm = _pick_tile(M, tm, 16)
    return pl.pallas_call(
        functools.partial(_layernorm_kernel, eps=eps),
        out_shape=jax.ShapeDtypeStruct((M, H), out_dtype),
        grid=(M // tm,),
        in_specs=[pl.BlockSpec((tm, H), lambda i: (i, 0)),
                  pl.BlockSpec((1, H), lambda i: (0, 0)),
                  pl.BlockSpec((1, H), lambda i: (0, 0))],
        out_specs=pl.BlockSpec((tm, H), lambda i: (i, 0)),
        compiler_params=pltpu.CompilerParams(
            dimension_semantics=("parallel",)),
    )(x, g.reshape(1, H), b.reshape(1, H))


def pallas_attention(qkv, add_mask, *, n_heads, tq=256):
    """qkv: (B, S, 3H) slab laid out [Q | K | V]; Q/K/V are read as three
    column-block views (block width H) — requires H % 128 == 0 (true for the
    BERT family).  Grid = (batch, query tiles)."""
    B, S, three_h = qkv.shape
    H = three_h // 3
    Dh = H // n_heads
    tq = _pick_tile(S, tq, 16)
    kernel = functools.partial(_attention_kernel, n_heads=n_heads, head_dim=Dh)
    return pl.pallas_call(
        kernel,
        out_shape=jax.ShapeDtypeStruct((B, S, H), qkv.dtype),
        grid=(B, S // tq),
        in_specs=[pl.BlockSpec((pl.Squeezed(), 1, S), lambda b, i: (b, 0, 0)),
                  pl.BlockSpec((pl.Squeezed(), tq, H), lambda b, i: (b, i, 0)),
                  pl.BlockSpec((pl.Squeezed(), S, H), lambda b, i: (b, 0, 1)),
                  pl.BlockSpec((pl.Squeezed(), S, H), lambda b, i: (b, 0, 2))],
        out_specs=pl.BlockSpec((pl.Squeezed(), tq, H), lambda b, i: (b, i, 0)),
        compiler_params=pltpu.CompilerParams(
            dimension_semantics=("parallel", "parallel")),
    )(add_mask, qkv, qkv, qkv)


# ----------------------------- parameters -----------------------------------

def init_params(key, vocab_size, max_pos, hidden, n_layers, intermediate,
                n_heads):
    head_dim = hidden // n_heads
    q_scale = 1.0 / math.sqrt(head_dim)   # folded into Q weights (and Q bias
                                          # when loading real checkpoints)

    def dense(k, shape, scale=1.0, dtype=jnp.bfloat16):
        return (jax.random.normal(k, shape, jnp.float32) * 0.02 * scale
                ).astype(dtype)

    keys = jax.random.split(key, 4 + n_layers)
    params = {
        'word_emb': dense(keys[0], (vocab_size, hidden), dtype=jnp.float32),
        'pos_emb': dense(keys[1], (max_pos, hidden), dtype=jnp.float32),
        'type_emb': dense(keys[2], (2, hidden), dtype=jnp.float32),
        'emb_ln_g': jnp.ones((hidden,), jnp.float32),
        'emb_ln_b': jnp.zeros((hidden,), jnp.float32),
        'layers': [],
    }
    for li in range(n_layers):
        lk = jax.random.split(keys[4 + li], 6)
        qkv_w = jnp.concatenate(
            [dense(lk[0], (hidden, hidden), q_scale),       # Q (pre-scaled)
             dense(lk[1], (hidden, hidden)),                # K
             dense(lk[2], (hidden, hidden))], axis=1)       # V  -> (H, 3H) bf16
        params['layers'].append({
            'qkv_w': qkv_w,
            'qkv_b': jnp.zeros((3 * hidden,), jnp.float32),
            'o_w': dense(lk[3], (hidden, hidden)),
            'o_b': jnp.zeros((hidden,), jnp.float32),
            'attn_ln_g': jnp.ones((hidden,), jnp.float32),
            'attn_ln_b': jnp.zeros((hidden,), jnp.float32),
            'i_w': dense(lk[4], (hidden, intermediate)),
            'i_b': jnp.zeros((intermediate,), jnp.float32),
            'f_w': dense(lk[5], (intermediate, hidden)),
            'f_b': jnp.zeros((hidden,), jnp.float32),
            'ffn_ln_g': jnp.ones((hidden,), jnp.float32),
            'ffn_ln_b': jnp.zeros((hidden,), jnp.float32),
        })
    return params


# ----------------------------- forward (BioClinicalBERT_FT) -----------------

def bioclinicalbert_ft_forward(params, input_ids, attention_mask, *, n_heads):
    """Equivalent of BioClinicalBERT_FT.forward: returns last_hidden_state[:, 0, :]."""
    B, S = input_ids.shape
    H = params['word_emb'].shape[1]

    # --- embeddings ---
    # TODO(synk): the embedding gather (jnp.take) stays in XLA — no clean Pallas gather.
    we = jnp.take(params['word_emb'], input_ids, axis=0)          # (B, S, H)
    pe = params['pos_emb'][:S][None, :, :]                        # (1, S, H)
    te = params['type_emb'][0][None, None, :]                     # token_type_ids = 0
    emb = (we + pe + te).reshape(B * S, H)
    h = pallas_layernorm(emb, params['emb_ln_g'], params['emb_ln_b'],
                         out_dtype=jnp.bfloat16)                  # (B*S, H) bf16

    # additive mask, computed once per batch and reused across layers/heads
    add_mask = ((1.0 - attention_mask.astype(jnp.float32)) * -10000.0
                ).reshape(B, 1, S)

    # --- encoder layers ---
    for layer in params['layers']:
        # fused QKV projection: (B*S, H) @ (H, 3H); single K pass, no k axis
        qkv = pallas_linear(h, layer['qkv_w'], layer['qkv_b'])    # (B*S, 3H) bf16
        ctx = pallas_attention(qkv.reshape(B, S, 3 * H), add_mask,
                               n_heads=n_heads)                   # (B, S, H) bf16
        # output projection with fused residual add + LayerNorm epilogue
        h = pallas_linear_add_ln(ctx.reshape(B * S, H),
                                 layer['o_w'], layer['o_b'],
                                 h, layer['attn_ln_g'], layer['attn_ln_b'])
        # FFN: GELU fused into the intermediate matmul epilogue,
        # residual + LayerNorm fused into the down-projection epilogue
        inter = pallas_linear(h, layer['i_w'], layer['i_b'], activation="gelu")
        h = pallas_linear_add_ln(inter, layer['f_w'], layer['f_b'],
                                 h, layer['ffn_ln_g'], layer['ffn_ln_b'])

    last_hidden_state = h.reshape(B, S, H)
    cls_embedding = last_hidden_state[:, 0, :].astype(jnp.float32)  # CLS token
    return cls_embedding


# ----------------------------- main ------------------------------------------

if __name__ == "__main__":
    # Small but layout-friendly config (hidden multiple of 128, intermediate
    # large enough to exercise the K-split fused-LN path).
    B, S, H, N_HEADS, N_LAYERS, INTER = 2, 16, 128, 2, 2, 2048
    VOCAB, MAX_POS = 100, 32

    key = jax.random.PRNGKey(0)
    k_params, k_ids = jax.random.split(key)
    params = init_params(k_params, VOCAB, MAX_POS, H, N_LAYERS, INTER, N_HEADS)

    input_ids = jax.random.randint(k_ids, (B, S), 0, VOCAB, dtype=jnp.int32)
    attention_mask = jnp.concatenate(
        [jnp.ones((B, S - 4), jnp.int32),
         jnp.array([[1, 1, 1, 1], [1, 1, 0, 0]], jnp.int32)], axis=1)   # (B, S)

    fwd = jax.jit(functools.partial(bioclinicalbert_ft_forward,
                                    n_heads=N_HEADS))
    cls = fwd(params, input_ids, attention_mask)
    jax.block_until_ready(cls)
    assert cls.shape == (B, H) and cls.dtype == jnp.float32
    print("KERNEL_OK")
</pallas_src>

<mosaic_0001>
module attributes {stable_mosaic.version = 11 : i64} {
  func.func @_attention_kernel(%arg0: i32, %arg1: i32, %arg2: memref<1x1x16xf32, #tpu.memory_space<vmem>>, %arg3: memref<1x16x128xbf16, #tpu.memory_space<vmem>>, %arg4: memref<1x16x128xbf16, #tpu.memory_space<vmem>>, %arg5: memref<1x16x128xbf16, #tpu.memory_space<vmem>>, %arg6: memref<1x16x128xbf16, #tpu.memory_space<vmem>>) attributes {dimension_semantics = [#tpu.dimension_semantics<parallel>, #tpu.dimension_semantics<parallel>], iteration_bounds = array<i64: 2, 1>, scalar_prefetch = 0 : i64, scratch_operands = 0 : i64, tpu.core_type = #tpu.core_type<tc>, window_params = [{transform_indices = @transform_0, window_bounds = array<i64: 1, 1, 16>}, {transform_indices = @transform_1, window_bounds = array<i64: 1, 16, 128>}, {transform_indices = @transform_2, window_bounds = array<i64: 1, 16, 128>}, {transform_indices = @transform_3, window_bounds = array<i64: 1, 16, 128>}, {transform_indices = @transform_4, window_bounds = array<i64: 1, 16, 128>}]} {
    %c0 = arith.constant 0 : index
    %c0_0 = arith.constant 0 : index
    %c0_1 = arith.constant 0 : index
    %0 = vector.load %arg2[%c0, %c0_0, %c0_1] : memref<1x1x16xf32, #tpu.memory_space<vmem>>, vector<1x1x16xf32>
    %1 = vector.shape_cast %0 : vector<1x1x16xf32> to vector<1x16xf32>
    %2 = vector.shape_cast %1 : vector<1x16xf32> to vector<1x16xf32>
    %3 = vector.broadcast %2 : vector<1x16xf32> to vector<16x16xf32>
    %c0_2 = arith.constant 0 : index
    %c0_3 = arith.constant 0 : index
    %c0_4 = arith.constant 0 : index
    %4 = vector.load %arg3[%c0_2, %c0_3, %c0_4] : memref<1x16x128xbf16, #tpu.memory_space<vmem>>, vector<1x16x64xbf16>
    %5 = vector.shape_cast %4 : vector<1x16x64xbf16> to vector<16x64xbf16>
    %c0_5 = arith.constant 0 : index
    %c0_6 = arith.constant 0 : index
    %c0_7 = arith.constant 0 : index
    %6 = vector.load %arg4[%c0_5, %c0_6, %c0_7] : memref<1x16x128xbf16, #tpu.memory_space<vmem>>, vector<1x16x64xbf16>
    %7 = vector.shape_cast %6 : vector<1x16x64xbf16> to vector<16x64xbf16>
    %c0_8 = arith.constant 0 : index
    %c0_9 = arith.constant 0 : index
    %c0_10 = arith.constant 0 : index
    %8 = vector.load %arg5[%c0_8, %c0_9, %c0_10] : memref<1x16x128xbf16, #tpu.memory_space<vmem>>, vector<1x16x64xbf16>
    %9 = vector.shape_cast %8 : vector<1x16x64xbf16> to vector<16x64xbf16>
    %cst = arith.constant dense<0.000000e+00> : vector<16x16xf32>
    %10 = tpu.matmul %5, %7, %cst {dimension_numbers = #tpu.dot_dimension_numbers<[1], [1], [0], [0], [0, 0, 1, 0], [], []>} : vector<16x64xbf16>, vector<16x64xbf16>, vector<16x16xf32> -> vector<16x16xf32>
    %11 = arith.addf %10, %3 : vector<16x16xf32>
    %cst_11 = arith.constant dense<0xFF800000> : vector<16xf32>
    %12 = vector.multi_reduction <maximumf>, %11, %cst_11 [1] : vector<16x16xf32> to vector<16xf32>
    %13 = vector.shape_cast %12 : vector<16xf32> to vector<16x1xf32>
    %14 = vector.broadcast %13 : vector<16x1xf32> to vector<16x16xf32>
    %15 = arith.subf %11, %14 : vector<16x16xf32>
    %16 = math.exp %15 : vector<16x16xf32>
    %cst_12 = arith.constant dense<0.000000e+00> : vector<16xf32>
    %17 = vector.multi_reduction <add>, %16, %cst_12 [1] : vector<16x16xf32> to vector<16xf32>
    %18 = vector.shape_cast %17 : vector<16xf32> to vector<16x1xf32>
    %19 = tpu.reciprocal %18 {approx = true} : vector<16x1xf32> -> vector<16x1xf32>
    %20 = vector.broadcast %19 : vector<16x1xf32> to vector<16x16xf32>
    %21 = arith.mulf %16, %20 : vector<16x16xf32>
    %22 = arith.truncf %21 : vector<16x16xf32> to vector<16x16xbf16>
    %cst_13 = arith.constant dense<0.000000e+00> : vector<16x64xf32>
    %23 = tpu.matmul %22, %9, %cst_13 {dimension_numbers = #tpu.dot_dimension_numbers<[1], [0], [0], [1], [0, 0, 1, 1], [], []>} : vector<16x16xbf16>, vector<16x64xbf16>, vector<16x64xf32> -> vector<16x64xf32>
    %c0_14 = arith.constant 0 : index
    %c0_15 = arith.constant 0 : index
    %c64 = arith.constant 64 : index
    %24 = vector.load %arg3[%c0_14, %c0_15, %c64] : memref<1x16x128xbf16, #tpu.memory_space<vmem>>, vector<1x16x64xbf16>
    %25 = vector.shape_cast %24 : vector<1x16x64xbf16> to vector<16x64xbf16>
    %c0_16 = arith.constant 0 : index
    %c0_17 = arith.constant 0 : index
    %c64_18 = arith.constant 64 : index
    %26 = vector.load %arg4[%c0_16, %c0_17, %c64_18] : memref<1x16x128xbf16, #tpu.memory_space<vmem>>, vector<1x16x64xbf16>
    %27 = vector.shape_cast %26 : vector<1x16x64xbf16> to vector<16x64xbf16>
    %c0_19 = arith.constant 0 : index
    %c0_20 = arith.constant 0 : index
    %c64_21 = arith.constant 64 : index
    %28 = vector.load %arg5[%c0_19, %c0_20, %c64_21] : memref<1x16x128xbf16, #tpu.memory_space<vmem>>, vector<1x16x64xbf16>
    %29 = vector.shape_cast %28 : vector<1x16x64xbf16> to vector<16x64xbf16>
    %cst_22 = arith.constant dense<0.000000e+00> : vector<16x16xf32>
    %30 = tpu.matmul %25, %27, %cst_22 {dimension_numbers = #tpu.dot_dimension_numbers<[1], [1], [0], [0], [0, 0, 1, 0], [], []>} : vector<16x64xbf16>, vector<16x64xbf16>, vector<16x16xf32> -> vector<16x16xf32>
    %31 = arith.addf %30, %3 : vector<16x16xf32>
    %cst_23 = arith.constant dense<0xFF800000> : vector<16xf32>
    %32 = vector.multi_reduction <maximumf>, %31, %cst_23 [1] : vector<16x16xf32> to vector<16xf32>
    %33 = vector.shape_cast %32 : vector<16xf32> to vector<16x1xf32>
    %34 = vector.broadcast %33 : vector<16x1xf32> to vector<16x16xf32>
    %35 = arith.subf %31, %34 : vector<16x16xf32>
    %36 = math.exp %35 : vector<16x16xf32>
    %cst_24 = arith.constant dense<0.000000e+00> : vector<16xf32>
    %37 = vector.multi_reduction <add>, %36, %cst_24 [1] : vector<16x16xf32> to vector<16xf32>
    %38 = vector.shape_cast %37 : vector<16xf32> to vector<16x1xf32>
    %39 = tpu.reciprocal %38 {approx = true} : vector<16x1xf32> -> vector<16x1xf32>
    %40 = vector.broadcast %39 : vector<16x1xf32> to vector<16x16xf32>
    %41 = arith.mulf %36, %40 : vector<16x16xf32>
    %42 = arith.truncf %41 : vector<16x16xf32> to vector<16x16xbf16>
    %cst_25 = arith.constant dense<0.000000e+00> : vector<16x64xf32>
    %43 = tpu.matmul %42, %29, %cst_25 {dimension_numbers = #tpu.dot_dimension_numbers<[1], [0], [0], [1], [0, 0, 1, 1], [], []>} : vector<16x16xbf16>, vector<16x64xbf16>, vector<16x64xf32> -> vector<16x64xf32>
    %44 = tpu.concatenate %23, %43 in 1 : vector<16x64xf32>, vector<16x64xf32> -> vector<16x128xf32>
    %45 = arith.truncf %44 : vector<16x128xf32> to vector<16x128xbf16>
    %c0_26 = arith.constant 0 : index
    %c0_27 = arith.constant 0 : index
    %c0_28 = arith.constant 0 : index
    %46 = vector.load %arg6[%c0_26, %c0_27, %c0_28] : memref<1x16x128xbf16, #tpu.memory_space<vmem>>, vector<1x16x128xbf16>
    %47 = vector.shape_cast %46 : vector<1x16x128xbf16> to vector<16x128xbf16>
    %48 = vector.shape_cast %45 : vector<16x128xbf16> to vector<1x16x128xbf16>
    tpu.vector_store %arg6[%c0_26, %c0_27, %c0_28], %48 {strides = array<i32>} : memref<1x16x128xbf16, #tpu.memory_space<vmem>>, vector<1x16x128xbf16>,
    return
  }
  func.func @transform_0(%arg0: i32, %arg1: i32) -> (i32, i32, i32) {
    %c0_i32 = arith.constant 0 : i32
    %c0_i32_0 = arith.constant 0 : i32
    %c0_i32_1 = arith.constant 0 : i32
    return %arg0, %c0_i32, %c0_i32_0 : i32, i32, i32
  }
  func.func @transform_1(%arg0: i32, %arg1: i32) -> (i32, i32, i32) {
    %c0_i32 = arith.constant 0 : i32
    %c0_i32_0 = arith.constant 0 : i32
    return %arg0, %arg1, %c0_i32 : i32, i32, i32
  }
  func.func @transform_2(%arg0: i32, %arg1: i32) -> (i32, i32, i32) {
    %c0_i32 = arith.constant 0 : i32
    %c1_i32 = arith.constant 1 : i32
    %c0_i32_0 = arith.constant 0 : i32
    return %arg0, %c0_i32, %c1_i32 : i32, i32, i32
  }
  func.func @transform_3(%arg0: i32, %arg1: i32) -> (i32, i32, i32) {
    %c0_i32 = arith.constant 0 : i32
    %c2_i32 = arith.constant 2 : i32
    %c0_i32_0 = arith.constant 0 : i32
    return %arg0, %c0_i32, %c2_i32 : i32, i32, i32
  }
  func.func @transform_4(%arg0: i32, %arg1: i32) -> (i32, i32, i32) {
    %c0_i32 = arith.constant 0 : i32
    %c0_i32_0 = arith.constant 0 : i32
    return %arg0, %arg1, %c0_i32 : i32, i32, i32
  }
}

module attributes {stable_mosaic.version = 11 : i64} {
  func.func @_linear_nok_kernel(%arg0: i32, %arg1: i32, %arg2: memref<32x128xbf16, #tpu.memory_space<vmem>>, %arg3: memref<128x384xbf16, #tpu.memory_space<vmem>>, %arg4: memref<1x384xf32, #tpu.memory_space<vmem>>, %arg5: memref<32x384xbf16, #tpu.memory_space<vmem>>) attributes {dimension_semantics = [#tpu.dimension_semantics<parallel>, #tpu.dimension_semantics<parallel>], iteration_bounds = array<i64: 1, 1>, scalar_prefetch = 0 : i64, scratch_operands = 0 : i64, tpu.core_type = #tpu.core_type<tc>, window_params = [{transform_indices = @transform_0, window_bounds = array<i64: 32, 128>}, {transform_indices = @transform_1, window_bounds = array<i64: 128, 384>}, {transform_indices = @transform_2, window_bounds = array<i64: 1, 384>}, {transform_indices = @transform_3, window_bounds = array<i64: 32, 384>}]} {
    %c0 = arith.constant 0 : index
    %c0_0 = arith.constant 0 : index
    %0 = vector.load %arg2[%c0, %c0_0] : memref<32x128xbf16, #tpu.memory_space<vmem>>, vector<32x128xbf16>
    %c0_1 = arith.constant 0 : index
    %c0_2 = arith.constant 0 : index
    %1 = vector.load %arg3[%c0_1, %c0_2] : memref<128x384xbf16, #tpu.memory_space<vmem>>, vector<128x384xbf16>
    %cst = arith.constant dense<0.000000e+00> : vector<32x384xf32>
    %2 = tpu.matmul %0, %1, %cst {dimension_numbers = #tpu.dot_dimension_numbers<[1], [0], [0], [1], [0, 0, 1, 1], [], []>} : vector<32x128xbf16>, vector<128x384xbf16>, vector<32x384xf32> -> vector<32x384xf32>
    %c0_3 = arith.constant 0 : index
    %c0_4 = arith.constant 0 : index
    %3 = vector.load %arg4[%c0_3, %c0_4] : memref<1x384xf32, #tpu.memory_space<vmem>>, vector<1x384xf32>
    %4 = vector.broadcast %3 : vector<1x384xf32> to vector<32x384xf32>
    %5 = arith.addf %2, %4 : vector<32x384xf32>
    %6 = arith.truncf %5 : vector<32x384xf32> to vector<32x384xbf16>
    %c0_5 = arith.constant 0 : index
    %c0_6 = arith.constant 0 : index
    %7 = vector.load %arg5[%c0_5, %c0_6] : memref<32x384xbf16, #tpu.memory_space<vmem>>, vector<32x384xbf16>
    tpu.vector_store %arg5[%c0_5, %c0_6], %6 {strides = array<i32>} : memref<32x384xbf16, #tpu.memory_space<vmem>>, vector<32x384xbf16>,
    return
  }
  func.func @transform_0(%arg0: i32, %arg1: i32) -> (i32, i32) {
    %c0_i32 = arith.constant 0 : i32
    %c0_i32_0 = arith.constant 0 : i32
    return %arg0, %c0_i32 : i32, i32
  }
  func.func @transform_1(%arg0: i32, %arg1: i32) -> (i32, i32) {
    %c0_i32 = arith.constant 0 : i32
    %c0_i32_0 = arith.constant 0 : i32
    return %c0_i32, %arg1 : i32, i32
  }
  func.func @transform_2(%arg0: i32, %arg1: i32) -> (i32, i32) {
    %c0_i32 = arith.constant 0 : i32
    %c0_i32_0 = arith.constant 0 : i32
    return %c0_i32, %arg1 : i32, i32
  }
  func.func @transform_3(%arg0: i32, %arg1: i32) -> (i32, i32) {
    %c0_i32 = arith.constant 0 : i32
    return %arg0, %arg1 : i32, i32
  }
}

module attributes {stable_mosaic.version = 11 : i64} {
  func.func @_layernorm_kernel(%arg0: i32, %arg1: memref<32x128xf32, #tpu.memory_space<vmem>>, %arg2: memref<1x128xf32, #tpu.memory_space<vmem>>, %arg3: memref<1x128xf32, #tpu.memory_space<vmem>>, %arg4: memref<32x128xbf16, #tpu.memory_space<vmem>>) attributes {dimension_semantics = [#tpu.dimension_semantics<parallel>], iteration_bounds = array<i64: 1>, scalar_prefetch = 0 : i64, scratch_operands = 0 : i64, tpu.core_type = #tpu.core_type<tc>, window_params = [{transform_indices = @transform_0, window_bounds = array<i64: 32, 128>}, {pipeline_mode = #tpu.pipeline_mode<synchronous>, transform_indices = @transform_1, window_bounds = array<i64: 1, 128>}, {pipeline_mode = #tpu.pipeline_mode<synchronous>, transform_indices = @transform_2, window_bounds = array<i64: 1, 128>}, {transform_indices = @transform_3, window_bounds = array<i64: 32, 128>}]} {
    %c0 = arith.constant 0 : index
    %c0_0 = arith.constant 0 : index
    %0 = vector.load %arg1[%c0, %c0_0] : memref<32x128xf32, #tpu.memory_space<vmem>>, vector<32x128xf32>
    %cst = arith.constant dense<0.000000e+00> : vector<32xf32>
    %1 = vector.multi_reduction <add>, %0, %cst [1] : vector<32x128xf32> to vector<32xf32>
    %2 = vector.shape_cast %1 : vector<32xf32> to vector<32x1xf32>
    %cst_1 = arith.constant 1.280000e+02 : f32
    %3 = vector.broadcast %cst_1 : f32 to vector<32x1xf32>
    %4 = arith.divf %2, %3 : vector<32x1xf32>
    %5 = vector.broadcast %4 : vector<32x1xf32> to vector<32x128xf32>
    %6 = arith.subf %0, %5 : vector<32x128xf32>
    %7 = arith.mulf %6, %6 : vector<32x128xf32>
    %cst_2 = arith.constant dense<0.000000e+00> : vector<32xf32>
    %8 = vector.multi_reduction <add>, %7, %cst_2 [1] : vector<32x128xf32> to vector<32xf32>
    %9 = vector.shape_cast %8 : vector<32xf32> to vector<32x1xf32>
    %cst_3 = arith.constant 1.280000e+02 : f32
    %10 = vector.broadcast %cst_3 : f32 to vector<32x1xf32>
    %11 = arith.divf %9, %10 : vector<32x1xf32>
    %cst_4 = arith.constant 9.99999996E-13 : f32
    %12 = vector.broadcast %cst_4 : f32 to vector<32x1xf32>
    %13 = arith.addf %11, %12 : vector<32x1xf32>
    %14 = math.rsqrt %13 : vector<32x1xf32>
    %15 = vector.broadcast %14 : vector<32x1xf32> to vector<32x128xf32>
    %16 = arith.mulf %6, %15 : vector<32x128xf32>
    %c0_5 = arith.constant 0 : index
    %c0_6 = arith.constant 0 : index
    %17 = vector.load %arg2[%c0_5, %c0_6] : memref<1x128xf32, #tpu.memory_space<vmem>>, vector<1x128xf32>
    %18 = vector.broadcast %17 : vector<1x128xf32> to vector<32x128xf32>
    %19 = arith.mulf %16, %18 : vector<32x128xf32>
    %c0_7 = arith.constant 0 : index
    %c0_8 = arith.constant 0 : index
    %20 = vector.load %arg3[%c0_7, %c0_8] : memref<1x128xf32, #tpu.memory_space<vmem>>, vector<1x128xf32>
    %21 = vector.broadcast %20 : vector<1x128xf32> to vector<32x128xf32>
    %22 = arith.addf %19, %21 : vector<32x128xf32>
    %23 = arith.truncf %22 : vector<32x128xf32> to vector<32x128xbf16>
    %c0_9 = arith.constant 0 : index
    %c0_10 = arith.constant 0 : index
    %24 = vector.load %arg4[%c0_9, %c0_10] : memref<32x128xbf16, #tpu.memory_space<vmem>>, vector<32x128xbf16>
    tpu.vector_store %arg4[%c0_9, %c0_10], %23 {strides = array<i32>} : memref<32x128xbf16, #tpu.memory_space<vmem>>, vector<32x128xbf16>,
    return
  }
  func.func @transform_0(%arg0: i32) -> (i32, i32) {
    %c0_i32 = arith.constant 0 : i32
    %c0_i32_0 = arith.constant 0 : i32
    return %arg0, %c0_i32 : i32, i32
  }
  func.func @transform_1(%arg0: i32) -> (i32, i32) {
    %c0_i32 = arith.constant 0 : i32
    %c0_i32_0 = arith.constant 0 : i32
    %c0_i32_1 = arith.constant 0 : i32
    return %c0_i32, %c0_i32_0 : i32, i32
  }
  func.func @transform_2(%arg0: i32) -> (i32, i32) {
    %c0_i32 = arith.constant 0 : i32
    %c0_i32_0 = arith.constant 0 : i32
    %c0_i32_1 = arith.constant 0 : i32
    return %c0_i32, %c0_i32_0 : i32, i32
  }
  func.func @transform_3(%arg0: i32) -> (i32, i32) {
    %c0_i32 = arith.constant 0 : i32
    %c0_i32_0 = arith.constant 0 : i32
    return %arg0, %c0_i32 : i32, i32
  }
}

module attributes {stable_mosaic.version = 11 : i64} {
  func.func @_linear_add_ln_nok_kernel(%arg0: i32, %arg1: memref<32x128xbf16, #tpu.memory_space<vmem>>, %arg2: memref<128x128xbf16, #tpu.memory_space<vmem>>, %arg3: memref<1x128xf32, #tpu.memory_space<vmem>>, %arg4: memref<32x128xbf16, #tpu.memory_space<vmem>>, %arg5: memref<1x128xf32, #tpu.memory_space<vmem>>, %arg6: memref<1x128xf32, #tpu.memory_space<vmem>>, %arg7: memref<32x128xbf16, #tpu.memory_space<vmem>>) attributes {dimension_semantics = [#tpu.dimension_semantics<parallel>], iteration_bounds = array<i64: 1>, scalar_prefetch = 0 : i64, scratch_operands = 0 : i64, tpu.core_type = #tpu.core_type<tc>, window_params = [{transform_indices = @transform_0, window_bounds = array<i64: 32, 128>}, {pipeline_mode = #tpu.pipeline_mode<synchronous>, transform_indices = @transform_1, window_bounds = array<i64: 128, 128>}, {pipeline_mode = #tpu.pipeline_mode<synchronous>, transform_indices = @transform_2, window_bounds = array<i64: 1, 128>}, {transform_indices = @transform_3, window_bounds = array<i64: 32, 128>}, {pipeline_mode = #tpu.pipeline_mode<synchronous>, transform_indices = @transform_4, window_bounds = array<i64: 1, 128>}, {pipeline_mode = #tpu.pipeline_mode<synchronous>, transform_indices = @transform_5, window_bounds = array<i64: 1, 128>}, {transform_indices = @transform_6, window_bounds = array<i64: 32, 128>}]} {
    %c0 = arith.constant 0 : index
    %c0_0 = arith.constant 0 : index
    %0 = vector.load %arg1[%c0, %c0_0] : memref<32x128xbf16, #tpu.memory_space<vmem>>, vector<32x128xbf16>
    %c0_1 = arith.constant 0 : index
    %c0_2 = arith.constant 0 : index
    %1 = vector.load %arg2[%c0_1, %c0_2] : memref<128x128xbf16, #tpu.memory_space<vmem>>, vector<128x128xbf16>
    %cst = arith.constant dense<0.000000e+00> : vector<32x128xf32>
    %2 = tpu.matmul %0, %1, %cst {dimension_numbers = #tpu.dot_dimension_numbers<[1], [0], [0], [1], [0, 0, 1, 1], [], []>} : vector<32x128xbf16>, vector<128x128xbf16>, vector<32x128xf32> -> vector<32x128xf32>
    %c0_3 = arith.constant 0 : index
    %c0_4 = arith.constant 0 : index
    %3 = vector.load %arg3[%c0_3, %c0_4] : memref<1x128xf32, #tpu.memory_space<vmem>>, vector<1x128xf32>
    %4 = vector.broadcast %3 : vector<1x128xf32> to vector<32x128xf32>
    %5 = arith.addf %2, %4 : vector<32x128xf32>
    %c0_5 = arith.constant 0 : index
    %c0_6 = arith.constant 0 : index
    %6 = vector.load %arg4[%c0_5, %c0_6] : memref<32x128xbf16, #tpu.memory_space<vmem>>, vector<32x128xbf16>
    %7 = arith.extf %6 : vector<32x128xbf16> to vector<32x128xf32>
    %8 = arith.addf %5, %7 : vector<32x128xf32>
    %cst_7 = arith.constant dense<0.000000e+00> : vector<32xf32>
    %9 = vector.multi_reduction <add>, %8, %cst_7 [1] : vector<32x128xf32> to vector<32xf32>
    %10 = vector.shape_cast %9 : vector<32xf32> to vector<32x1xf32>
    %cst_8 = arith.constant 1.280000e+02 : f32
    %11 = vector.broadcast %cst_8 : f32 to vector<32x1xf32>
    %12 = arith.divf %10, %11 : vector<32x1xf32>
    %13 = vector.broadcast %12 : vector<32x1xf32> to vector<32x128xf32>
    %14 = arith.subf %8, %13 : vector<32x128xf32>
    %15 = arith.mulf %14, %14 : vector<32x128xf32>
    %cst_9 = arith.constant dense<0.000000e+00> : vector<32xf32>
    %16 = vector.multi_reduction <add>, %15, %cst_9 [1] : vector<32x128xf32> to vector<32xf32>
    %17 = vector.shape_cast %16 : vector<32xf32> to vector<32x1xf32>
    %cst_10 = arith.constant 1.280000e+02 : f32
    %18 = vector.broadcast %cst_10 : f32 to vector<32x1xf32>
    %19 = arith.divf %17, %18 : vector<32x1xf32>
    %cst_11 = arith.constant 9.99999996E-13 : f32
    %20 = vector.broadcast %cst_11 : f32 to vector<32x1xf32>
    %21 = arith.addf %19, %20 : vector<32x1xf32>
    %22 = math.rsqrt %21 : vector<32x1xf32>
    %23 = vector.broadcast %22 : vector<32x1xf32> to vector<32x128xf32>
    %24 = arith.mulf %14, %23 : vector<32x128xf32>
    %c0_12 = arith.constant 0 : index
    %c0_13 = arith.constant 0 : index
    %25 = vector.load %arg5[%c0_12, %c0_13] : memref<1x128xf32, #tpu.memory_space<vmem>>, vector<1x128xf32>
    %26 = vector.broadcast %25 : vector<1x128xf32> to vector<32x128xf32>
    %27 = arith.mulf %24, %26 : vector<32x128xf32>
    %c0_14 = arith.constant 0 : index
    %c0_15 = arith.constant 0 : index
    %28 = vector.load %arg6[%c0_14, %c0_15] : memref<1x128xf32, #tpu.memory_space<vmem>>, vector<1x128xf32>
    %29 = vector.broadcast %28 : vector<1x128xf32> to vector<32x128xf32>
    %30 = arith.addf %27, %29 : vector<32x128xf32>
    %31 = arith.truncf %30 : vector<32x128xf32> to vector<32x128xbf16>
    %c0_16 = arith.constant 0 : index
    %c0_17 = arith.constant 0 : index
    %32 = vector.load %arg7[%c0_16, %c0_17] : memref<32x128xbf16, #tpu.memory_space<vmem>>, vector<32x128xbf16>
    tpu.vector_store %arg7[%c0_16, %c0_17], %31 {strides = array<i32>} : memref<32x128xbf16, #tpu.memory_space<vmem>>, vector<32x128xbf16>,
    return
  }
  func.func @transform_0(%arg0: i32) -> (i32, i32) {
    %c0_i32 = arith.constant 0 : i32
    %c0_i32_0 = arith.constant 0 : i32
    return %arg0, %c0_i32 : i32, i32
  }
  func.func @transform_1(%arg0: i32) -> (i32, i32) {
    %c0_i32 = arith.constant 0 : i32
    %c0_i32_0 = arith.constant 0 : i32
    %c0_i32_1 = arith.constant 0 : i32
    return %c0_i32, %c0_i32_0 : i32, i32
  }
  func.func @transform_2(%arg0: i32) -> (i32, i32) {
    %c0_i32 = arith.constant 0 : i32
    %c0_i32_0 = arith.constant 0 : i32
    %c0_i32_1 = arith.constant 0 : i32
    return %c0_i32, %c0_i32_0 : i32, i32
  }
  func.func @transform_3(%arg0: i32) -> (i32, i32) {
    %c0_i32 = arith.constant 0 : i32
    %c0_i32_0 = arith.constant 0 : i32
    return %arg0, %c0_i32 : i32, i32
  }
  func.func @transform_4(%arg0: i32) -> (i32, i32) {
    %c0_i32 = arith.constant 0 : i32
    %c0_i32_0 = arith.constant 0 : i32
    %c0_i32_1 = arith.constant 0 : i32
    return %c0_i32, %c0_i32_0 : i32, i32
  }
  func.func @transform_5(%arg0: i32) -> (i32, i32) {
    %c0_i32 = arith.constant 0 : i32
    %c0_i32_0 = arith.constant 0 : i32
    %c0_i32_1 = arith.constant 0 : i32
    return %c0_i32, %c0_i32_0 : i32, i32
  }
  func.func @transform_6(%arg0: i32) -> (i32, i32) {
    %c0_i32 = arith.constant 0 : i32
    %c0_i32_0 = arith.constant 0 : i32
    return %arg0, %c0_i32 : i32, i32
  }
}

module attributes {stable_mosaic.version = 11 : i64} {
  func.func @_linear_add_ln_k_kernel(%arg0: i32, %arg1: i32, %arg2: memref<32x1024xbf16, #tpu.memory_space<vmem>>, %arg3: memref<1024x128xbf16, #tpu.memory_space<vmem>>, %arg4: memref<1x128xf32, #tpu.memory_space<vmem>>, %arg5: memref<32x128xbf16, #tpu.memory_space<vmem>>, %arg6: memref<1x128xf32, #tpu.memory_space<vmem>>, %arg7: memref<1x128xf32, #tpu.memory_space<vmem>>, %arg8: memref<32x128xbf16, #tpu.memory_space<vmem>>, %arg9: memref<32x128xf32, #tpu.memory_space<vmem>>) attributes {dimension_semantics = [#tpu.dimension_semantics<parallel>, #tpu.dimension_semantics<arbitrary>], iteration_bounds = array<i64: 1, 2>, scalar_prefetch = 0 : i64, scratch_operands = 1 : i64, tpu.core_type = #tpu.core_type<tc>, window_params = [{transform_indices = @transform_0, window_bounds = array<i64: 32, 1024>}, {transform_indices = @transform_1, window_bounds = array<i64: 1024, 128>}, {pipeline_mode = #tpu.pipeline_mode<synchronous>, transform_indices = @transform_2, window_bounds = array<i64: 1, 128>}, {transform_indices = @transform_3, window_bounds = array<i64: 32, 128>}, {pipeline_mode = #tpu.pipeline_mode<synchronous>, transform_indices = @transform_4, window_bounds = array<i64: 1, 128>}, {pipeline_mode = #tpu.pipeline_mode<synchronous>, transform_indices = @transform_5, window_bounds = array<i64: 1, 128>}, {transform_indices = @transform_6, window_bounds = array<i64: 32, 128>}]} {
    %c0_i32 = arith.constant 0 : i32
    %0 = arith.cmpi eq, %arg1, %c0_i32 : i32
    %1 = arith.extui %0 : i1 to i32
    %c0_i32_0 = arith.constant 0 : i32
    %2 = arith.cmpi ne, %1, %c0_i32_0 : i32
    scf.if %2 {
      %cst_9 = arith.constant 0.000000e+00 : f32
      %12 = vector.broadcast %cst_9 : f32 to vector<32x128xf32>
      %c0_10 = arith.constant 0 : index
      %c0_11 = arith.constant 0 : index
      %13 = vector.load %arg9[%c0_10, %c0_11] : memref<32x128xf32, #tpu.memory_space<vmem>>, vector<32x128xf32>
      tpu.vector_store %arg9[%c0_10, %c0_11], %12 {strides = array<i32>} : memref<32x128xf32, #tpu.memory_space<vmem>>, vector<32x128xf32>,
    } else {
    }
    %c0 = arith.constant 0 : index
    %c0_1 = arith.constant 0 : index
    %3 = vector.load %arg9[%c0, %c0_1] : memref<32x128xf32, #tpu.memory_space<vmem>>, vector<32x128xf32>
    %c0_2 = arith.constant 0 : index
    %c0_3 = arith.constant 0 : index
    %4 = vector.load %arg2[%c0_2, %c0_3] : memref<32x1024xbf16, #tpu.memory_space<vmem>>, vector<32x1024xbf16>
    %c0_4 = arith.constant 0 : index
    %c0_5 = arith.constant 0 : index
    %5 = vector.load %arg3[%c0_4, %c0_5] : memref<1024x128xbf16, #tpu.memory_space<vmem>>, vector<1024x128xbf16>
    %cst = arith.constant dense<0.000000e+00> : vector<32x128xf32>
    %6 = tpu.matmul %4, %5, %cst {dimension_numbers = #tpu.dot_dimension_numbers<[1], [0], [0], [1], [0, 0, 1, 1], [], []>} : vector<32x1024xbf16>, vector<1024x128xbf16>, vector<32x128xf32> -> vector<32x128xf32>
    %7 = arith.addf %3, %6 : vector<32x128xf32>
    %c0_6 = arith.constant 0 : index
    %c0_7 = arith.constant 0 : index
    %8 = vector.load %arg9[%c0_6, %c0_7] : memref<32x128xf32, #tpu.memory_space<vmem>>, vector<32x128xf32>
    tpu.vector_store %arg9[%c0_6, %c0_7], %7 {strides = array<i32>} : memref<32x128xf32, #tpu.memory_space<vmem>>, vector<32x128xf32>,
    %c1_i32 = arith.constant 1 : i32
    %9 = arith.cmpi eq, %arg1, %c1_i32 : i32
    %10 = arith.extui %9 : i1 to i32
    %c0_i32_8 = arith.constant 0 : i32
    %11 = arith.cmpi ne, %10, %c0_i32_8 : i32
    scf.if %11 {
      %c0_9 = arith.constant 0 : index
      %c0_10 = arith.constant 0 : index
      %12 = vector.load %arg9[%c0_9, %c0_10] : memref<32x128xf32, #tpu.memory_space<vmem>>, vector<32x128xf32>
      %c0_11 = arith.constant 0 : index
      %c0_12 = arith.constant 0 : index
      %13 = vector.load %arg4[%c0_11, %c0_12] : memref<1x128xf32, #tpu.memory_space<vmem>>, vector<1x128xf32>
      %14 = vector.broadcast %13 : vector<1x128xf32> to vector<32x128xf32>
      %15 = arith.addf %12, %14 : vector<32x128xf32>
      %c0_13 = arith.constant 0 : index
      %c0_14 = arith.constant 0 : index
      %16 = vector.load %arg5[%c0_13, %c0_14] : memref<32x128xbf16, #tpu.memory_space<vmem>>, vector<32x128xbf16>
      %17 = arith.extf %16 : vector<32x128xbf16> to vector<32x128xf32>
      %18 = arith.addf %15, %17 : vector<32x128xf32>
      %cst_15 = arith.constant dense<0.000000e+00> : vector<32xf32>
      %19 = vector.multi_reduction <add>, %18, %cst_15 [1] : vector<32x128xf32> to vector<32xf32>
      %20 = vector.shape_cast %19 : vector<32xf32> to vector<32x1xf32>
      %cst_16 = arith.constant 1.280000e+02 : f32
      %21 = vector.broadcast %cst_16 : f32 to vector<32x1xf32>
      %22 = arith.divf %20, %21 : vector<32x1xf32>
      %23 = vector.broadcast %22 : vector<32x1xf32> to vector<32x128xf32>
      %24 = arith.subf %18, %23 : vector<32x128xf32>
      %25 = arith.mulf %24, %24 : vector<32x128xf32>
      %cst_17 = arith.constant dense<0.000000e+00> : vector<32xf32>
      %26 = vector.multi_reduction <add>, %25, %cst_17 [1] : vector<32x128xf32> to vector<32xf32>
      %27 = vector.shape_cast %26 : vector<32xf32> to vector<32x1xf32>
      %cst_18 = arith.constant 1.280000e+02 : f32
      %28 = vector.broadcast %cst_18 : f32 to vector<32x1xf32>
      %29 = arith.divf %27, %28 : vector<32x1xf32>
      %cst_19 = arith.constant 9.99999996E-13 : f32
      %30 = vector.broadcast %cst_19 : f32 to vector<32x1xf32>
      %31 = arith.addf %29, %30 : vector<32x1xf32>
      %32 = math.rsqrt %31 : vector<32x1xf32>
      %33 = vector.broadcast %32 : vector<32x1xf32> to vector<32x128xf32>
      %34 = arith.mulf %24, %33 : vector<32x128xf32>
      %c0_20 = arith.constant 0 : index
      %c0_21 = arith.constant 0 : index
      %35 = vector.load %arg6[%c0_20, %c0_21] : memref<1x128xf32, #tpu.memory_space<vmem>>, vector<1x128xf32>
      %36 = vector.broadcast %35 : vector<1x128xf32> to vector<32x128xf32>
      %37 = arith.mulf %34, %36 : vector<32x128xf32>
      %c0_22 = arith.constant 0 : index
      %c0_23 = arith.constant 0 : index
      %38 = vector.load %arg7[%c0_22, %c0_23] : memref<1x128xf32, #tpu.memory_space<vmem>>, vector<1x128xf32>
      %39 = vector.broadcast %38 : vector<1x128xf32> to vector<32x128xf32>
      %40 = arith.addf %37, %39 : vector<32x128xf32>
      %41 = arith.truncf %40 : vector<32x128xf32> to vector<32x128xbf16>
      %c0_24 = arith.constant 0 : index
      %c0_25 = arith.constant 0 : index
      %42 = vector.load %arg8[%c0_24, %c0_25] : memref<32x128xbf16, #tpu.memory_space<vmem>>, vector<32x128xbf16>
      tpu.vector_store %arg8[%c0_24, %c0_25], %41 {strides = array<i32>} : memref<32x128xbf16, #tpu.memory_space<vmem>>, vector<32x128xbf16>,
    } else {
    }
    return
  }
  func.func @transform_0(%arg0: i32, %arg1: i32) -> (i32, i32) {
    %c0_i32 = arith.constant 0 : i32
    return %arg0, %arg1 : i32, i32
  }
  func.func @transform_1(%arg0: i32, %arg1: i32) -> (i32, i32) {
    %c0_i32 = arith.constant 0 : i32
    %c0_i32_0 = arith.constant 0 : i32
    return %arg1, %c0_i32 : i32, i32
  }
  func.func @transform_2(%arg0: i32, %arg1: i32) -> (i32, i32) {
    %c0_i32 = arith.constant 0 : i32
    %c0_i32_0 = arith.constant 0 : i32
    %c0_i32_1 = arith.constant 0 : i32
    return %c0_i32, %c0_i32_0 : i32, i32
  }
  func.func @transform_3(%arg0: i32, %arg1: i32) -> (i32, i32) {
    %c0_i32 = arith.constant 0 : i32
    %c0_i32_0 = arith.constant 0 : i32
    return %arg0, %c0_i32 : i32, i32
  }
  func.func @transform_4(%arg0: i32, %arg1: i32) -> (i32, i32) {
    %c0_i32 = arith.constant 0 : i32
    %c0_i32_0 = arith.constant 0 : i32
    %c0_i32_1 = arith.constant 0 : i32
    return %c0_i32, %c0_i32_0 : i32, i32
  }
  func.func @transform_5(%arg0: i32, %arg1: i32) -> (i32, i32) {
    %c0_i32 = arith.constant 0 : i32
    %c0_i32_0 = arith.constant 0 : i32
    %c0_i32_1 = arith.constant 0 : i32
    return %c0_i32, %c0_i32_0 : i32, i32
  }
  func.func @transform_6(%arg0: i32, %arg1: i32) -> (i32, i32) {
    %c0_i32 = arith.constant 0 : i32
    %c0_i32_0 = arith.constant 0 : i32
    return %arg0, %c0_i32 : i32, i32
  }
}

module attributes {stable_mosaic.version = 11 : i64} {
  func.func @_linear_nok_kernel(%arg0: i32, %arg1: i32, %arg2: memref<32x128xbf16, #tpu.memory_space<vmem>>, %arg3: memref<128x1024xbf16, #tpu.memory_space<vmem>>, %arg4: memref<1x1024xf32, #tpu.memory_space<vmem>>, %arg5: memref<32x1024xbf16, #tpu.memory_space<vmem>>) attributes {dimension_semantics = [#tpu.dimension_semantics<parallel>, #tpu.dimension_semantics<parallel>], iteration_bounds = array<i64: 1, 2>, scalar_prefetch = 0 : i64, scratch_operands = 0 : i64, tpu.core_type = #tpu.core_type<tc>, window_params = [{transform_indices = @transform_0, window_bounds = array<i64: 32, 128>}, {transform_indices = @transform_1, window_bounds = array<i64: 128, 1024>}, {transform_indices = @transform_2, window_bounds = array<i64: 1, 1024>}, {transform_indices = @transform_3, window_bounds = array<i64: 32, 1024>}]} {
    %c0 = arith.constant 0 : index
    %c0_0 = arith.constant 0 : index
    %0 = vector.load %arg2[%c0, %c0_0] : memref<32x128xbf16, #tpu.memory_space<vmem>>, vector<32x128xbf16>
    %c0_1 = arith.constant 0 : index
    %c0_2 = arith.constant 0 : index
    %1 = vector.load %arg3[%c0_1, %c0_2] : memref<128x1024xbf16, #tpu.memory_space<vmem>>, vector<128x1024xbf16>
    %cst = arith.constant dense<0.000000e+00> : vector<32x1024xf32>
    %2 = tpu.matmul %0, %1, %cst {dimension_numbers = #tpu.dot_dimension_numbers<[1], [0], [0], [1], [0, 0, 1, 1], [], []>} : vector<32x128xbf16>, vector<128x1024xbf16>, vector<32x1024xf32> -> vector<32x1024xf32>
    %c0_3 = arith.constant 0 : index
    %c0_4 = arith.constant 0 : index
    %3 = vector.load %arg4[%c0_3, %c0_4] : memref<1x1024xf32, #tpu.memory_space<vmem>>, vector<1x1024xf32>
    %4 = vector.broadcast %3 : vector<1x1024xf32> to vector<32x1024xf32>
    %5 = arith.addf %2, %4 : vector<32x1024xf32>
    %cst_5 = arith.constant 5.000000e-01 : f32
    %6 = vector.broadcast %cst_5 : f32 to vector<32x1024xf32>
    %7 = arith.mulf %6, %5 : vector<32x1024xf32>
    %cst_6 = arith.constant 0.707106769 : f32
    %8 = vector.broadcast %cst_6 : f32 to vector<32x1024xf32>
    %9 = arith.mulf %5, %8 : vector<32x1024xf32>
    %10 = math.erf %9 : vector<32x1024xf32>
    %cst_7 = arith.constant 1.000000e+00 : f32
    %11 = vector.broadcast %cst_7 : f32 to vector<32x1024xf32>
    %12 = arith.addf %11, %10 : vector<32x1024xf32>
    %13 = arith.mulf %7, %12 : vector<32x1024xf32>
    %14 = arith.truncf %13 : vector<32x1024xf32> to vector<32x1024xbf16>
    %c0_8 = arith.constant 0 : index
    %c0_9 = arith.constant 0 : index
    %15 = vector.load %arg5[%c0_8, %c0_9] : memref<32x1024xbf16, #tpu.memory_space<vmem>>, vector<32x1024xbf16>
    tpu.vector_store %arg5[%c0_8, %c0_9], %14 {strides = array<i32>} : memref<32x1024xbf16, #tpu.memory_space<vmem>>, vector<32x1024xbf16>,
    return
  }
  func.func @transform_0(%arg0: i32, %arg1: i32) -> (i32, i32) {
    %c0_i32 = arith.constant 0 : i32
    %c0_i32_0 = arith.constant 0 : i32
    return %arg0, %c0_i32 : i32, i32
  }
  func.func @transform_1(%arg0: i32, %arg1: i32) -> (i32, i32) {
    %c0_i32 = arith.constant 0 : i32
    %c0_i32_0 = arith.constant 0 : i32
    return %c0_i32, %arg1 : i32, i32
  }
  func.func @transform_2(%arg0: i32, %arg1: i32) -> (i32, i32) {
    %c0_i32 = arith.constant 0 : i32
    %c0_i32_0 = arith.constant 0 : i32
    return %c0_i32, %arg1 : i32, i32
  }
  func.func @transform_3(%arg0: i32, %arg1: i32) -> (i32, i32) {
    %c0_i32 = arith.constant 0 : i32
    return %arg0, %arg1 : i32, i32
  }
}

module attributes {stable_mosaic.version = 11 : i64} {
  func.func @_linear_nok_kernel(%arg0: i32, %arg1: i32, %arg2: memref<32x128xbf16, #tpu.memory_space<vmem>>, %arg3: memref<128x384xbf16, #tpu.memory_space<vmem>>, %arg4: memref<1x384xf32, #tpu.memory_space<vmem>>, %arg5: memref<32x384xbf16, #tpu.memory_space<vmem>>) attributes {dimension_semantics = [#tpu.dimension_semantics<parallel>, #tpu.dimension_semantics<parallel>], iteration_bounds = array<i64: 1, 1>, scalar_prefetch = 0 : i64, scratch_operands = 0 : i64, tpu.core_type = #tpu.core_type<tc>, window_params = [{transform_indices = @transform_0, window_bounds = array<i64: 32, 128>}, {transform_indices = @transform_1, window_bounds = array<i64: 128, 384>}, {transform_indices = @transform_2, window_bounds = array<i64: 1, 384>}, {transform_indices = @transform_3, window_bounds = array<i64: 32, 384>}]} {
    %c0 = arith.constant 0 : index
    %c0_0 = arith.constant 0 : index
    %0 = vector.load %arg2[%c0, %c0_0] : memref<32x128xbf16, #tpu.memory_space<vmem>>, vector<32x128xbf16>
    %c0_1 = arith.constant 0 : index
    %c0_2 = arith.constant 0 : index
    %1 = vector.load %arg3[%c0_1, %c0_2] : memref<128x384xbf16, #tpu.memory_space<vmem>>, vector<128x384xbf16>
    %cst = arith.constant dense<0.000000e+00> : vector<32x384xf32>
    %2 = tpu.matmul %0, %1, %cst {dimension_numbers = #tpu.dot_dimension_numbers<[1], [0], [0], [1], [0, 0, 1, 1], [], []>} : vector<32x128xbf16>, vector<128x384xbf16>, vector<32x384xf32> -> vector<32x384xf32>
    %c0_3 = arith.constant 0 : index
    %c0_4 = arith.constant 0 : index
    %3 = vector.load %arg4[%c0_3, %c0_4] : memref<1x384xf32, #tpu.memory_space<vmem>>, vector<1x384xf32>
    %4 = vector.broadcast %3 : vector<1x384xf32> to vector<32x384xf32>
    %5 = arith.addf %2, %4 : vector<32x384xf32>
    %6 = arith.truncf %5 : vector<32x384xf32> to vector<32x384xbf16>
    %c0_5 = arith.constant 0 : index
    %c0_6 = arith.constant 0 : index
    %7 = vector.load %arg5[%c0_5, %c0_6] : memref<32x384xbf16, #tpu.memory_space<vmem>>, vector<32x384xbf16>
    tpu.vector_store %arg5[%c0_5, %c0_6], %6 {strides = array<i32>} : memref<32x384xbf16, #tpu.memory_space<vmem>>, vector<32x384xbf16>,
    return
  }
  func.func @transform_0(%arg0: i32, %arg1: i32) -> (i32, i32) {
    %c0_i32 = arith.constant 0 : i32
    %c0_i32_0 = arith.constant 0 : i32
    return %arg0, %c0_i32 : i32, i32
  }
  func.func @transform_1(%arg0: i32, %arg1: i32) -> (i32, i32) {
    %c0_i32 = arith.constant 0 : i32
    %c0_i32_0 = arith.constant 0 : i32
    return %c0_i32, %arg1 : i32, i32
  }
  func.func @transform_2(%arg0: i32, %arg1: i32) -> (i32, i32) {
    %c0_i32 = arith.constant 0 : i32
    %c0_i32_0 = arith.constant 0 : i32
    return %c0_i32, %arg1 : i32, i32
  }
  func.func @transform_3(%arg0: i32, %arg1: i32) -> (i32, i32) {
    %c0_i32 = arith.constant 0 : i32
    return %arg0, %arg1 : i32, i32
  }
}

</mosaic_0001>

<llo_original>
// kernel: bioclinicalbert_ft_forward.13
$region0: #{bioclinicalbert_ft_forward.13}
  #allocation0 [shape = 'u32[]', space=smem, size = 0x4, offset = 0x4, fixed_abs, tag = 'smem constant byte address 0x4 - core index']
  #allocation1 [shape = 'u32[72,128]{1,0:T(1,128)}', space=vmem, size = 0x9000, scoped, tag = 'internal scratch']
  %s0 = inlined_call_operand.vmem [shape: f32[2,1,16], index: 0, kind: input, shape index: {}]
  %s1 = inlined_call_operand.vmem [shape: bf16[2,16,384], index: 1, kind: input, shape index: {}, may-alias: {1,2,3}]
  %s2 = inlined_call_operand.vmem [shape: bf16[2,16,384], index: 2, kind: input, shape index: {}, may-alias: {1,2,3}]
  %s3 = inlined_call_operand.vmem [shape: bf16[2,16,384], index: 3, kind: input, shape index: {}, may-alias: {1,2,3}]
  %s4 = inlined_call_operand.vmem [shape: bf16[2,16,128], index: 4, kind: output, shape index: {}]
  %s5 = sld [smem:[#allocation0]]
  $region172: #{bioclinicalbert_ft_forward.13} parent=0
    _
  %s7 = ssub.s32 1, %s5
  %s8 = scalar_select 0, %s7, %s5
  $region1: #{bioclinicalbert_ft_forward.13} parent=0
    #allocation2 [shape = 'u8[8192]{0}', space=vmem, size = 0x2000, scoped, tag = 'input window, operand 1']
    #allocation3 [shape = 'u8[8192]{0}', space=vmem, size = 0x2000, scoped, tag = 'input window, operand 2']
    #allocation4 [shape = 'u8[8192]{0}', space=vmem, size = 0x2000, scoped, tag = 'input window, operand 3']
    loop: start=0, step=1, limit=4
    $region2: #{bioclinicalbert_ft_forward.13} parent=1 // loop_pre_header
      _
    $region3: #{bioclinicalbert_ft_forward.13} parent=1 // loop_header
      %s10 = sphi 0, %s14
      %p11 = scmp.ge.s32.totalorder %s10, 4
      %s17 = sphi 0, %s29
      %s18 = sphi 0, %s25
      %s19 = sphi 0, %s17
      %s20 = sphi 0, %s18
      %s21 = sphi 0, %s19
      %s22 = sphi 0, %s20
      %s32 = sphi 0, %s34
      %s35 = sphi 0, %s32
      %s36 = sphi 0, %s35
      %s52 = sphi 0, %s36
      %s60 = sphi 0, %s62
      %s63 = sphi 0, %s60
      %s64 = sphi 0, %s63
      %s80 = sphi 0, %s64
      %s86 = sphi 0, %s88
      %s89 = sphi 0, %s86
      %s90 = sphi 0, %s89
      %s106 = sphi 0, %s90
      %s112 = sphi 0, %s114
      %s115 = sphi 0, %s112
      %s116 = sphi 0, %s115
      %s132 = sphi 0, %s116
      %s140 = sphi 0, %s142
      %s143 = sphi 0, %s140
      %s144 = sphi 0, %s143
      %s160 = sphi 0, %s144
    $region4: #{bioclinicalbert_ft_forward.13} parent=1 // loop_header_branch
      %13 = sbr.rel (%p11) target = $region8
    $region5: #{bioclinicalbert_ft_forward.13} parent=1 // loop_body
      %s15 = ssub.s32 %s10, 1
      %s16 = ssub.s32 %s10, 2
      %s23 = sadd.s32 1, %s18
      %p24 = scmp.ge.s32.totalorder %s23, 1
      %s25 = scalar_select %p24, 0, %s23
      %s26 = sadd.s32 1, %s17
      %s27 = scalar_select %p24, %s26, %s17
      %p28 = scmp.ge.s32.totalorder %s27, 2
      %s29 = scalar_select %p28, 0, %s27
      %s30 = ssub.s32 %s17, %s29
      %p31 = scmp.eq.s32.totalorder %s30, 0
      %s33 = sadd.s32 %s32, 1
      %s34 = scalar_select %p31, %s32, %s33
      %p37 = pneg %p31
      %p38 = scmp.eq.s32.totalorder %s10, 1
      %p39 = por %p37, %p38
      %p40 = scmp.ne.s32.totalorder %s32, %s35
      %p41 = scmp.eq.s32.totalorder %s10, 0
      %p42 = por %p40, %p41
      %p43 = scmp.ne.s32.totalorder %s32, %s35
      %p44 = scmp.eq.s32.totalorder %s15, 1
      %p45 = por %p43, %p44
      %p46 = scmp.ne.s32.totalorder %s35, %s36
      %p47 = scmp.eq.s32.totalorder %s15, 0
      %p48 = por %p46, %p47
      %p49 = scmp.ne.s32.totalorder %s35, %s36
      %p50 = scmp.eq.s32.totalorder %s16, 1
      %p51 = por %p49, %p50
      %p53 = scmp.ne.s32.totalorder %s36, %s52
      %p54 = scmp.eq.s32.totalorder %s16, 0
      %p55 = por %p53, %p54
      %s56 = ssub.s32 %s17, %s29
      %s57 = ssub.s32 %s18, %s25
      %s58 = sor.u32 %s56, %s57
      %p59 = scmp.eq.s32.totalorder %s58, 0
      %s61 = sadd.s32 %s60, 1
      %s62 = scalar_select %p59, %s60, %s61
      %p65 = pneg %p59
      %p66 = scmp.eq.s32.totalorder %s10, 1
      %p67 = por %p65, %p66
      %p68 = scmp.ne.s32.totalorder %s60, %s63
      %p69 = scmp.eq.s32.totalorder %s10, 0
      %p70 = por %p68, %p69
      %p71 = scmp.ne.s32.totalorder %s60, %s63
      %p72 = scmp.eq.s32.totalorder %s15, 1
      %p73 = por %p71, %p72
      %p74 = scmp.ne.s32.totalorder %s63, %s64
      %p75 = scmp.eq.s32.totalorder %s15, 0
      %p76 = por %p74, %p75
      %p77 = scmp.ne.s32.totalorder %s63, %s64
      %p78 = scmp.eq.s32.totalorder %s16, 1
      %p79 = por %p77, %p78
      %p81 = scmp.ne.s32.totalorder %s64, %s80
      %p82 = scmp.eq.s32.totalorder %s16, 0
      %p83 = por %p81, %p82
      %s84 = ssub.s32 %s17, %s29
      %p85 = scmp.eq.s32.totalorder %s84, 0
      %s87 = sadd.s32 %s86, 1
      %s88 = scalar_select %p85, %s86, %s87
      %p91 = pneg %p85
      %p92 = scmp.eq.s32.totalorder %s10, 1
      %p93 = por %p91, %p92
      %p94 = scmp.ne.s32.totalorder %s86, %s89
      %p95 = scmp.eq.s32.totalorder %s10, 0
      %p96 = por %p94, %p95
      %p97 = scmp.ne.s32.totalorder %s86, %s89
      %p98 = scmp.eq.s32.totalorder %s15, 1
      %p99 = por %p97, %p98
      %p100 = scmp.ne.s32.totalorder %s89, %s90
      %p101 = scmp.eq.s32.totalorder %s15, 0
      %p102 = por %p100, %p101
      %p103 = scmp.ne.s32.totalorder %s89, %s90
      %p104 = scmp.eq.s32.totalorder %s16, 1
      %p105 = por %p103, %p104
      %p107 = scmp.ne.s32.totalorder %s90, %s106
      %p108 = scmp.eq.s32.totalorder %s16, 0
      %p109 = por %p107, %p108
      %s110 = ssub.s32 %s17, %s29
      %p111 = scmp.eq.s32.totalorder %s110, 0
      %s113 = sadd.s32 %s112, 1
      %s114 = scalar_select %p111, %s112, %s113
      %p117 = pneg %p111
      %p118 = scmp.eq.s32.totalorder %s10, 1
      %p119 = por %p117, %p118
      %p120 = scmp.ne.s32.totalorder %s112, %s115
      %p121 = scmp.eq.s32.totalorder %s10, 0
      %p122 = por %p120, %p121
      %p123 = scmp.ne.s32.totalorder %s112, %s115
      %p124 = scmp.eq.s32.totalorder %s15, 1
      %p125 = por %p123, %p124
      %p126 = scmp.ne.s32.totalorder %s115, %s116
      %p127 = scmp.eq.s32.totalorder %s15, 0
      %p128 = por %p126, %p127
      %p129 = scmp.ne.s32.totalorder %s115, %s116
      %p130 = scmp.eq.s32.totalorder %s16, 1
      %p131 = por %p129, %p130
      %p133 = scmp.ne.s32.totalorder %s116, %s132
      %p134 = scmp.eq.s32.totalorder %s16, 0
      %p135 = por %p133, %p134
      %s136 = ssub.s32 %s17, %s29
      %s137 = ssub.s32 %s18, %s25
      %s138 = sor.u32 %s136, %s137
      %p139 = scmp.eq.s32.totalorder %s138, 0
      %s141 = sadd.s32 %s140, 1
      %s142 = scalar_select %p139, %s140, %s141
      %p145 = pneg %p139
      %p146 = scmp.eq.s32.totalorder %s10, 1
      %p147 = por %p145, %p146
      %p148 = scmp.ne.s32.totalorder %s140, %s143
      %p149 = scmp.eq.s32.totalorder %s10, 0
      %p150 = por %p148, %p149
      %p151 = scmp.ne.s32.totalorder %s140, %s143
      %p152 = scmp.eq.s32.totalorder %s15, 1
      %p153 = por %p151, %p152
      %p154 = scmp.ne.s32.totalorder %s143, %s144
      %p155 = scmp.eq.s32.totalorder %s15, 0
      %p156 = por %p154, %p155
      %p157 = scmp.ne.s32.totalorder %s143, %s144
      %p158 = scmp.eq.s32.totalorder %s16, 1
      %p159 = por %p157, %p158
      %p161 = scmp.ne.s32.totalorder %s144, %s160
      %p162 = scmp.eq.s32.totalorder %s16, 0
      %p163 = por %p161, %p162
      %p164 = scmp.le.s32.totalorder 1, %s10
      %p165 = scmp.lt.s32.totalorder %s10, 3
      %p166 = pnand %p164, %p165
      %p167 = pneg %p166
      // Predicated region
      $region9: #{bioclinicalbert_ft_forward.13} parent=5 // pred_check
        _
      $region10: #{bioclinicalbert_ft_forward.13} parent=5 // pred_check_branch
        %169 = sbr.rel (%p166) target = $region12
      $region11: #{bioclinicalbert_ft_forward.13} parent=5 // pred_region
        %s170 = ssub.s32 %s10, 1
      $region12: #{bioclinicalbert_ft_forward.13} parent=5 // pred_fallthru
        _
      %p171 = scmp.lt.s32.totalorder %s10, 2
      // Predicated region
      $region13: #{bioclinicalbert_ft_forward.13} parent=5 // pred_check
        %p172 = pneg %p171
      $region14: #{bioclinicalbert_ft_forward.13} parent=5 // pred_check_branch
        %174 = sbr.rel (%p172) target = $region16
      $region15: #{bioclinicalbert_ft_forward.13} parent=5 // pred_region
        // Predicated region
        $region17: #{bioclinicalbert_ft_forward.13} parent=15 // pred_check
          %p175 = pneg %p42
        $region18: #{bioclinicalbert_ft_forward.13} parent=15 // pred_check_branch
          %177 = sbr.rel (%p175) target = $region20
        $region19: #{bioclinicalbert_ft_forward.13} parent=15 // pred_region
          %p178 = scmp.lt.s32.totalorder %s17, 1
          %s179 = scalar_select %p178, %s17, 1
          %s180 = scalar_lea.vmem %s0, %s179
        $region20: #{bioclinicalbert_ft_forward.13} parent=15 // pred_fallthru
          _
        // Predicated region
        $region21: #{bioclinicalbert_ft_forward.13} parent=15 // pred_check
          %p181 = pneg %p70
        $region22: #{bioclinicalbert_ft_forward.13} parent=15 // pred_check_branch
          %183 = sbr.rel (%p181) target = $region24
        $region23: #{bioclinicalbert_ft_forward.13} parent=15 // pred_region
          %s184 = sand.u32 %s60, 1
          %s185 = sand.u32 %s60, 1
          %s186 = smul.addr %s185, 8
          %s187 = scalar_lea.vmem [#allocation2], %s186
          %s188 = smul.u32 2, %s18
          %s189 = smul.addr %s188, 3
          %s190 = smul.addr %s17, 6
          %s191 = sadd.s32 %s189, %s190
          %s192 = smul.addr %s191, 4
          %s193 = scalar_lea.vmem %s1, %s192
          // Predicated region
          $region25: #{bioclinicalbert_ft_forward.13} parent=23 // pred_check
            _
          $region26: #{bioclinicalbert_ft_forward.13} parent=23 // pred_check_branch
            %195 = sbr.rel (0) target = $region28
          $region27: #{bioclinicalbert_ft_forward.13} parent=23 // pred_region
            // Predicated region
            $region29: #{bioclinicalbert_ft_forward.13} parent=27 // pred_check
              _
            $region30: #{bioclinicalbert_ft_forward.13} parent=27 // pred_check_branch
              %197 = sbr.rel target = $region32
            $region31: #{bioclinicalbert_ft_forward.13} parent=27 // pred_region
              // Predicated region
              $region44: #{bioclinicalbert_ft_forward.13} parent=31 // pred_check
                _
              $region45: #{bioclinicalbert_ft_forward.13} parent=31 // pred_check_branch
                %215 = sbr.rel (0) target = $region47
              $region46: #{bioclinicalbert_ft_forward.13} parent=31 // pred_region
                loop: start=0, step=1, limit=1
                $region48: #{bioclinicalbert_ft_forward.13} parent=46 // loop_pre_header
                  _
                $region49: #{bioclinicalbert_ft_forward.13} parent=46 // loop_header
                  %s217 = sphi 0, %s221
                  %p218 = scmp.ge.s32.totalorder %s217, 1
                  %s222 = sphi %s193, %s193
                  %s223 = sphi %s187, %s187
                $region50: #{bioclinicalbert_ft_forward.13} parent=46 // loop_header_branch
                  %220 = sbr.rel (%p218) target = $region54
                $region51: #{bioclinicalbert_ft_forward.13} parent=46 // loop_body
                  _
                $region52: #{bioclinicalbert_ft_forward.13} parent=46 // loop_footer
                  %s221 = sadd.s32 1, %s217
                $region53: #{bioclinicalbert_ft_forward.13} parent=46 // loop_footer_branch
                  %216 = sbr.rel target = $region49
                $region54: #{bioclinicalbert_ft_forward.13} parent=46 // loop_exit
                  _
                %s225 = ssub.s32 16, 1
                loop: start=0, step=1, limit=1
                $region55: #{bioclinicalbert_ft_forward.13} parent=46 // loop_pre_header
                  _
                $region56: #{bioclinicalbert_ft_forward.13} parent=46 // loop_header
                  %s227 = sphi 0, %s231
                  %p228 = scmp.ge.s32.totalorder %s227, 1
                  %s232 = sphi %s193, %s193
                  %s233 = sphi %s187, %s187
                $region57: #{bioclinicalbert_ft_forward.13} parent=46 // loop_header_branch
                  %230 = sbr.rel (%p228) target = $region61
                $region58: #{bioclinicalbert_ft_forward.13} parent=46 // loop_body
                  %v234 = vld [vmem:[%s232] sm:%s225]
                  %235 = vst [vmem:[%s233] sm:%s225] %v234
                  %v236 = vld [vmem:[%s232 + $0xc] sm:%s225]
                  %237 = vst [vmem:[%s233 + $0x4] sm:%s225] %v236
                $region59: #{bioclinicalbert_ft_forward.13} parent=46 // loop_footer
                  %s231 = sadd.s32 1, %s227
                $region60: #{bioclinicalbert_ft_forward.13} parent=46 // loop_footer_branch
                  %226 = sbr.rel target = $region56
                $region61: #{bioclinicalbert_ft_forward.13} parent=46 // loop_exit
                  _
              $region47: #{bioclinicalbert_ft_forward.13} parent=31 // pred_fallthru
                _
            $region32: #{bioclinicalbert_ft_forward.13} parent=27 // pred_fallthru
              _
            // Predicated region
            $region33: #{bioclinicalbert_ft_forward.13} parent=27 // pred_check
              _
            $region34: #{bioclinicalbert_ft_forward.13} parent=27 // pred_check_branch
              %199 = sbr.rel (0) target = $region36
            $region35: #{bioclinicalbert_ft_forward.13} parent=27 // pred_region
              %s201 = ssub.s32 16, 1
              loop: start=0, step=1, limit=1
              $region37: #{bioclinicalbert_ft_forward.13} parent=35 // loop_pre_header
                _
              $region38: #{bioclinicalbert_ft_forward.13} parent=35 // loop_header
                %s203 = sphi 0, %s207
                %p204 = scmp.ge.s32.totalorder %s203, 1
                %s208 = sphi %s193, %s193
                %s209 = sphi %s187, %s187
              $region39: #{bioclinicalbert_ft_forward.13} parent=35 // loop_header_branch
                %206 = sbr.rel (%p204) target = $region43
              $region40: #{bioclinicalbert_ft_forward.13} parent=35 // loop_body
                %v210 = vld [vmem:[%s208] sm:%s201]
                %211 = vst [vmem:[%s209] sm:%s201] %v210
                %v212 = vld [vmem:[%s208 + $0xc] sm:%s201]
                %213 = vst [vmem:[%s209 + $0x4] sm:%s201] %v212
              $region41: #{bioclinicalbert_ft_forward.13} parent=35 // loop_footer
                %s207 = sadd.s32 1, %s203
              $region42: #{bioclinicalbert_ft_forward.13} parent=35 // loop_footer_branch
                %202 = sbr.rel target = $region38
              $region43: #{bioclinicalbert_ft_forward.13} parent=35 // loop_exit
                _
            $region36: #{bioclinicalbert_ft_forward.13} parent=27 // pred_fallthru
              _
          $region28: #{bioclinicalbert_ft_forward.13} parent=23 // pred_fallthru
            _
          %238 = vnop
        $region24: #{bioclinicalbert_ft_forward.13} parent=15 // pred_fallthru
          _
        // Predicated region
        $region62: #{bioclinicalbert_ft_forward.13} parent=15 // pred_check
          %p239 = pneg %p96
        $region63: #{bioclinicalbert_ft_forward.13} parent=15 // pred_check_branch
          %241 = sbr.rel (%p239) target = $region65
        $region64: #{bioclinicalbert_ft_forward.13} parent=15 // pred_region
          %s242 = sand.u32 %s86, 1
          %s243 = sand.u32 %s86, 1
          %s244 = smul.addr %s243, 8
          %s245 = scalar_lea.vmem [#allocation3], %s244
          %s246 = smul.addr %s17, 6
          %s247 = sadd.s32 1, %s246
          %s248 = smul.addr %s247, 4
          %s249 = scalar_lea.vmem %s2, %s248
          // Predicated region
          $region66: #{bioclinicalbert_ft_forward.13} parent=64 // pred_check
            _
          $region67: #{bioclinicalbert_ft_forward.13} parent=64 // pred_check_branch
            %251 = sbr.rel (0) target = $region69
          $region68: #{bioclinicalbert_ft_forward.13} parent=64 // pred_region
            // Predicated region
            $region70: #{bioclinicalbert_ft_forward.13} parent=68 // pred_check
              _
            $region71: #{bioclinicalbert_ft_forward.13} parent=68 // pred_check_branch
              %253 = sbr.rel target = $region73
            $region72: #{bioclinicalbert_ft_forward.13} parent=68 // pred_region
              // Predicated region
              $region85: #{bioclinicalbert_ft_forward.13} parent=72 // pred_check
                _
              $region86: #{bioclinicalbert_ft_forward.13} parent=72 // pred_check_branch
                %271 = sbr.rel (0) target = $region88
              $region87: #{bioclinicalbert_ft_forward.13} parent=72 // pred_region
                loop: start=0, step=1, limit=1
                $region89: #{bioclinicalbert_ft_forward.13} parent=87 // loop_pre_header
                  _
                $region90: #{bioclinicalbert_ft_forward.13} parent=87 // loop_header
                  %s273 = sphi 0, %s277
                  %p274 = scmp.ge.s32.totalorder %s273, 1
                  %s278 = sphi %s249, %s249
                  %s279 = sphi %s245, %s245
                $region91: #{bioclinicalbert_ft_forward.13} parent=87 // loop_header_branch
                  %276 = sbr.rel (%p274) target = $region95
                $region92: #{bioclinicalbert_ft_forward.13} parent=87 // loop_body
                  _
                $region93: #{bioclinicalbert_ft_forward.13} parent=87 // loop_footer
                  %s277 = sadd.s32 1, %s273
                $region94: #{bioclinicalbert_ft_forward.13} parent=87 // loop_footer_branch
                  %272 = sbr.rel target = $region90
                $region95: #{bioclinicalbert_ft_forward.13} parent=87 // loop_exit
                  _
                %s281 = ssub.s32 16, 1
                loop: start=0, step=1, limit=1
                $region96: #{bioclinicalbert_ft_forward.13} parent=87 // loop_pre_header
                  _
                $region97: #{bioclinicalbert_ft_forward.13} parent=87 // loop_header
                  %s283 = sphi 0, %s287
                  %p284 = scmp.ge.s32.totalorder %s283, 1
                  %s288 = sphi %s249, %s249
                  %s289 = sphi %s245, %s245
                $region98: #{bioclinicalbert_ft_forward.13} parent=87 // loop_header_branch
                  %286 = sbr.rel (%p284) target = $region102
                $region99: #{bioclinicalbert_ft_forward.13} parent=87 // loop_body
                  %v290 = vld [vmem:[%s288] sm:%s281]
                  %291 = vst [vmem:[%s289] sm:%s281] %v290
                  %v292 = vld [vmem:[%s288 + $0xc] sm:%s281]
                  %293 = vst [vmem:[%s289 + $0x4] sm:%s281] %v292
                $region100: #{bioclinicalbert_ft_forward.13} parent=87 // loop_footer
                  %s287 = sadd.s32 1, %s283
                $region101: #{bioclinicalbert_ft_forward.13} parent=87 // loop_footer_branch
                  %282 = sbr.rel target = $region97
                $region102: #{bioclinicalbert_ft_forward.13} parent=87 // loop_exit
                  _
              $region88: #{bioclinicalbert_ft_forward.13} parent=72 // pred_fallthru
                _
            $region73: #{bioclinicalbert_ft_forward.13} parent=68 // pred_fallthru
              _
            // Predicated region
            $region74: #{bioclinicalbert_ft_forward.13} parent=68 // pred_check
              _
            $region75: #{bioclinicalbert_ft_forward.13} parent=68 // pred_check_branch
              %255 = sbr.rel (0) target = $region77
            $region76: #{bioclinicalbert_ft_forward.13} parent=68 // pred_region
              %s257 = ssub.s32 16, 1
              loop: start=0, step=1, limit=1
              $region78: #{bioclinicalbert_ft_forward.13} parent=76 // loop_pre_header
                _
              $region79: #{bioclinicalbert_ft_forward.13} parent=76 // loop_header
                %s259 = sphi 0, %s263
                %p260 = scmp.ge.s32.totalorder %s259, 1
                %s264 = sphi %s249, %s249
                %s265 = sphi %s245, %s245
              $region80: #{bioclinicalbert_ft_forward.13} parent=76 // loop_header_branch
                %262 = sbr.rel (%p260) target = $region84
              $region81: #{bioclinicalbert_ft_forward.13} parent=76 // loop_body
                %v266 = vld [vmem:[%s264] sm:%s257]
                %267 = vst [vmem:[%s265] sm:%s257] %v266
                %v268 = vld [vmem:[%s264 + $0xc] sm:%s257]
                %269 = vst [vmem:[%s265 + $0x4] sm:%s257] %v268
              $region82: #{bioclinicalbert_ft_forward.13} parent=76 // loop_footer
                %s263 = sadd.s32 1, %s259
              $region83: #{bioclinicalbert_ft_forward.13} parent=76 // loop_footer_branch
                %258 = sbr.rel target = $region79
              $region84: #{bioclinicalbert_ft_forward.13} parent=76 // loop_exit
                _
            $region77: #{bioclinicalbert_ft_forward.13} parent=68 // pred_fallthru
              _
          $region69: #{bioclinicalbert_ft_forward.13} parent=64 // pred_fallthru
            _
          %294 = vnop
        $region65: #{bioclinicalbert_ft_forward.13} parent=15 // pred_fallthru
          _
        // Predicated region
        $region103: #{bioclinicalbert_ft_forward.13} parent=15 // pred_check
          %p295 = pneg %p122
        $region104: #{bioclinicalbert_ft_forward.13} parent=15 // pred_check_branch
          %297 = sbr.rel (%p295) target = $region106
        $region105: #{bioclinicalbert_ft_forward.13} parent=15 // pred_region
          %s298 = sand.u32 %s112, 1
          %s299 = sand.u32 %s112, 1
          %s300 = smul.addr %s299, 8
          %s301 = scalar_lea.vmem [#allocation4], %s300
          %s302 = smul.addr %s17, 6
          %s303 = sadd.s32 2, %s302
          %s304 = smul.addr %s303, 4
          %s305 = scalar_lea.vmem %s3, %s304
          // Predicated region
          $region107: #{bioclinicalbert_ft_forward.13} parent=105 // pred_check
            _
          $region108: #{bioclinicalbert_ft_forward.13} parent=105 // pred_check_branch
            %307 = sbr.rel (0) target = $region110
          $region109: #{bioclinicalbert_ft_forward.13} parent=105 // pred_region
            // Predicated region
            $region111: #{bioclinicalbert_ft_forward.13} parent=109 // pred_check
              _
            $region112: #{bioclinicalbert_ft_forward.13} parent=109 // pred_check_branch
              %309 = sbr.rel target = $region114
            $region113: #{bioclinicalbert_ft_forward.13} parent=109 // pred_region
              // Predicated region
              $region126: #{bioclinicalbert_ft_forward.13} parent=113 // pred_check
                _
              $region127: #{bioclinicalbert_ft_forward.13} parent=113 // pred_check_branch
                %327 = sbr.rel (0) target = $region129
              $region128: #{bioclinicalbert_ft_forward.13} parent=113 // pred_region
                loop: start=0, step=1, limit=1
                $region130: #{bioclinicalbert_ft_forward.13} parent=128 // loop_pre_header
                  _
                $region131: #{bioclinicalbert_ft_forward.13} parent=128 // loop_header
                  %s329 = sphi 0, %s333
                  %p330 = scmp.ge.s32.totalorder %s329, 1
                  %s334 = sphi %s305, %s305
                  %s335 = sphi %s301, %s301
                $region132: #{bioclinicalbert_ft_forward.13} parent=128 // loop_header_branch
                  %332 = sbr.rel (%p330) target = $region136
                $region133: #{bioclinicalbert_ft_forward.13} parent=128 // loop_body
                  _
                $region134: #{bioclinicalbert_ft_forward.13} parent=128 // loop_footer
                  %s333 = sadd.s32 1, %s329
                $region135: #{bioclinicalbert_ft_forward.13} parent=128 // loop_footer_branch
                  %328 = sbr.rel target = $region131
                $region136: #{bioclinicalbert_ft_forward.13} parent=128 // loop_exit
                  _
                %s337 = ssub.s32 16, 1
                loop: start=0, step=1, limit=1
                $region137: #{bioclinicalbert_ft_forward.13} parent=128 // loop_pre_header
                  _
                $region138: #{bioclinicalbert_ft_forward.13} parent=128 // loop_header
                  %s339 = sphi 0, %s343
                  %p340 = scmp.ge.s32.totalorder %s339, 1
                  %s344 = sphi %s305, %s305
                  %s345 = sphi %s301, %s301
                $region139: #{bioclinicalbert_ft_forward.13} parent=128 // loop_header_branch
                  %342 = sbr.rel (%p340) target = $region143
                $region140: #{bioclinicalbert_ft_forward.13} parent=128 // loop_body
                  %v346 = vld [vmem:[%s344] sm:%s337]
                  %347 = vst [vmem:[%s345] sm:%s337] %v346
                  %v348 = vld [vmem:[%s344 + $0xc] sm:%s337]
                  %349 = vst [vmem:[%s345 + $0x4] sm:%s337] %v348
                $region141: #{bioclinicalbert_ft_forward.13} parent=128 // loop_footer
                  %s343 = sadd.s32 1, %s339
                $region142: #{bioclinicalbert_ft_forward.13} parent=128 // loop_footer_branch
                  %338 = sbr.rel target = $region138
                $region143: #{bioclinicalbert_ft_forward.13} parent=128 // loop_exit
                  _
              $region129: #{bioclinicalbert_ft_forward.13} parent=113 // pred_fallthru
                _
            $region114: #{bioclinicalbert_ft_forward.13} parent=109 // pred_fallthru
              _
            // Predicated region
            $region115: #{bioclinicalbert_ft_forward.13} parent=109 // pred_check
              _
            $region116: #{bioclinicalbert_ft_forward.13} parent=109 // pred_check_branch
              %311 = sbr.rel (0) target = $region118
            $region117: #{bioclinicalbert_ft_forward.13} parent=109 // pred_region
              %s313 = ssub.s32 16, 1
              loop: start=0, step=1, limit=1
              $region119: #{bioclinicalbert_ft_forward.13} parent=117 // loop_pre_header
                _
              $region120: #{bioclinicalbert_ft_forward.13} parent=117 // loop_header
                %s315 = sphi 0, %s319
                %p316 = scmp.ge.s32.totalorder %s315, 1
                %s320 = sphi %s305, %s305
                %s321 = sphi %s301, %s301
              $region121: #{bioclinicalbert_ft_forward.13} parent=117 // loop_header_branch
                %318 = sbr.rel (%p316) target = $region125
              $region122: #{bioclinicalbert_ft_forward.13} parent=117 // loop_body
                %v322 = vld [vmem:[%s320] sm:%s313]
                %323 = vst [vmem:[%s321] sm:%s313] %v322
                %v324 = vld [vmem:[%s320 + $0xc] sm:%s313]
                %325 = vst [vmem:[%s321 + $0x4] sm:%s313] %v324
              $region123: #{bioclinicalbert_ft_forward.13} parent=117 // loop_footer
                %s319 = sadd.s32 1, %s315
              $region124: #{bioclinicalbert_ft_forward.13} parent=117 // loop_footer_branch
                %314 = sbr.rel target = $region120
              $region125: #{bioclinicalbert_ft_forward.13} parent=117 // loop_exit
                _
            $region118: #{bioclinicalbert_ft_forward.13} parent=109 // pred_fallthru
              _
          $region110: #{bioclinicalbert_ft_forward.13} parent=105 // pred_fallthru
            _
          %350 = vnop
        $region106: #{bioclinicalbert_ft_forward.13} parent=15 // pred_fallthru
          _
      $region16: #{bioclinicalbert_ft_forward.13} parent=5 // pred_fallthru
        _
      %p351 = scmp.le.s32.totalorder 1, %s10
      %p352 = scmp.lt.s32.totalorder %s10, 3
      %p353 = pnand %p351, %p352
      %p354 = pneg %p353
      // Predicated region
      $region144: #{bioclinicalbert_ft_forward.13} parent=5 // pred_check
        _
      $region145: #{bioclinicalbert_ft_forward.13} parent=5 // pred_check_branch
        %356 = sbr.rel (%p353) target = $region147
      $region146: #{bioclinicalbert_ft_forward.13} parent=5 // pred_region
        %s357 = ssub.s32 %s10, 1
        %s358 = sand.u32 %s63, 1
        %s359 = sand.u32 %s63, 1
        %s360 = smul.addr %s359, 8
        %s361 = scalar_lea.vmem [#allocation2], %s360
        // Predicated region
        $region148: #{bioclinicalbert_ft_forward.13} parent=146 // pred_check
          %p362 = pneg %p76
        $region149: #{bioclinicalbert_ft_forward.13} parent=146 // pred_check_branch
          %364 = sbr.rel (%p362) target = $region151
        $region150: #{bioclinicalbert_ft_forward.13} parent=146 // pred_region
          _
        $region151: #{bioclinicalbert_ft_forward.13} parent=146 // pred_fallthru
          _
        %s365 = sand.u32 %s89, 1
        %s366 = sand.u32 %s89, 1
        %s367 = smul.addr %s366, 8
        %s368 = scalar_lea.vmem [#allocation3], %s367
        // Predicated region
        $region152: #{bioclinicalbert_ft_forward.13} parent=146 // pred_check
          %p369 = pneg %p102
        $region153: #{bioclinicalbert_ft_forward.13} parent=146 // pred_check_branch
          %371 = sbr.rel (%p369) target = $region155
        $region154: #{bioclinicalbert_ft_forward.13} parent=146 // pred_region
          _
        $region155: #{bioclinicalbert_ft_forward.13} parent=146 // pred_fallthru
          _
        %s372 = sand.u32 %s115, 1
        %s373 = sand.u32 %s115, 1
        %s374 = smul.addr %s373, 8
        %s375 = scalar_lea.vmem [#allocation4], %s374
        // Predicated region
        $region156: #{bioclinicalbert_ft_forward.13} parent=146 // pred_check
          %p376 = pneg %p128
        $region157: #{bioclinicalbert_ft_forward.13} parent=146 // pred_check_branch
          %378 = sbr.rel (%p376) target = $region159
        $region158: #{bioclinicalbert_ft_forward.13} parent=146 // pred_region
          _
        $region159: #{bioclinicalbert_ft_forward.13} parent=146 // pred_fallthru
          _
        %p379 = scmp.lt.s32.totalorder %s19, 1
        %s380 = scalar_select %p379, %s19, 1
        %s381 = scalar_lea.vmem %s0, %s380
        %p382 = pneg %p48
        %p383 = pneg %p45
        %s384 = sand.u32 %s63, 1
        %s385 = sand.u32 %s63, 1
        %s386 = smul.addr %s385, 8
        %s387 = scalar_lea.vmem [#allocation2], %s386
        %p388 = pneg %p76
        %p389 = pneg %p73
        %s390 = sand.u32 %s89, 1
        %s391 = sand.u32 %s89, 1
        %s392 = smul.addr %s391, 8
        %s393 = scalar_lea.vmem [#allocation3], %s392
        %p394 = pneg %p102
        %p395 = pneg %p99
        %s396 = sand.u32 %s115, 1
        %s397 = sand.u32 %s115, 1
        %s398 = smul.addr %s397, 8
        %s399 = scalar_lea.vmem [#allocation4], %s398
        %p400 = pneg %p128
        %p401 = pneg %p125
        %p402 = pneg %p156
        %p403 = pneg %p153
        %s404 = smul.u32 2, %s20
        %p405 = scmp.lt.s32.totalorder %s19, 1
        %s406 = scalar_select %p405, %s19, 1
        %p407 = scmp.lt.s32.totalorder %s404, 1
        %s408 = scalar_select %p407, %s404, 1
        %s409 = smul.addr %s406, 2
        %s410 = sadd.s32 %s408, %s409
        %s411 = smul.addr %s410, 4
        %s412 = scalar_lea.vmem %s4, %s411
        %p413 = scmp.lt.s32.totalorder %s19, 1
        %s414 = scalar_select %p413, %s19, 1
        %s415 = scalar_lea.vmem %s0, %s414
        %s416 = smul.u32 2, %s20
        %s417 = smul.u32 2, %s20
        %p418 = scmp.lt.s32.totalorder %s19, 1
        %s419 = scalar_select %p418, %s19, 1
        %p420 = scmp.lt.s32.totalorder %s417, 1
        %s421 = scalar_select %p420, %s417, 1
        %s422 = smul.addr %s419, 2
        %s423 = sadd.s32 %s421, %s422
        %s424 = smul.addr %s423, 4
        %s425 = scalar_lea.vmem %s4, %s424
        %s426 = smul.u32 2, %s20
        %v428 = vld [vmem:[%s415] sm:$0x1]
        %v430 = vperm.slane %v428, 0
        %v432 = vld [vmem:[%s361] sm:$0xf]
        %v433 = vld [vmem:[%s361 + $0x4] sm:$0xf]
        %v434 = vld [vmem:[%s368] sm:$0xf]
        %v435 = vld [vmem:[%s368 + $0x4] sm:$0xf]
        %v436 = vld [vmem:[%s375] sm:$0xf]
        %v437 = vld [vmem:[%s375 + $0x4] sm:$0xf]
        %v440 = vunpack.c.l.b16 %v432
        %v441 = vunpack.c.l.b16 %v433
        %v442 = vpack.c.b16 %v441, %v440
        %v445 = vunpack.c.l.b16 %v434
        %v446 = vunpack.c.l.b16 %v435
        %v447 = vpack.c.b16 %v446, %v445
        %vm448 = vcmask 523264
        %v450 = vsel %vm448, %v442, 0
        %v453 = vsel %vm448, %v447, 0
        %455 = vmatpush.bf16.xpose.msra.mxu0 0
        %456 = vmatpush.bf16.xpose.msra.mxu0 0
        %457 = vmatpush.bf16.xpose.msra.mxu0 0
        %458 = vmatpush.bf16.xpose.msra.mxu0 0
        %459 = vmatpush.bf16.xpose.msra.mxu0 0
        %460 = vmatpush.bf16.xpose.msra.mxu0 0
        %461 = vmatpush.bf16.xpose.msra.mxu0 0
        %462 = vmatpush.bf16.xpose.msra.mxu0 %v453
        %463 = vmatmul.bf16.gmra.mxu0 %v450
        %v464 = vpop.f32.mrf.mxu0
        %v465 = vadd.f32 %v430, %v464
        %v466 = vpop.f32.mrf.mxu0
        %v467 = vadd.f32 %v430, %v466
        %468 = vdwg.mxu0
        %vm469 = vcmask 130048
        %v470 = vsel %vm469, %v465, -inf
        %471 = vmax.xlane.f32.xlu0 %v470
        %v472 = vpop.xlane.xlu0 %471
        %v473 = vsel %vm469, %v467, -inf
        %474 = vmax.xlane.f32.xlu0 %v473
        %v475 = vpop.xlane.xlu0 %474
        %v476 = vsub.f32 %v465, %v472
        %v477 = vsub.f32 %v467, %v475
        %v478 = vmul.f32 %v476, 1.442695
        %v479 = vpow.pop %v478
        %v480 = vmul.f32 %v477, 1.442695
        %v481 = vpow.pop %v480
        %v482 = vsel %vm469, %v479, 0.0
        %483 = vadd.xlane.f32.xlu0 %v482
        %v484 = vpop.xlane.xlu0 %483
        %v485 = vsel %vm469, %v481, 0.0
        %486 = vadd.xlane.f32.xlu0 %v485
        %v487 = vpop.xlane.xlu0 %486
        %v488 = vrcp.pop %v484
        %v489 = vrcp.pop %v487
        %v490 = vmul.f32 %v479, %v488
        %v491 = vmul.f32 %v481, %v489
        %v492 = vpack.c.bf16 %v491, %v490
        %v495 = vunpack.c.l.b16 %v436
        %v496 = vunpack.c.l.b16 %v437
        %v497 = vpack.c.b16 %v496, %v495
        %v500 = vsel %vm469, %v492, 0
        %502 = vmatpush.bf16.msra.mxu0 0
        %503 = vmatpush.bf16.msra.mxu0 0
        %504 = vmatpush.bf16.msra.mxu0 0
        %505 = vmatpush.bf16.msra.mxu0 0
        %506 = vmatpush.bf16.msra.mxu0 0
        %507 = vmatpush.bf16.msra.mxu0 0
        %508 = vmatpush.bf16.msra.mxu0 0
        %509 = vmatpush.bf16.msra.mxu0 %v497
        %510 = vmatmul.bf16.gmra.mxu0 %v500
        %v511 = vpop.f32.mrf.mxu0
        %v512 = vadd.f32 0.0, %v511
        %v513 = vpop.f32.mrf.mxu0
        %v514 = vadd.f32 0.0, %v513
        %515 = vdwg.mxu0
        %516 = vrot.lane.b32.xlu0 %v442, 64
        %v517 = vpop.permute.xlu0 %516
        %518 = vrot.lane.b32.xlu0 %v447, 64
        %v519 = vpop.permute.xlu0 %518
        %v521 = vsel %vm448, %v517, 0
        %v524 = vsel %vm448, %v519, 0
        %526 = vmatpush.bf16.xpose.msra.mxu0 0
        %527 = vmatpush.bf16.xpose.msra.mxu0 0
        %528 = vmatpush.bf16.xpose.msra.mxu0 0
        %529 = vmatpush.bf16.xpose.msra.mxu0 0
        %530 = vmatpush.bf16.xpose.msra.mxu0 0
        %531 = vmatpush.bf16.xpose.msra.mxu0 0
        %532 = vmatpush.bf16.xpose.msra.mxu0 0
        %533 = vmatpush.bf16.xpose.msra.mxu0 %v524
        %534 = vmatmul.bf16.gmra.mxu0 %v521
        %v535 = vpop.f32.mrf.mxu0
        %v536 = vadd.f32 %v430, %v535
        %v537 = vpop.f32.mrf.mxu0
        %v538 = vadd.f32 %v430, %v537
        %539 = vdwg.mxu0
        %v540 = vsel %vm469, %v536, -inf
        %541 = vmax.xlane.f32.xlu0 %v540
        %v542 = vpop.xlane.xlu0 %541
        %v543 = vsel %vm469, %v538, -inf
        %544 = vmax.xlane.f32.xlu0 %v543
        %v545 = vpop.xlane.xlu0 %544
        %v546 = vsub.f32 %v536, %v542
        %v547 = vsub.f32 %v538, %v545
        %v548 = vmul.f32 %v546, 1.442695
        %v549 = vpow.pop %v548
        %v550 = vmul.f32 %v547, 1.442695
        %v551 = vpow.pop %v550
        %v552 = vsel %vm469, %v549, 0.0
        %553 = vadd.xlane.f32.xlu0 %v552
        %v554 = vpop.xlane.xlu0 %553
        %v555 = vsel %vm469, %v551, 0.0
        %556 = vadd.xlane.f32.xlu0 %v555
        %v557 = vpop.xlane.xlu0 %556
        %v558 = vrcp.pop %v554
        %v559 = vrcp.pop %v557
        %v560 = vmul.f32 %v549, %v558
        %v561 = vmul.f32 %v551, %v559
        %v562 = vpack.c.bf16 %v561, %v560
        %563 = vrot.lane.b32.xlu0 %v497, 64
        %v564 = vpop.permute.xlu0 %563
        %v567 = vsel %vm469, %v562, 0
        %569 = vmatpush.bf16.msra.mxu0 0
        %570 = vmatpush.bf16.msra.mxu0 0
        %571 = vmatpush.bf16.msra.mxu0 0
        %572 = vmatpush.bf16.msra.mxu0 0
        %573 = vmatpush.bf16.msra.mxu0 0
        %574 = vmatpush.bf16.msra.mxu0 0
        %575 = vmatpush.bf16.msra.mxu0 0
        %576 = vmatpush.bf16.msra.mxu0 %v564
        %577 = vmatmul.bf16.gmra.mxu0 %v567
        %v578 = vpop.f32.mrf.mxu0
        %v579 = vadd.f32 0.0, %v578
        %v580 = vpop.f32.mrf.mxu0
        %v581 = vadd.f32 0.0, %v580
        %582 = vdwg.mxu0
        %585 = vrot.lane.b32.xlu0 %v579, 64
        %v586 = vpop.permute.xlu0 %585
        %587 = vrot.lane.b32.xlu0 %v581, 64
        %v588 = vpop.permute.xlu0 %587
        %v591 = vsel %vm448, %v512, %v586
        %v592 = vsel %vm448, %v514, %v588
        %v593 = vpack.c.bf16 %v591, %v591
        %v594 = vpack.c.bf16 %v592, %v592
        %595 = vst [vmem:[%s425] sm:$0xf] %v593
        %596 = vst [vmem:[%s425 + $0x4] sm:$0xf] %v594
        %s597 = smul.u32 2, %s20
        %p598 = scmp.lt.s32.totalorder %s19, 1
        %s599 = scalar_select %p598, %s19, 1
        %p600 = scmp.lt.s32.totalorder %s597, 1
        %s601 = scalar_select %p600, %s597, 1
        %s602 = smul.addr %s599, 2
        %s603 = sadd.s32 %s601, %s602
        %s604 = smul.addr %s603, 4
        %s605 = scalar_lea.vmem %s4, %s604
        // Predicated region
        $region160: #{bioclinicalbert_ft_forward.13} parent=146 // pred_check
          %p606 = pneg %p153
        $region161: #{bioclinicalbert_ft_forward.13} parent=146 // pred_check_branch
          %608 = sbr.rel (%p606) target = $region163
        $region162: #{bioclinicalbert_ft_forward.13} parent=146 // pred_region
          %s609 = smul.u32 2, %s20
        $region163: #{bioclinicalbert_ft_forward.13} parent=146 // pred_fallthru
          _
      $region147: #{bioclinicalbert_ft_forward.13} parent=5 // pred_fallthru
        _
      %p610 = scmp.le.s32.totalorder 2, %s10
      // Predicated region
      $region164: #{bioclinicalbert_ft_forward.13} parent=5 // pred_check
        %p611 = pneg %p610
      $region165: #{bioclinicalbert_ft_forward.13} parent=5 // pred_check_branch
        %613 = sbr.rel (%p611) target = $region167
      $region166: #{bioclinicalbert_ft_forward.13} parent=5 // pred_region
        %s614 = ssub.s32 %s10, 2
        // Predicated region
        $region168: #{bioclinicalbert_ft_forward.13} parent=166 // pred_check
          %p615 = pneg %p159
        $region169: #{bioclinicalbert_ft_forward.13} parent=166 // pred_check_branch
          %617 = sbr.rel (%p615) target = $region171
        $region170: #{bioclinicalbert_ft_forward.13} parent=166 // pred_region
          %s618 = smul.u32 2, %s22
          %p619 = scmp.lt.s32.totalorder %s21, 1
          %s620 = scalar_select %p619, %s21, 1
          %p621 = scmp.lt.s32.totalorder %s618, 1
          %s622 = scalar_select %p621, %s618, 1
          %s623 = smul.addr %s620, 2
          %s624 = sadd.s32 %s622, %s623
          %s625 = smul.addr %s624, 4
          %s626 = scalar_lea.vmem %s4, %s625
        $region171: #{bioclinicalbert_ft_forward.13} parent=166 // pred_fallthru
          _
      $region167: #{bioclinicalbert_ft_forward.13} parent=5 // pred_fallthru
        _
    $region6: #{bioclinicalbert_ft_forward.13} parent=1 // loop_footer
      %s14 = sadd.s32 1, %s10
    $region7: #{bioclinicalbert_ft_forward.13} parent=1 // loop_footer_branch
      %9 = sbr.rel target = $region3
    $region8: #{bioclinicalbert_ft_forward.13} parent=1 // loop_exit
      _

// kernel: bioclinicalbert_ft_forward.11
$region0: #{bioclinicalbert_ft_forward.11}
  #allocation0 [shape = 'u32[]', space=smem, size = 0x4, offset = 0x4, fixed_abs, tag = 'smem constant byte address 0x4 - core index']
  #allocation1 [shape = 'u32[72,128]{1,0:T(1,128)}', space=vmem, size = 0x9000, scoped, tag = 'internal scratch']
  %s0 = inlined_call_operand.vmem [shape: f32[32,128], index: 0, kind: input, shape index: {}]
  %s1 = inlined_call_operand.vmem [shape: f32[1,128], index: 1, kind: input, shape index: {}]
  %s2 = inlined_call_operand.vmem [shape: f32[1,128], index: 2, kind: input, shape index: {}]
  %s3 = inlined_call_operand.vmem [shape: bf16[32,128], index: 3, kind: output, shape index: {}]
  %s4 = sld [smem:[#allocation0]]
  $region22: #{bioclinicalbert_ft_forward.11} parent=0
    _
  %s6 = ssub.s32 1, %s4
  %s7 = scalar_select 0, %s6, %s4
  // Predicated region
  $region2: #{bioclinicalbert_ft_forward.11} parent=0 // pred_check
    _
  $region3: #{bioclinicalbert_ft_forward.11} parent=0 // pred_check_branch
    %9 = sbr.rel (0) target = $region5
  $region4: #{bioclinicalbert_ft_forward.11} parent=0 // pred_region
    _
  $region5: #{bioclinicalbert_ft_forward.11} parent=0 // pred_fallthru
    _
  // Predicated region
  $region6: #{bioclinicalbert_ft_forward.11} parent=0 // pred_check
    _
  $region7: #{bioclinicalbert_ft_forward.11} parent=0 // pred_check_branch
    %11 = sbr.rel (0) target = $region9
  $region8: #{bioclinicalbert_ft_forward.11} parent=0 // pred_region
    _
  $region9: #{bioclinicalbert_ft_forward.11} parent=0 // pred_fallthru
    _
  // Predicated region
  $region10: #{bioclinicalbert_ft_forward.11} parent=0 // pred_check
    _
  $region11: #{bioclinicalbert_ft_forward.11} parent=0 // pred_check_branch
    %13 = sbr.rel (0) target = $region13
  $region12: #{bioclinicalbert_ft_forward.11} parent=0 // pred_region
    _
  $region13: #{bioclinicalbert_ft_forward.11} parent=0 // pred_fallthru
    _
  %v14 = vld [vmem:[%s0] sm:$0xff]
  %v15 = vld [vmem:[%s0 + $0x8] sm:$0xff]
  %v16 = vld [vmem:[%s0 + $0x10] sm:$0xff]
  %v17 = vld [vmem:[%s0 + $0x18] sm:$0xff]
  %18 = vadd.xlane.f32.xlu0 %v14
  %v19 = vpop.xlane.xlu0 %18
  %20 = vadd.xlane.f32.xlu0 %v15
  %v21 = vpop.xlane.xlu0 %20
  %22 = vadd.xlane.f32.xlu0 %v16
  %v23 = vpop.xlane.xlu0 %22
  %24 = vadd.xlane.f32.xlu0 %v17
  %v25 = vpop.xlane.xlu0 %24
  %v26 = vrcp.pop 128.0
  %v27 = vmul.f32 128.0, %v26
  %v28 = vsub.f32 1.0, %v27
  %v29 = vmul.f32 %v26, %v28
  %v30 = vadd.f32 %v26, %v29
  %vm31 = vweird.f32 %v26
  %v32 = vsel %vm31, %v26, %v30
  %v33 = vmul.f32 %v19, %v32
  %v34 = vmul.f32 %v21, %v32
  %v35 = vmul.f32 %v23, %v32
  %v36 = vmul.f32 %v25, %v32
  %v37 = vsub.f32 %v14, %v33
  %v38 = vsub.f32 %v15, %v34
  %v39 = vsub.f32 %v16, %v35
  %v40 = vsub.f32 %v17, %v36
  %v41 = vmul.f32 %v37, %v37
  %v42 = vmul.f32 %v38, %v38
  %v43 = vmul.f32 %v39, %v39
  %v44 = vmul.f32 %v40, %v40
  %45 = vadd.xlane.f32.xlu0 %v41
  %v46 = vpop.xlane.xlu0 %45
  %47 = vadd.xlane.f32.xlu0 %v42
  %v48 = vpop.xlane.xlu0 %47
  %49 = vadd.xlane.f32.xlu0 %v43
  %v50 = vpop.xlane.xlu0 %49
  %51 = vadd.xlane.f32.xlu0 %v44
  %v52 = vpop.xlane.xlu0 %51
  %v53 = vmul.f32 %v46, %v32
  %v54 = vmul.f32 %v48, %v32
  %v55 = vmul.f32 %v50, %v32
  %v56 = vmul.f32 %v52, %v32
  %v57 = vadd.f32 %v53, 1e-12
  %v58 = vadd.f32 %v54, 1e-12
  %v59 = vadd.f32 %v55, 1e-12
  %v60 = vadd.f32 %v56, 1e-12
  %v61 = vrsqrt.pop %v57
  %v62 = vmul.f32 %v61, %v57
  %v63 = vmul.f32 %v62, %v61
  %v64 = vmul.f32 0.5, %v63
  %v65 = vsub.f32 1.5, %v64
  %v66 = vmul.f32 %v61, %v65
  %vm67 = vweird.f32 %v57
  %vm68 = vweird.f32 %v61
  %vm69 = vmor %vm67, %vm68
  %v70 = vsel %vm69, %v61, %v66
  %v71 = vrsqrt.pop %v58
  %v72 = vmul.f32 %v71, %v58
  %v73 = vmul.f32 %v72, %v71
  %v74 = vmul.f32 0.5, %v73
  %v75 = vsub.f32 1.5, %v74
  %v76 = vmul.f32 %v71, %v75
  %vm77 = vweird.f32 %v58
  %vm78 = vweird.f32 %v71
  %vm79 = vmor %vm77, %vm78
  %v80 = vsel %vm79, %v71, %v76
  %v81 = vrsqrt.pop %v59
  %v82 = vmul.f32 %v81, %v59
  %v83 = vmul.f32 %v82, %v81
  %v84 = vmul.f32 0.5, %v83
  %v85 = vsub.f32 1.5, %v84
  %v86 = vmul.f32 %v81, %v85
  %vm87 = vweird.f32 %v59
  %vm88 = vweird.f32 %v81
  %vm89 = vmor %vm87, %vm88
  %v90 = vsel %vm89, %v81, %v86
  %v91 = vrsqrt.pop %v60
  %v92 = vmul.f32 %v91, %v60
  %v93 = vmul.f32 %v92, %v91
  %v94 = vmul.f32 0.5, %v93
  %v95 = vsub.f32 1.5, %v94
  %v96 = vmul.f32 %v91, %v95
  %vm97 = vweird.f32 %v60
  %vm98 = vweird.f32 %v91
  %vm99 = vmor %vm97, %vm98
  %v100 = vsel %vm99, %v91, %v96
  %v101 = vmul.f32 %v37, %v70
  %v102 = vmul.f32 %v38, %v80
  %v103 = vmul.f32 %v39, %v90
  %v104 = vmul.f32 %v40, %v100
  %v105 = vld [vmem:[%s1] sm:$0x1]
  %v107 = vperm.slane %v105, 0
  %v109 = vmul.f32 %v101, %v107
  %v110 = vmul.f32 %v102, %v107
  %v111 = vmul.f32 %v103, %v107
  %v112 = vmul.f32 %v104, %v107
  %v113 = vld [vmem:[%s2] sm:$0x1]
  %v115 = vperm.slane %v113, 0
  %v117 = vadd.f32 %v109, %v115
  %v118 = vadd.f32 %v110, %v115
  %v119 = vadd.f32 %v111, %v115
  %v120 = vadd.f32 %v112, %v115
  %v121 = vpack.c.bf16 %v117, %v117
  %v122 = vpack.c.bf16 %v118, %v118
  %v123 = vpack.c.bf16 %v119, %v119
  %v124 = vpack.c.bf16 %v120, %v120
  %125 = vst [vmem:[%s3] sm:$0xf] %v121
  %126 = vst [vmem:[%s3 + $0x4] sm:$0xf] %v122
  %127 = vst [vmem:[%s3 + $0x8] sm:$0xf] %v123
  %128 = vst [vmem:[%s3 + $0xc] sm:$0xf] %v124
  // Predicated region
  $region14: #{bioclinicalbert_ft_forward.11} parent=0 // pred_check
    _
  $region15: #{bioclinicalbert_ft_forward.11} parent=0 // pred_check_branch
    %130 = sbr.rel (0) target = $region17
  $region16: #{bioclinicalbert_ft_forward.11} parent=0 // pred_region
    _
  $region17: #{bioclinicalbert_ft_forward.11} parent=0 // pred_fallthru
    _
  // Predicated region
  $region18: #{bioclinicalbert_ft_forward.11} parent=0 // pred_check
    _
  $region19: #{bioclinicalbert_ft_forward.11} parent=0 // pred_check_branch
    %132 = sbr.rel (0) target = $region21
  $region20: #{bioclinicalbert_ft_forward.11} parent=0 // pred_region
    _
  $region21: #{bioclinicalbert_ft_forward.11} parent=0 // pred_fallthru
    _

// kernel: bioclinicalbert_ft_forward.12
$region0: #{bioclinicalbert_ft_forward.12}
  #allocation0 [shape = 'u32[]', space=smem, size = 0x4, offset = 0x4, fixed_abs, tag = 'smem constant byte address 0x4 - core index']
  #allocation1 [shape = 'u32[72,128]{1,0:T(1,128)}', space=vmem, size = 0x9000, scoped, tag = 'internal scratch']
  %s0 = inlined_call_operand.vmem [shape: bf16[32,128], index: 0, kind: input, shape index: {}]
  %s1 = inlined_call_operand.vmem [shape: bf16[128,384], index: 1, kind: input, shape index: {}]
  %s2 = inlined_call_operand.vmem [shape: f32[1,384], index: 2, kind: input, shape index: {}]
  %s3 = inlined_call_operand.vmem [shape: bf16[32,384], index: 3, kind: output, shape index: {}]
  %s4 = sld [smem:[#allocation0]]
  $region22: #{bioclinicalbert_ft_forward.12} parent=0
    _
  %s6 = ssub.s32 1, %s4
  %s7 = scalar_select 0, %s6, %s4
  // Predicated region
  $region2: #{bioclinicalbert_ft_forward.12} parent=0 // pred_check
    _
  $region3: #{bioclinicalbert_ft_forward.12} parent=0 // pred_check_branch
    %9 = sbr.rel (0) target = $region5
  $region4: #{bioclinicalbert_ft_forward.12} parent=0 // pred_region
    _
  $region5: #{bioclinicalbert_ft_forward.12} parent=0 // pred_fallthru
    _
  // Predicated region
  $region6: #{bioclinicalbert_ft_forward.12} parent=0 // pred_check
    _
  $region7: #{bioclinicalbert_ft_forward.12} parent=0 // pred_check_branch
    %11 = sbr.rel (0) target = $region9
  $region8: #{bioclinicalbert_ft_forward.12} parent=0 // pred_region
    _
  $region9: #{bioclinicalbert_ft_forward.12} parent=0 // pred_fallthru
    _
  // Predicated region
  $region10: #{bioclinicalbert_ft_forward.12} parent=0 // pred_check
    _
  $region11: #{bioclinicalbert_ft_forward.12} parent=0 // pred_check_branch
    %13 = sbr.rel (0) target = $region13
  $region12: #{bioclinicalbert_ft_forward.12} parent=0 // pred_region
    _
  $region13: #{bioclinicalbert_ft_forward.12} parent=0 // pred_fallthru
    _
  %v14 = vld [vmem:[%s0] sm:$0xf]
  %v15 = vld [vmem:[%s0 + $0x4] sm:$0xf]
  %v16 = vld [vmem:[%s0 + $0x8] sm:$0xf]
  %v17 = vld [vmem:[%s0 + $0xc] sm:$0xf]
  %v18 = vld [vmem:[%s1] sm:$0xff]
  %v19 = vld [vmem:[%s1 + $0x8] sm:$0xf]
  %v20 = vld [vmem:[%s1 + $0xc] sm:$0xff]
  %v21 = vld [vmem:[%s1 + $0x14] sm:$0xf]
  %v22 = vld [vmem:[%s1 + $0x18] sm:$0xff]
  %v23 = vld [vmem:[%s1 + $0x20] sm:$0xf]
  %v24 = vld [vmem:[%s1 + $0x24] sm:$0xff]
  %v25 = vld [vmem:[%s1 + $0x2c] sm:$0xf]
  %v26 = vld [vmem:[%s1 + $0x30] sm:$0xff]
  %v27 = vld [vmem:[%s1 + $0x38] sm:$0xf]
  %v28 = vld [vmem:[%s1 + $0x3c] sm:$0xff]
  %v29 = vld [vmem:[%s1 + $0x44] sm:$0xf]
  %v30 = vld [vmem:[%s1 + $0x48] sm:$0xff]
  %v31 = vld [vmem:[%s1 + $0x50] sm:$0xf]
  %v32 = vld [vmem:[%s1 + $0x54] sm:$0xff]
  %v33 = vld [vmem:[%s1 + $0x5c] sm:$0xf]
  %v34 = vld [vmem:[%s1 + $0x60] sm:$0xff]
  %v35 = vld [vmem:[%s1 + $0x68] sm:$0xf]
  %v36 = vld [vmem:[%s1 + $0x6c] sm:$0xff]
  %v37 = vld [vmem:[%s1 + $0x74] sm:$0xf]
  %v38 = vld [vmem:[%s1 + $0x78] sm:$0xff]
  %v39 = vld [vmem:[%s1 + $0x80] sm:$0xf]
  %v40 = vld [vmem:[%s1 + $0x84] sm:$0xff]
  %v41 = vld [vmem:[%s1 + $0x8c] sm:$0xf]
  %v42 = vld [vmem:[%s1 + $0x90] sm:$0xff]
  %v43 = vld [vmem:[%s1 + $0x98] sm:$0xf]
  %v44 = vld [vmem:[%s1 + $0x9c] sm:$0xff]
  %v45 = vld [vmem:[%s1 + $0xa4] sm:$0xf]
  %v46 = vld [vmem:[%s1 + $0xa8] sm:$0xff]
  %v47 = vld [vmem:[%s1 + $0xb0] sm:$0xf]
  %v48 = vld [vmem:[%s1 + $0xb4] sm:$0xff]
  %v49 = vld [vmem:[%s1 + $0xbc] sm:$0xf]
  %v50 = vld [vmem:[%s2] sm:$0x7]
  %v52 = vperm.slane %v50, 0
  %v53 = vperm.slane %v50, 1
  %v54 = vperm.slane %v50, 2
  %v62 = vunpack.c.l.b16 %v14
  %v63 = vunpack.c.l.b16 %v15
  %v64 = vunpack.c.l.b16 %v16
  %v65 = vunpack.c.l.b16 %v17
  %v66 = vpack.c.b16 %v63, %v62
  %v67 = vpack.c.b16 %v65, %v64
  %v102 = vunpack.c.l.b16 %v18
  %v103 = vunpack.c.h.b16 %v18
  %v104 = vunpack.c.l.b16 %v19
  %v105 = vunpack.c.l.b16 %v20
  %v106 = vunpack.c.h.b16 %v20
  %v107 = vunpack.c.l.b16 %v21
  %v108 = vunpack.c.l.b16 %v22
  %v109 = vunpack.c.h.b16 %v22
  %v110 = vunpack.c.l.b16 %v23
  %v111 = vunpack.c.l.b16 %v24
  %v112 = vunpack.c.h.b16 %v24
  %v113 = vunpack.c.l.b16 %v25
  %v114 = vunpack.c.l.b16 %v26
  %v115 = vunpack.c.h.b16 %v26
  %v116 = vunpack.c.l.b16 %v27
  %v117 = vunpack.c.l.b16 %v28
  %v118 = vunpack.c.h.b16 %v28
  %v119 = vunpack.c.l.b16 %v29
  %v120 = vunpack.c.l.b16 %v30
  %v121 = vunpack.c.h.b16 %v30
  %v122 = vunpack.c.l.b16 %v31
  %v123 = vunpack.c.l.b16 %v32
  %v124 = vunpack.c.h.b16 %v32
  %v125 = vunpack.c.l.b16 %v33
  %v126 = vunpack.c.l.b16 %v34
  %v127 = vunpack.c.h.b16 %v34
  %v128 = vunpack.c.l.b16 %v35
  %v129 = vunpack.c.l.b16 %v36
  %v130 = vunpack.c.h.b16 %v36
  %v131 = vunpack.c.l.b16 %v37
  %v132 = vunpack.c.l.b16 %v38
  %v133 = vunpack.c.h.b16 %v38
  %v134 = vunpack.c.l.b16 %v39
  %v135 = vunpack.c.l.b16 %v40
  %v136 = vunpack.c.h.b16 %v40
  %v137 = vunpack.c.l.b16 %v41
  %v138 = vunpack.c.l.b16 %v42
  %v139 = vunpack.c.h.b16 %v42
  %v140 = vunpack.c.l.b16 %v43
  %v141 = vunpack.c.l.b16 %v44
  %v142 = vunpack.c.h.b16 %v44
  %v143 = vunpack.c.l.b16 %v45
  %v144 = vunpack.c.l.b16 %v46
  %v145 = vunpack.c.h.b16 %v46
  %v146 = vunpack.c.l.b16 %v47
  %v147 = vunpack.c.l.b16 %v48
  %v148 = vunpack.c.h.b16 %v48
  %v149 = vunpack.c.l.b16 %v49
  %v150 = vpack.c.b16 %v105, %v102
  %v151 = vpack.c.b16 %v106, %v103
  %v152 = vpack.c.b16 %v107, %v104
  %v153 = vpack.c.b16 %v111, %v108
  %v154 = vpack.c.b16 %v112, %v109
  %v155 = vpack.c.b16 %v113, %v110
  %v156 = vpack.c.b16 %v117, %v114
  %v157 = vpack.c.b16 %v118, %v115
  %v158 = vpack.c.b16 %v119, %v116
  %v159 = vpack.c.b16 %v123, %v120
  %v160 = vpack.c.b16 %v124, %v121
  %v161 = vpack.c.b16 %v125, %v122
  %v162 = vpack.c.b16 %v129, %v126
  %v163 = vpack.c.b16 %v130, %v127
  %v164 = vpack.c.b16 %v131, %v128
  %v165 = vpack.c.b16 %v135, %v132
  %v166 = vpack.c.b16 %v136, %v133
  %v167 = vpack.c.b16 %v137, %v134
  %v168 = vpack.c.b16 %v141, %v138
  %v169 = vpack.c.b16 %v142, %v139
  %v170 = vpack.c.b16 %v143, %v140
  %v171 = vpack.c.b16 %v147, %v144
  %v172 = vpack.c.b16 %v148, %v145
  %v173 = vpack.c.b16 %v149, %v146
  %198 = vmatpush.bf16.msra.mxu0 %v171
  %199 = vmatpush.bf16.msra.mxu0 %v168
  %200 = vmatpush.bf16.msra.mxu0 %v165
  %201 = vmatpush.bf16.msra.mxu0 %v162
  %202 = vmatpush.bf16.msra.mxu0 %v159
  %203 = vmatpush.bf16.msra.mxu0 %v156
  %204 = vmatpush.bf16.msra.mxu0 %v153
  %205 = vmatpush.bf16.msra.mxu0 %v150
  %206 = vmatmul.bf16.gmra.mxu0 %v66
  %v207 = vpop.f32.mrf.mxu0
  %v208 = vadd.f32 %v52, %v207
  %v209 = vpop.f32.mrf.mxu0
  %v210 = vadd.f32 %v52, %v209
  %211 = vmatmul.bf16.gmra.mxu0 %v67
  %v212 = vpop.f32.mrf.mxu0
  %v213 = vadd.f32 %v52, %v212
  %v214 = vpop.f32.mrf.mxu0
  %v215 = vadd.f32 %v52, %v214
  %216 = vdwg.mxu0
  %217 = vmatpush.bf16.msra.mxu0 %v172
  %218 = vmatpush.bf16.msra.mxu0 %v169
  %219 = vmatpush.bf16.msra.mxu0 %v166
  %220 = vmatpush.bf16.msra.mxu0 %v163
  %221 = vmatpush.bf16.msra.mxu0 %v160
  %222 = vmatpush.bf16.msra.mxu0 %v157
  %223 = vmatpush.bf16.msra.mxu0 %v154
  %224 = vmatpush.bf16.msra.mxu0 %v151
  %225 = vmatmul.bf16.gmra.mxu0 %v66
  %v226 = vpop.f32.mrf.mxu0
  %v227 = vadd.f32 %v53, %v226
  %v228 = vpop.f32.mrf.mxu0
  %v229 = vadd.f32 %v53, %v228
  %230 = vmatmul.bf16.gmra.mxu0 %v67
  %v231 = vpop.f32.mrf.mxu0
  %v232 = vadd.f32 %v53, %v231
  %v233 = vpop.f32.mrf.mxu0
  %v234 = vadd.f32 %v53, %v233
  %235 = vdwg.mxu0
  %236 = vmatpush.bf16.msra.mxu0 %v173
  %237 = vmatpush.bf16.msra.mxu0 %v170
  %238 = vmatpush.bf16.msra.mxu0 %v167
  %239 = vmatpush.bf16.msra.mxu0 %v164
  %240 = vmatpush.bf16.msra.mxu0 %v161
  %241 = vmatpush.bf16.msra.mxu0 %v158
  %242 = vmatpush.bf16.msra.mxu0 %v155
  %243 = vmatpush.bf16.msra.mxu0 %v152
  %244 = vmatmul.bf16.gmra.mxu0 %v66
  %v245 = vpop.f32.mrf.mxu0
  %v246 = vadd.f32 %v54, %v245
  %v247 = vpop.f32.mrf.mxu0
  %v248 = vadd.f32 %v54, %v247
  %249 = vmatmul.bf16.gmra.mxu0 %v67
  %v250 = vpop.f32.mrf.mxu0
  %v251 = vadd.f32 %v54, %v250
  %v252 = vpop.f32.mrf.mxu0
  %v253 = vadd.f32 %v54, %v252
  %254 = vdwg.mxu0
  %v255 = vpack.c.bf16 %v227, %v208
  %v256 = vpack.c.bf16 %v246, %v246
  %v257 = vpack.c.bf16 %v229, %v210
  %v258 = vpack.c.bf16 %v248, %v248
  %v259 = vpack.c.bf16 %v232, %v213
  %v260 = vpack.c.bf16 %v251, %v251
  %v261 = vpack.c.bf16 %v234, %v215
  %v262 = vpack.c.bf16 %v253, %v253
  %263 = vst [vmem:[%s3] sm:$0xff] %v255
  %264 = vst [vmem:[%s3 + $0x8] sm:$0xf] %v256
  %265 = vst [vmem:[%s3 + $0xc] sm:$0xff] %v257
  %266 = vst [vmem:[%s3 + $0x14] sm:$0xf] %v258
  %267 = vst [vmem:[%s3 + $0x18] sm:$0xff] %v259
  %268 = vst [vmem:[%s3 + $0x20] sm:$0xf] %v260
  %269 = vst [vmem:[%s3 + $0x24] sm:$0xff] %v261
  %270 = vst [vmem:[%s3 + $0x2c] sm:$0xf] %v262
  // Predicated region
  $region14: #{bioclinicalbert_ft_forward.12} parent=0 // pred_check
    _
  $region15: #{bioclinicalbert_ft_forward.12} parent=0 // pred_check_branch
    %272 = sbr.rel (0) target = $region17
  $region16: #{bioclinicalbert_ft_forward.12} parent=0 // pred_region
    _
  $region17: #{bioclinicalbert_ft_forward.12} parent=0 // pred_fallthru
    _
  // Predicated region
  $region18: #{bioclinicalbert_ft_forward.12} parent=0 // pred_check
    _
  $region19: #{bioclinicalbert_ft_forward.12} parent=0 // pred_check_branch
    %274 = sbr.rel (0) target = $region21
  $region20: #{bioclinicalbert_ft_forward.12} parent=0 // pred_region
    _
  $region21: #{bioclinicalbert_ft_forward.12} parent=0 // pred_fallthru
    _

// kernel: bioclinicalbert_ft_forward.14
$region0: #{bioclinicalbert_ft_forward.14}
  #allocation0 [shape = 'u32[]', space=smem, size = 0x4, offset = 0x4, fixed_abs, tag = 'smem constant byte address 0x4 - core index']
  #allocation1 [shape = 'u32[72,128]{1,0:T(1,128)}', space=vmem, size = 0x9000, scoped, tag = 'internal scratch']
  %s0 = inlined_call_operand.vmem [shape: bf16[32,128], index: 0, kind: input, shape index: {}]
  %s1 = inlined_call_operand.vmem [shape: bf16[128,128], index: 1, kind: input, shape index: {}]
  %s2 = inlined_call_operand.vmem [shape: f32[1,128], index: 2, kind: input, shape index: {}]
  %s3 = inlined_call_operand.vmem [shape: bf16[32,128], index: 3, kind: input, shape index: {}]
  %s4 = inlined_call_operand.vmem [shape: f32[1,128], index: 4, kind: input, shape index: {}]
  %s5 = inlined_call_operand.vmem [shape: f32[1,128], index: 5, kind: input, shape index: {}]
  %s6 = inlined_call_operand.vmem [shape: bf16[32,128], index: 6, kind: output, shape index: {}]
  %s7 = sld [smem:[#allocation0]]
  $region34: #{bioclinicalbert_ft_forward.14} parent=0
    _
  %s9 = ssub.s32 1, %s7
  %s10 = scalar_select 0, %s9, %s7
  // Predicated region
  $region2: #{bioclinicalbert_ft_forward.14} parent=0 // pred_check
    _
  $region3: #{bioclinicalbert_ft_forward.14} parent=0 // pred_check_branch
    %12 = sbr.rel (0) target = $region5
  $region4: #{bioclinicalbert_ft_forward.14} parent=0 // pred_region
    _
  $region5: #{bioclinicalbert_ft_forward.14} parent=0 // pred_fallthru
    _
  // Predicated region
  $region6: #{bioclinicalbert_ft_forward.14} parent=0 // pred_check
    _
  $region7: #{bioclinicalbert_ft_forward.14} parent=0 // pred_check_branch
    %14 = sbr.rel (0) target = $region9
  $region8: #{bioclinicalbert_ft_forward.14} parent=0 // pred_region
    _
  $region9: #{bioclinicalbert_ft_forward.14} parent=0 // pred_fallthru
    _
  // Predicated region
  $region10: #{bioclinicalbert_ft_forward.14} parent=0 // pred_check
    _
  $region11: #{bioclinicalbert_ft_forward.14} parent=0 // pred_check_branch
    %16 = sbr.rel (0) target = $region13
  $region12: #{bioclinicalbert_ft_forward.14} parent=0 // pred_region
    _
  $region13: #{bioclinicalbert_ft_forward.14} parent=0 // pred_fallthru
    _
  // Predicated region
  $region14: #{bioclinicalbert_ft_forward.14} parent=0 // pred_check
    _
  $region15: #{bioclinicalbert_ft_forward.14} parent=0 // pred_check_branch
    %18 = sbr.rel (0) target = $region17
  $region16: #{bioclinicalbert_ft_forward.14} parent=0 // pred_region
    _
  $region17: #{bioclinicalbert_ft_forward.14} parent=0 // pred_fallthru
    _
  // Predicated region
  $region18: #{bioclinicalbert_ft_forward.14} parent=0 // pred_check
    _
  $region19: #{bioclinicalbert_ft_forward.14} parent=0 // pred_check_branch
    %20 = sbr.rel (0) target = $region21
  $region20: #{bioclinicalbert_ft_forward.14} parent=0 // pred_region
    _
  $region21: #{bioclinicalbert_ft_forward.14} parent=0 // pred_fallthru
    _
  // Predicated region
  $region22: #{bioclinicalbert_ft_forward.14} parent=0 // pred_check
    _
  $region23: #{bioclinicalbert_ft_forward.14} parent=0 // pred_check_branch
    %22 = sbr.rel (0) target = $region25
  $region24: #{bioclinicalbert_ft_forward.14} parent=0 // pred_region
    _
  $region25: #{bioclinicalbert_ft_forward.14} parent=0 // pred_fallthru
    _
  %v23 = vld [vmem:[%s0] sm:$0xf]
  %v24 = vld [vmem:[%s0 + $0x4] sm:$0xf]
  %v25 = vld [vmem:[%s0 + $0x8] sm:$0xf]
  %v26 = vld [vmem:[%s0 + $0xc] sm:$0xf]
  %v27 = vld [vmem:[%s1] sm:$0xf]
  %v28 = vld [vmem:[%s1 + $0x4] sm:$0xf]
  %v29 = vld [vmem:[%s1 + $0x8] sm:$0xf]
  %v30 = vld [vmem:[%s1 + $0xc] sm:$0xf]
  %v31 = vld [vmem:[%s1 + $0x10] sm:$0xf]
  %v32 = vld [vmem:[%s1 + $0x14] sm:$0xf]
  %v33 = vld [vmem:[%s1 + $0x18] sm:$0xf]
  %v34 = vld [vmem:[%s1 + $0x1c] sm:$0xf]
  %v35 = vld [vmem:[%s1 + $0x20] sm:$0xf]
  %v36 = vld [vmem:[%s1 + $0x24] sm:$0xf]
  %v37 = vld [vmem:[%s1 + $0x28] sm:$0xf]
  %v38 = vld [vmem:[%s1 + $0x2c] sm:$0xf]
  %v39 = vld [vmem:[%s1 + $0x30] sm:$0xf]
  %v40 = vld [vmem:[%s1 + $0x34] sm:$0xf]
  %v41 = vld [vmem:[%s1 + $0x38] sm:$0xf]
  %v42 = vld [vmem:[%s1 + $0x3c] sm:$0xf]
  %v43 = vld [vmem:[%s2] sm:$0x1]
  %v45 = vperm.slane %v43, 0
  %v51 = vunpack.c.l.b16 %v23
  %v52 = vunpack.c.l.b16 %v24
  %v53 = vunpack.c.l.b16 %v25
  %v54 = vunpack.c.l.b16 %v26
  %v55 = vpack.c.b16 %v52, %v51
  %v56 = vpack.c.b16 %v54, %v53
  %v75 = vunpack.c.l.b16 %v27
  %v76 = vunpack.c.l.b16 %v28
  %v77 = vunpack.c.l.b16 %v29
  %v78 = vunpack.c.l.b16 %v30
  %v79 = vunpack.c.l.b16 %v31
  %v80 = vunpack.c.l.b16 %v32
  %v81 = vunpack.c.l.b16 %v33
  %v82 = vunpack.c.l.b16 %v34
  %v83 = vunpack.c.l.b16 %v35
  %v84 = vunpack.c.l.b16 %v36
  %v85 = vunpack.c.l.b16 %v37
  %v86 = vunpack.c.l.b16 %v38
  %v87 = vunpack.c.l.b16 %v39
  %v88 = vunpack.c.l.b16 %v40
  %v89 = vunpack.c.l.b16 %v41
  %v90 = vunpack.c.l.b16 %v42
  %v91 = vpack.c.b16 %v76, %v75
  %v92 = vpack.c.b16 %v78, %v77
  %v93 = vpack.c.b16 %v80, %v79
  %v94 = vpack.c.b16 %v82, %v81
  %v95 = vpack.c.b16 %v84, %v83
  %v96 = vpack.c.b16 %v86, %v85
  %v97 = vpack.c.b16 %v88, %v87
  %v98 = vpack.c.b16 %v90, %v89
  %107 = vmatpush.bf16.msra.mxu0 %v98
  %108 = vmatpush.bf16.msra.mxu0 %v97
  %109 = vmatpush.bf16.msra.mxu0 %v96
  %110 = vmatpush.bf16.msra.mxu0 %v95
  %111 = vmatpush.bf16.msra.mxu0 %v94
  %112 = vmatpush.bf16.msra.mxu0 %v93
  %113 = vmatpush.bf16.msra.mxu0 %v92
  %114 = vmatpush.bf16.msra.mxu0 %v91
  %115 = vmatmul.bf16.gmra.mxu0 %v55
  %v116 = vpop.f32.mrf.mxu0
  %v117 = vadd.f32 %v45, %v116
  %v118 = vpop.f32.mrf.mxu0
  %v119 = vadd.f32 %v45, %v118
  %120 = vmatmul.bf16.gmra.mxu0 %v56
  %v121 = vpop.f32.mrf.mxu0
  %v122 = vadd.f32 %v45, %v121
  %v123 = vpop.f32.mrf.mxu0
  %v124 = vadd.f32 %v45, %v123
  %125 = vdwg.mxu0
  %v126 = vld [vmem:[%s3] sm:$0xf]
  %v127 = vld [vmem:[%s3 + $0x4] sm:$0xf]
  %v128 = vld [vmem:[%s3 + $0x8] sm:$0xf]
  %v129 = vld [vmem:[%s3 + $0xc] sm:$0xf]
  %v130 = vunpack.c.l.bf16 %v126
  %v131 = vunpack.c.l.bf16 %v127
  %v132 = vunpack.c.l.bf16 %v128
  %v133 = vunpack.c.l.bf16 %v129
  %v134 = vadd.f32 %v117, %v130
  %v135 = vadd.f32 %v119, %v131
  %v136 = vadd.f32 %v122, %v132
  %v137 = vadd.f32 %v124, %v133
  %138 = vadd.xlane.f32.xlu0 %v134
  %v139 = vpop.xlane.xlu0 %138
  %140 = vadd.xlane.f32.xlu0 %v135
  %v141 = vpop.xlane.xlu0 %140
  %142 = vadd.xlane.f32.xlu0 %v136
  %v143 = vpop.xlane.xlu0 %142
  %144 = vadd.xlane.f32.xlu0 %v137
  %v145 = vpop.xlane.xlu0 %144
  %v146 = vrcp.pop 128.0
  %v147 = vmul.f32 128.0, %v146
  %v148 = vsub.f32 1.0, %v147
  %v149 = vmul.f32 %v146, %v148
  %v150 = vadd.f32 %v146, %v149
  %vm151 = vweird.f32 %v146
  %v152 = vsel %vm151, %v146, %v150
  %v153 = vmul.f32 %v139, %v152
  %v154 = vmul.f32 %v141, %v152
  %v155 = vmul.f32 %v143, %v152
  %v156 = vmul.f32 %v145, %v152
  %v157 = vsub.f32 %v134, %v153
  %v158 = vsub.f32 %v135, %v154
  %v159 = vsub.f32 %v136, %v155
  %v160 = vsub.f32 %v137, %v156
  %v161 = vmul.f32 %v157, %v157
  %v162 = vmul.f32 %v158, %v158
  %v163 = vmul.f32 %v159, %v159
  %v164 = vmul.f32 %v160, %v160
  %165 = vadd.xlane.f32.xlu0 %v161
  %v166 = vpop.xlane.xlu0 %165
  %167 = vadd.xlane.f32.xlu0 %v162
  %v168 = vpop.xlane.xlu0 %167
  %169 = vadd.xlane.f32.xlu0 %v163
  %v170 = vpop.xlane.xlu0 %169
  %171 = vadd.xlane.f32.xlu0 %v164
  %v172 = vpop.xlane.xlu0 %171
  %v173 = vmul.f32 %v166, %v152
  %v174 = vmul.f32 %v168, %v152
  %v175 = vmul.f32 %v170, %v152
  %v176 = vmul.f32 %v172, %v152
  %v177 = vadd.f32 %v173, 1e-12
  %v178 = vadd.f32 %v174, 1e-12
  %v179 = vadd.f32 %v175, 1e-12
  %v180 = vadd.f32 %v176, 1e-12
  %v181 = vrsqrt.pop %v177
  %v182 = vmul.f32 %v181, %v177
  %v183 = vmul.f32 %v182, %v181
  %v184 = vmul.f32 0.5, %v183
  %v185 = vsub.f32 1.5, %v184
  %v186 = vmul.f32 %v181, %v185
  %vm187 = vweird.f32 %v177
  %vm188 = vweird.f32 %v181
  %vm189 = vmor %vm187, %vm188
  %v190 = vsel %vm189, %v181, %v186
  %v191 = vrsqrt.pop %v178
  %v192 = vmul.f32 %v191, %v178
  %v193 = vmul.f32 %v192, %v191
  %v194 = vmul.f32 0.5, %v193
  %v195 = vsub.f32 1.5, %v194
  %v196 = vmul.f32 %v191, %v195
  %vm197 = vweird.f32 %v178
  %vm198 = vweird.f32 %v191
  %vm199 = vmor %vm197, %vm198
  %v200 = vsel %vm199, %v191, %v196
  %v201 = vrsqrt.pop %v179
  %v202 = vmul.f32 %v201, %v179
  %v203 = vmul.f32 %v202, %v201
  %v204 = vmul.f32 0.5, %v203
  %v205 = vsub.f32 1.5, %v204
  %v206 = vmul.f32 %v201, %v205
  %vm207 = vweird.f32 %v179
  %vm208 = vweird.f32 %v201
  %vm209 = vmor %vm207, %vm208
  %v210 = vsel %vm209, %v201, %v206
  %v211 = vrsqrt.pop %v180
  %v212 = vmul.f32 %v211, %v180
  %v213 = vmul.f32 %v212, %v211
  %v214 = vmul.f32 0.5, %v213
  %v215 = vsub.f32 1.5, %v214
  %v216 = vmul.f32 %v211, %v215
  %vm217 = vweird.f32 %v180
  %vm218 = vweird.f32 %v211
  %vm219 = vmor %vm217, %vm218
  %v220 = vsel %vm219, %v211, %v216
  %v221 = vmul.f32 %v157, %v190
  %v222 = vmul.f32 %v158, %v200
  %v223 = vmul.f32 %v159, %v210
  %v224 = vmul.f32 %v160, %v220
  %v225 = vld [vmem:[%s4] sm:$0x1]
  %v227 = vperm.slane %v225, 0
  %v229 = vmul.f32 %v221, %v227
  %v230 = vmul.f32 %v222, %v227
  %v231 = vmul.f32 %v223, %v227
  %v232 = vmul.f32 %v224, %v227
  %v233 = vld [vmem:[%s5] sm:$0x1]
  %v235 = vperm.slane %v233, 0
  %v237 = vadd.f32 %v229, %v235
  %v238 = vadd.f32 %v230, %v235
  %v239 = vadd.f32 %v231, %v235
  %v240 = vadd.f32 %v232, %v235
  %v241 = vpack.c.bf16 %v237, %v237
  %v242 = vpack.c.bf16 %v238, %v238
  %v243 = vpack.c.bf16 %v239, %v239
  %v244 = vpack.c.bf16 %v240, %v240
  %245 = vst [vmem:[%s6] sm:$0xf] %v241
  %246 = vst [vmem:[%s6 + $0x4] sm:$0xf] %v242
  %247 = vst [vmem:[%s6 + $0x8] sm:$0xf] %v243
  %248 = vst [vmem:[%s6 + $0xc] sm:$0xf] %v244
  // Predicated region
  $region26: #{bioclinicalbert_ft_forward.14} parent=0 // pred_check
    _
  $region27: #{bioclinicalbert_ft_forward.14} parent=0 // pred_check_branch
    %250 = sbr.rel (0) target = $region29
  $region28: #{bioclinicalbert_ft_forward.14} parent=0 // pred_region
    _
  $region29: #{bioclinicalbert_ft_forward.14} parent=0 // pred_fallthru
    _
  // Predicated region
  $region30: #{bioclinicalbert_ft_forward.14} parent=0 // pred_check
    _
  $region31: #{bioclinicalbert_ft_forward.14} parent=0 // pred_check_branch
    %252 = sbr.rel (0) target = $region33
  $region32: #{bioclinicalbert_ft_forward.14} parent=0 // pred_region
    _
  $region33: #{bioclinicalbert_ft_forward.14} parent=0 // pred_fallthru
    _

// kernel: bioclinicalbert_ft_forward.15
$region0: #{bioclinicalbert_ft_forward.15}
  #allocation0 [shape = 'u32[]', space=smem, size = 0x4, offset = 0x4, fixed_abs, tag = 'smem constant byte address 0x4 - core index']
  #allocation1 [shape = 'u32[72,128]{1,0:T(1,128)}', space=vmem, size = 0x9000, scoped, tag = 'internal scratch']
  %s0 = inlined_call_operand.vmem [shape: bf16[32,128], index: 0, kind: input, shape index: {}]
  %s1 = inlined_call_operand.hbm [shape: bf16[128,2048], index: 1, kind: input, shape index: {}]
  %s2 = inlined_call_operand.vmem [shape: f32[1,2048], index: 2, kind: input, shape index: {}]
  %s3 = inlined_call_operand.vmem [shape: bf16[32,2048], index: 3, kind: output, shape index: {}]
  %s4 = sld [smem:[#allocation0]]
  $region68: #{bioclinicalbert_ft_forward.15} parent=0
    _
  %s6 = ssub.s32 1, %s4
  %s7 = scalar_select 0, %s6, %s4
  $region1: #{bioclinicalbert_ft_forward.15} parent=0
    #allocation2 [shape = 'u8[524288]{0}', space=vmem, size = 0x80000, scoped, tag = 'input window, operand 1']
    #allocation3 [shape = 's32[2]{0}', space=sflag, size = 0x8, scoped, tag = 'scoped memory for bioclinicalbert_ft_forward.15']
    #allocation4 [shape = 'u8[131072]{0}', space=vmem, size = 0x20000, scoped, tag = 'output window, operand 0']
    %8 = vsyncpa [#allocation3], 0
    %s9 = scalar_lea.sflag [#allocation3], 1
    %10 = vsyncpa %s9, 0
    loop: start=0, step=1, limit=4
    $region2: #{bioclinicalbert_ft_forward.15} parent=1 // loop_pre_header
      _
    $region3: #{bioclinicalbert_ft_forward.15} parent=1 // loop_header
      %s12 = sphi 0, %s16
      %p13 = scmp.ge.s32.totalorder %s12, 4
      %s19 = sphi 0, %s31
      %s20 = sphi 0, %s27
      %s21 = sphi 0, %s19
      %s22 = sphi 0, %s20
      %s23 = sphi 0, %s21
      %s24 = sphi 0, %s22
      %s34 = sphi 0, %s36
      %s37 = sphi 0, %s34
      %s38 = sphi 0, %s37
      %s54 = sphi 0, %s38
      %s60 = sphi 0, %s62
      %s63 = sphi 0, %s60
      %s64 = sphi 0, %s63
      %s80 = sphi 0, %s64
      %s86 = sphi 0, %s88
      %s89 = sphi 0, %s86
      %s90 = sphi 0, %s89
      %s106 = sphi 0, %s90
      %s114 = sphi 0, %s116
      %s117 = sphi 0, %s114
      %s118 = sphi 0, %s117
      %s134 = sphi 0, %s118
    $region4: #{bioclinicalbert_ft_forward.15} parent=1 // loop_header_branch
      %15 = sbr.rel (%p13) target = $region8
    $region5: #{bioclinicalbert_ft_forward.15} parent=1 // loop_body
      %s17 = ssub.s32 %s12, 1
      %s18 = ssub.s32 %s12, 2
      %s25 = sadd.s32 1, %s20
      %p26 = scmp.ge.s32.totalorder %s25, 2
      %s27 = scalar_select %p26, 0, %s25
      %s28 = sadd.s32 1, %s19
      %s29 = scalar_select %p26, %s28, %s19
      %p30 = scmp.ge.s32.totalorder %s29, 1
      %s31 = scalar_select %p30, 0, %s29
      %s32 = ssub.s32 %s19, %s31
      %p33 = scmp.eq.s32.totalorder %s32, 0
      %s35 = sadd.s32 %s34, 1
      %s36 = scalar_select %p33, %s34, %s35
      %p39 = pneg %p33
      %p40 = scmp.eq.s32.totalorder %s12, 1
      %p41 = por %p39, %p40
      %p42 = scmp.ne.s32.totalorder %s34, %s37
      %p43 = scmp.eq.s32.totalorder %s12, 0
      %p44 = por %p42, %p43
      %p45 = scmp.ne.s32.totalorder %s34, %s37
      %p46 = scmp.eq.s32.totalorder %s17, 1
      %p47 = por %p45, %p46
      %p48 = scmp.ne.s32.totalorder %s37, %s38
      %p49 = scmp.eq.s32.totalorder %s17, 0
      %p50 = por %p48, %p49
      %p51 = scmp.ne.s32.totalorder %s37, %s38
      %p52 = scmp.eq.s32.totalorder %s18, 1
      %p53 = por %p51, %p52
      %p55 = scmp.ne.s32.totalorder %s38, %s54
      %p56 = scmp.eq.s32.totalorder %s18, 0
      %p57 = por %p55, %p56
      %s58 = ssub.s32 %s20, %s27
      %p59 = scmp.eq.s32.totalorder %s58, 0
      %s61 = sadd.s32 %s60, 1
      %s62 = scalar_select %p59, %s60, %s61
      %p65 = pneg %p59
      %p66 = scmp.eq.s32.totalorder %s12, 1
      %p67 = por %p65, %p66
      %p68 = scmp.ne.s32.totalorder %s60, %s63
      %p69 = scmp.eq.s32.totalorder %s12, 0
      %p70 = por %p68, %p69
      %p71 = scmp.ne.s32.totalorder %s60, %s63
      %p72 = scmp.eq.s32.totalorder %s17, 1
      %p73 = por %p71, %p72
      %p74 = scmp.ne.s32.totalorder %s63, %s64
      %p75 = scmp.eq.s32.totalorder %s17, 0
      %p76 = por %p74, %p75
      %p77 = scmp.ne.s32.totalorder %s63, %s64
      %p78 = scmp.eq.s32.totalorder %s18, 1
      %p79 = por %p77, %p78
      %p81 = scmp.ne.s32.totalorder %s64, %s80
      %p82 = scmp.eq.s32.totalorder %s18, 0
      %p83 = por %p81, %p82
      %s84 = ssub.s32 %s20, %s27
      %p85 = scmp.eq.s32.totalorder %s84, 0
      %s87 = sadd.s32 %s86, 1
      %s88 = scalar_select %p85, %s86, %s87
      %p91 = pneg %p85
      %p92 = scmp.eq.s32.totalorder %s12, 1
      %p93 = por %p91, %p92
      %p94 = scmp.ne.s32.totalorder %s86, %s89
      %p95 = scmp.eq.s32.totalorder %s12, 0
      %p96 = por %p94, %p95
      %p97 = scmp.ne.s32.totalorder %s86, %s89
      %p98 = scmp.eq.s32.totalorder %s17, 1
      %p99 = por %p97, %p98
      %p100 = scmp.ne.s32.totalorder %s89, %s90
      %p101 = scmp.eq.s32.totalorder %s17, 0
      %p102 = por %p100, %p101
      %p103 = scmp.ne.s32.totalorder %s89, %s90
      %p104 = scmp.eq.s32.totalorder %s18, 1
      %p105 = por %p103, %p104
      %p107 = scmp.ne.s32.totalorder %s90, %s106
      %p108 = scmp.eq.s32.totalorder %s18, 0
      %p109 = por %p107, %p108
      %s110 = ssub.s32 %s19, %s31
      %s111 = ssub.s32 %s20, %s27
      %s112 = sor.u32 %s110, %s111
      %p113 = scmp.eq.s32.totalorder %s112, 0
      %s115 = sadd.s32 %s114, 1
      %s116 = scalar_select %p113, %s114, %s115
      %p119 = pneg %p113
      %p120 = scmp.eq.s32.totalorder %s12, 1
      %p121 = por %p119, %p120
      %p122 = scmp.ne.s32.totalorder %s114, %s117
      %p123 = scmp.eq.s32.totalorder %s12, 0
      %p124 = por %p122, %p123
      %p125 = scmp.ne.s32.totalorder %s114, %s117
      %p126 = scmp.eq.s32.totalorder %s17, 1
      %p127 = por %p125, %p126
      %p128 = scmp.ne.s32.totalorder %s117, %s118
      %p129 = scmp.eq.s32.totalorder %s17, 0
      %p130 = por %p128, %p129
      %p131 = scmp.ne.s32.totalorder %s117, %s118
      %p132 = scmp.eq.s32.totalorder %s18, 1
      %p133 = por %p131, %p132
      %p135 = scmp.ne.s32.totalorder %s118, %s134
      %p136 = scmp.eq.s32.totalorder %s18, 0
      %p137 = por %p135, %p136
      %p138 = scmp.le.s32.totalorder 1, %s12
      %p139 = scmp.lt.s32.totalorder %s12, 3
      %p140 = pnand %p138, %p139
      %p141 = pneg %p140
      // Predicated region
      $region9: #{bioclinicalbert_ft_forward.15} parent=5 // pred_check
        _
      $region10: #{bioclinicalbert_ft_forward.15} parent=5 // pred_check_branch
        %143 = sbr.rel (%p140) target = $region12
      $region11: #{bioclinicalbert_ft_forward.15} parent=5 // pred_region
        %s144 = ssub.s32 %s12, 1
        // Predicated region
        $region13: #{bioclinicalbert_ft_forward.15} parent=11 // pred_check
          %p145 = pneg %p50
        $region14: #{bioclinicalbert_ft_forward.15} parent=11 // pred_check_branch
          %147 = sbr.rel (%p145) target = $region16
        $region15: #{bioclinicalbert_ft_forward.15} parent=11 // pred_region
          %s148 = smul.u32 4, %s21
          %p149 = scmp.lt.s32.totalorder %s148, 3
          %s150 = scalar_select %p149, %s148, 3
          %s151 = smul.addr %s150, 4
          %s152 = scalar_lea.vmem %s0, %s151
          %s153 = smul.u32 4, %s21
        $region16: #{bioclinicalbert_ft_forward.15} parent=11 // pred_fallthru
          _
      $region12: #{bioclinicalbert_ft_forward.15} parent=5 // pred_fallthru
        _
      %p154 = scmp.lt.s32.totalorder %s12, 2
      // Predicated region
      $region17: #{bioclinicalbert_ft_forward.15} parent=5 // pred_check
        %p155 = pneg %p154
      $region18: #{bioclinicalbert_ft_forward.15} parent=5 // pred_check_branch
        %157 = sbr.rel (%p155) target = $region20
      $region19: #{bioclinicalbert_ft_forward.15} parent=5 // pred_region
        // Predicated region
        $region21: #{bioclinicalbert_ft_forward.15} parent=19 // pred_check
          %p158 = pneg %p70
        $region22: #{bioclinicalbert_ft_forward.15} parent=19 // pred_check_branch
          %160 = sbr.rel (%p158) target = $region24
        $region23: #{bioclinicalbert_ft_forward.15} parent=19 // pred_region
          %s161 = sand.u32 %s60, 1
          %s162 = scalar_lea.sflag [#allocation3], %s161
          %s163 = sand.u32 %s60, 1
          %s164 = smul.addr %s163, 512
          %s165 = scalar_lea.vmem [#allocation2], %s164
          %s166 = smul.u32 8, %s20
          %168 = vsyncadd %s162, 0
          %s169 = smul.addr %s166, 4
          %s170 = scalar_lea.hbm %s1, %s169
          %s171 = sshll.u32 %s170, 4
          %s172 = int_to_ptr.hbm [resolvable:$true] %s171
          %s173 = sshll.u32 %s165, 4
          %s174 = int_to_ptr.vmem [resolvable:$true] %s173
          %179 = dma.hbm_to_vmem [thread:$0]  %s172, 8192, %s174, %s162, 1024, 512, 32
        $region24: #{bioclinicalbert_ft_forward.15} parent=19 // pred_fallthru
          _
        // Predicated region
        $region25: #{bioclinicalbert_ft_forward.15} parent=19 // pred_check
          %p180 = pneg %p96
        $region26: #{bioclinicalbert_ft_forward.15} parent=19 // pred_check_branch
          %182 = sbr.rel (%p180) target = $region28
        $region27: #{bioclinicalbert_ft_forward.15} parent=19 // pred_region
          %s183 = smul.u32 8, %s20
          %p184 = scmp.lt.s32.totalorder %s183, 15
          %s185 = scalar_select %p184, %s183, 15
          %s186 = scalar_lea.vmem %s2, %s185
          %s187 = smul.u32 8, %s20
        $region28: #{bioclinicalbert_ft_forward.15} parent=19 // pred_fallthru
          _
      $region20: #{bioclinicalbert_ft_forward.15} parent=5 // pred_fallthru
        _
      %p188 = scmp.le.s32.totalorder 1, %s12
      %p189 = scmp.lt.s32.totalorder %s12, 3
      %p190 = pnand %p188, %p189
      %p191 = pneg %p190
      // Predicated region
      $region29: #{bioclinicalbert_ft_forward.15} parent=5 // pred_check
        _
      $region30: #{bioclinicalbert_ft_forward.15} parent=5 // pred_check_branch
        %193 = sbr.rel (%p190) target = $region32
      $region31: #{bioclinicalbert_ft_forward.15} parent=5 // pred_region
        %s194 = ssub.s32 %s12, 1
        %s195 = sand.u32 %s63, 1
        %s196 = scalar_lea.sflag [#allocation3], %s195
        %s197 = sand.u32 %s63, 1
        %s198 = smul.addr %s197, 512
        %s199 = scalar_lea.vmem [#allocation2], %s198
        // Predicated region
        $region33: #{bioclinicalbert_ft_forward.15} parent=31 // pred_check
          %p200 = pneg %p76
        $region34: #{bioclinicalbert_ft_forward.15} parent=31 // pred_check_branch
          %202 = sbr.rel (%p200) target = $region36
        $region35: #{bioclinicalbert_ft_forward.15} parent=31 // pred_region
          %204 = dma.done %s196, 8192
        $region36: #{bioclinicalbert_ft_forward.15} parent=31 // pred_fallthru
          _
        %s205 = smul.u32 4, %s21
        %p206 = scmp.lt.s32.totalorder %s205, 3
        %s207 = scalar_select %p206, %s205, 3
        %s208 = smul.addr %s207, 4
        %s209 = scalar_lea.vmem %s0, %s208
        %p210 = pneg %p50
        %p211 = pneg %p47
        %s212 = sand.u32 %s63, 1
        %s213 = scalar_lea.sflag [#allocation3], %s212
        %s214 = sand.u32 %s63, 1
        %s215 = smul.addr %s214, 512
        %s216 = scalar_lea.vmem [#allocation2], %s215
        %p217 = pneg %p76
        %p218 = pneg %p73
        %s219 = smul.u32 8, %s22
        %p220 = scmp.lt.s32.totalorder %s219, 15
        %s221 = scalar_select %p220, %s219, 15
        %s222 = scalar_lea.vmem %s2, %s221
        %p223 = pneg %p102
        %p224 = pneg %p99
        %p225 = pneg %p130
        %p226 = pneg %p127
        %s227 = sand.u32 %s117, 1
        %s228 = sand.u32 %s117, 1
        %s229 = smul.addr %s228, 128
        %s230 = scalar_lea.vmem [#allocation4], %s229
        %s231 = smul.u32 4, %s21
        %p232 = scmp.lt.s32.totalorder %s231, 3
        %s233 = scalar_select %p232, %s231, 3
        %s234 = smul.addr %s233, 4
        %s235 = scalar_lea.vmem %s0, %s234
        %s236 = smul.u32 4, %s21
        %s237 = smul.u32 8, %s22
        %s238 = smul.u32 8, %s22
        %p239 = scmp.lt.s32.totalorder %s238, 15
        %s240 = scalar_select %p239, %s238, 15
        %s241 = scalar_lea.vmem %s2, %s240
        %s242 = smul.u32 8, %s22
        %s243 = smul.u32 4, %s21
        %s244 = smul.u32 8, %s22
        %v245 = vld [vmem:[%s235] sm:$0xf]
        %v246 = vld [vmem:[%s235 + $0x4] sm:$0xf]
        %v247 = vld [vmem:[%s235 + $0x8] sm:$0xf]
        %v248 = vld [vmem:[%s235 + $0xc] sm:$0xf]
        %v249 = vld [vmem:[%s199] sm:$0xff]
        %v250 = vld [vmem:[%s199 + $0x8] sm:$0xff]
        %v251 = vld [vmem:[%s199 + $0x10] sm:$0xff]
        %v252 = vld [vmem:[%s199 + $0x18] sm:$0xff]
        %v253 = vld [vmem:[%s199 + $0x20] sm:$0xff]
        %v254 = vld [vmem:[%s199 + $0x28] sm:$0xff]
        %v255 = vld [vmem:[%s199 + $0x30] sm:$0xff]
        %v256 = vld [vmem:[%s199 + $0x38] sm:$0xff]
        %v257 = vld [vmem:[%s199 + $0x40] sm:$0xff]
        %v258 = vld [vmem:[%s199 + $0x48] sm:$0xff]
        %v259 = vld [vmem:[%s199 + $0x50] sm:$0xff]
        %v260 = vld [vmem:[%s199 + $0x58] sm:$0xff]
        %v261 = vld [vmem:[%s199 + $0x60] sm:$0xff]
        %v262 = vld [vmem:[%s199 + $0x68] sm:$0xff]
        %v263 = vld [vmem:[%s199 + $0x70] sm:$0xff]
        %v264 = vld [vmem:[%s199 + $0x78] sm:$0xff]
        %v265 = vld [vmem:[%s199 + $0x80] sm:$0xff]
        %v266 = vld [vmem:[%s199 + $0x88] sm:$0xff]
        %v267 = vld [vmem:[%s199 + $0x90] sm:$0xff]
        %v268 = vld [vmem:[%s199 + $0x98] sm:$0xff]
        %v269 = vld [vmem:[%s199 + $0xa0] sm:$0xff]
        %v270 = vld [vmem:[%s199 + $0xa8] sm:$0xff]
        %v271 = vld [vmem:[%s199 + $0xb0] sm:$0xff]
        %v272 = vld [vmem:[%s199 + $0xb8] sm:$0xff]
        %v273 = vld [vmem:[%s199 + $0xc0] sm:$0xff]
        %v274 = vld [vmem:[%s199 + $0xc8] sm:$0xff]
        %v275 = vld [vmem:[%s199 + $0xd0] sm:$0xff]
        %v276 = vld [vmem:[%s199 + $0xd8] sm:$0xff]
        %v277 = vld [vmem:[%s199 + $0xe0] sm:$0xff]
        %v278 = vld [vmem:[%s199 + $0xe8] sm:$0xff]
        %v279 = vld [vmem:[%s199 + $0xf0] sm:$0xff]
        %v280 = vld [vmem:[%s199 + $0xf8] sm:$0xff]
        %v281 = vld [vmem:[%s199 + $0x100] sm:$0xff]
        %v282 = vld [vmem:[%s199 + $0x108] sm:$0xff]
        %v283 = vld [vmem:[%s199 + $0x110] sm:$0xff]
        %v284 = vld [vmem:[%s199 + $0x118] sm:$0xff]
        %v285 = vld [vmem:[%s199 + $0x120] sm:$0xff]
        %v286 = vld [vmem:[%s199 + $0x128] sm:$0xff]
        %v287 = vld [vmem:[%s199 + $0x130] sm:$0xff]
        %v288 = vld [vmem:[%s199 + $0x138] sm:$0xff]
        %v289 = vld [vmem:[%s199 + $0x140] sm:$0xff]
        %v290 = vld [vmem:[%s199 + $0x148] sm:$0xff]
        %v291 = vld [vmem:[%s199 + $0x150] sm:$0xff]
        %v292 = vld [vmem:[%s199 + $0x158] sm:$0xff]
        %v293 = vld [vmem:[%s199 + $0x160] sm:$0xff]
        %v294 = vld [vmem:[%s199 + $0x168] sm:$0xff]
        %v295 = vld [vmem:[%s199 + $0x170] sm:$0xff]
        %v296 = vld [vmem:[%s199 + $0x178] sm:$0xff]
        %v297 = vld [vmem:[%s199 + $0x180] sm:$0xff]
        %v298 = vld [vmem:[%s199 + $0x188] sm:$0xff]
        %v299 = vld [vmem:[%s199 + $0x190] sm:$0xff]
        %v300 = vld [vmem:[%s199 + $0x198] sm:$0xff]
        %v301 = vld [vmem:[%s199 + $0x1a0] sm:$0xff]
        %v302 = vld [vmem:[%s199 + $0x1a8] sm:$0xff]
        %v303 = vld [vmem:[%s199 + $0x1b0] sm:$0xff]
        %v304 = vld [vmem:[%s199 + $0x1b8] sm:$0xff]
        %v305 = vld [vmem:[%s199 + $0x1c0] sm:$0xff]
        %v306 = vld [vmem:[%s199 + $0x1c8] sm:$0xff]
        %v307 = vld [vmem:[%s199 + $0x1d0] sm:$0xff]
        %v308 = vld [vmem:[%s199 + $0x1d8] sm:$0xff]
        %v309 = vld [vmem:[%s199 + $0x1e0] sm:$0xff]
        %v310 = vld [vmem:[%s199 + $0x1e8] sm:$0xff]
        %v311 = vld [vmem:[%s199 + $0x1f0] sm:$0xff]
        %v312 = vld [vmem:[%s199 + $0x1f8] sm:$0xff]
        %v313 = vld [vmem:[%s241] sm:$0xff]
        %v315 = vperm.slane %v313, 0
        %v316 = vperm.slane %v313, 1
        %v317 = vperm.slane %v313, 2
        %v318 = vperm.slane %v313, 3
        %v319 = vperm.slane %v313, 4
        %v320 = vperm.slane %v313, 5
        %v321 = vperm.slane %v313, 6
        %v322 = vperm.slane %v313, 7
        %v335 = vunpack.c.l.b16 %v245
        %v336 = vunpack.c.l.b16 %v246
        %v337 = vunpack.c.l.b16 %v247
        %v338 = vunpack.c.l.b16 %v248
        %v339 = vpack.c.b16 %v336, %v335
        %v340 = vpack.c.b16 %v338, %v337
        %v407 = vunpack.c.l.b16 %v249
        %v408 = vunpack.c.h.b16 %v249
        %v409 = vunpack.c.l.b16 %v250
        %v410 = vunpack.c.h.b16 %v250
        %v411 = vunpack.c.l.b16 %v251
        %v412 = vunpack.c.h.b16 %v251
        %v413 = vunpack.c.l.b16 %v252
        %v414 = vunpack.c.h.b16 %v252
        %v415 = vunpack.c.l.b16 %v253
        %v416 = vunpack.c.h.b16 %v253
        %v417 = vunpack.c.l.b16 %v254
        %v418 = vunpack.c.h.b16 %v254
        %v419 = vunpack.c.l.b16 %v255
        %v420 = vunpack.c.h.b16 %v255
        %v421 = vunpack.c.l.b16 %v256
        %v422 = vunpack.c.h.b16 %v256
        %v423 = vunpack.c.l.b16 %v257
        %v424 = vunpack.c.h.b16 %v257
        %v425 = vunpack.c.l.b16 %v258
        %v426 = vunpack.c.h.b16 %v258
        %v427 = vunpack.c.l.b16 %v259
        %v428 = vunpack.c.h.b16 %v259
        %v429 = vunpack.c.l.b16 %v260
        %v430 = vunpack.c.h.b16 %v260
        %v431 = vunpack.c.l.b16 %v261
        %v432 = vunpack.c.h.b16 %v261
        %v433 = vunpack.c.l.b16 %v262
        %v434 = vunpack.c.h.b16 %v262
        %v435 = vunpack.c.l.b16 %v263
        %v436 = vunpack.c.h.b16 %v263
        %v437 = vunpack.c.l.b16 %v264
        %v438 = vunpack.c.h.b16 %v264
        %v439 = vunpack.c.l.b16 %v265
        %v440 = vunpack.c.h.b16 %v265
        %v441 = vunpack.c.l.b16 %v266
        %v442 = vunpack.c.h.b16 %v266
        %v443 = vunpack.c.l.b16 %v267
        %v444 = vunpack.c.h.b16 %v267
        %v445 = vunpack.c.l.b16 %v268
        %v446 = vunpack.c.h.b16 %v268
        %v447 = vunpack.c.l.b16 %v269
        %v448 = vunpack.c.h.b16 %v269
        %v449 = vunpack.c.l.b16 %v270
        %v450 = vunpack.c.h.b16 %v270
        %v451 = vunpack.c.l.b16 %v271
        %v452 = vunpack.c.h.b16 %v271
        %v453 = vunpack.c.l.b16 %v272
        %v454 = vunpack.c.h.b16 %v272
        %v455 = vunpack.c.l.b16 %v273
        %v456 = vunpack.c.h.b16 %v273
        %v457 = vunpack.c.l.b16 %v274
        %v458 = vunpack.c.h.b16 %v274
        %v459 = vunpack.c.l.b16 %v275
        %v460 = vunpack.c.h.b16 %v275
        %v461 = vunpack.c.l.b16 %v276
        %v462 = vunpack.c.h.b16 %v276
        %v463 = vunpack.c.l.b16 %v277
        %v464 = vunpack.c.h.b16 %v277
        %v465 = vunpack.c.l.b16 %v278
        %v466 = vunpack.c.h.b16 %v278
        %v467 = vunpack.c.l.b16 %v279
        %v468 = vunpack.c.h.b16 %v279
        %v469 = vunpack.c.l.b16 %v280
        %v470 = vunpack.c.h.b16 %v280
        %v471 = vunpack.c.l.b16 %v281
        %v472 = vunpack.c.h.b16 %v281
        %v473 = vunpack.c.l.b16 %v282
        %v474 = vunpack.c.h.b16 %v282
        %v475 = vunpack.c.l.b16 %v283
        %v476 = vunpack.c.h.b16 %v283
        %v477 = vunpack.c.l.b16 %v284
        %v478 = vunpack.c.h.b16 %v284
        %v479 = vunpack.c.l.b16 %v285
        %v480 = vunpack.c.h.b16 %v285
        %v481 = vunpack.c.l.b16 %v286
        %v482 = vunpack.c.h.b16 %v286
        %v483 = vunpack.c.l.b16 %v287
        %v484 = vunpack.c.h.b16 %v287
        %v485 = vunpack.c.l.b16 %v288
        %v486 = vunpack.c.h.b16 %v288
        %v487 = vunpack.c.l.b16 %v289
        %v488 = vunpack.c.h.b16 %v289
        %v489 = vunpack.c.l.b16 %v290
        %v490 = vunpack.c.h.b16 %v290
        %v491 = vunpack.c.l.b16 %v291
        %v492 = vunpack.c.h.b16 %v291
        %v493 = vunpack.c.l.b16 %v292
        %v494 = vunpack.c.h.b16 %v292
        %v495 = vunpack.c.l.b16 %v293
        %v496 = vunpack.c.h.b16 %v293
        %v497 = vunpack.c.l.b16 %v294
        %v498 = vunpack.c.h.b16 %v294
        %v499 = vunpack.c.l.b16 %v295
        %v500 = vunpack.c.h.b16 %v295
        %v501 = vunpack.c.l.b16 %v296
        %v502 = vunpack.c.h.b16 %v296
        %v503 = vunpack.c.l.b16 %v297
        %v504 = vunpack.c.h.b16 %v297
        %v505 = vunpack.c.l.b16 %v298
        %v506 = vunpack.c.h.b16 %v298
        %v507 = vunpack.c.l.b16 %v299
        %v508 = vunpack.c.h.b16 %v299
        %v509 = vunpack.c.l.b16 %v300
        %v510 = vunpack.c.h.b16 %v300
        %v511 = vunpack.c.l.b16 %v301
        %v512 = vunpack.c.h.b16 %v301
        %v513 = vunpack.c.l.b16 %v302
        %v514 = vunpack.c.h.b16 %v302
        %v515 = vunpack.c.l.b16 %v303
        %v516 = vunpack.c.h.b16 %v303
        %v517 = vunpack.c.l.b16 %v304
        %v518 = vunpack.c.h.b16 %v304
        %v519 = vunpack.c.l.b16 %v305
        %v520 = vunpack.c.h.b16 %v305
        %v521 = vunpack.c.l.b16 %v306
        %v522 = vunpack.c.h.b16 %v306
        %v523 = vunpack.c.l.b16 %v307
        %v524 = vunpack.c.h.b16 %v307
        %v525 = vunpack.c.l.b16 %v308
        %v526 = vunpack.c.h.b16 %v308
        %v527 = vunpack.c.l.b16 %v309
        %v528 = vunpack.c.h.b16 %v309
        %v529 = vunpack.c.l.b16 %v310
        %v530 = vunpack.c.h.b16 %v310
        %v531 = vunpack.c.l.b16 %v311
        %v532 = vunpack.c.h.b16 %v311
        %v533 = vunpack.c.l.b16 %v312
        %v534 = vunpack.c.h.b16 %v312
        %v535 = vpack.c.b16 %v415, %v407
        %v536 = vpack.c.b16 %v416, %v408
        %v537 = vpack.c.b16 %v417, %v409
        %v538 = vpack.c.b16 %v418, %v410
        %v539 = vpack.c.b16 %v419, %v411
        %v540 = vpack.c.b16 %v420, %v412
        %v541 = vpack.c.b16 %v421, %v413
        %v542 = vpack.c.b16 %v422, %v414
        %v543 = vpack.c.b16 %v431, %v423
        %v544 = vpack.c.b16 %v432, %v424
        %v545 = vpack.c.b16 %v433, %v425
        %v546 = vpack.c.b16 %v434, %v426
        %v547 = vpack.c.b16 %v435, %v427
        %v548 = vpack.c.b16 %v436, %v428
        %v549 = vpack.c.b16 %v437, %v429
        %v550 = vpack.c.b16 %v438, %v430
        %v551 = vpack.c.b16 %v447, %v439
        %v552 = vpack.c.b16 %v448, %v440
        %v553 = vpack.c.b16 %v449, %v441
        %v554 = vpack.c.b16 %v450, %v442
        %v555 = vpack.c.b16 %v451, %v443
        %v556 = vpack.c.b16 %v452, %v444
        %v557 = vpack.c.b16 %v453, %v445
        %v558 = vpack.c.b16 %v454, %v446
        %v559 = vpack.c.b16 %v463, %v455
        %v560 = vpack.c.b16 %v464, %v456
        %v561 = vpack.c.b16 %v465, %v457
        %v562 = vpack.c.b16 %v466, %v458
        %v563 = vpack.c.b16 %v467, %v459
        %v564 = vpack.c.b16 %v468, %v460
        %v565 = vpack.c.b16 %v469, %v461
        %v566 = vpack.c.b16 %v470, %v462
        %v567 = vpack.c.b16 %v479, %v471
        %v568 = vpack.c.b16 %v480, %v472
        %v569 = vpack.c.b16 %v481, %v473
        %v570 = vpack.c.b16 %v482, %v474
        %v571 = vpack.c.b16 %v483, %v475
        %v572 = vpack.c.b16 %v484, %v476
        %v573 = vpack.c.b16 %v485, %v477
        %v574 = vpack.c.b16 %v486, %v478
        %v575 = vpack.c.b16 %v495, %v487
        %v576 = vpack.c.b16 %v496, %v488
        %v577 = vpack.c.b16 %v497, %v489
        %v578 = vpack.c.b16 %v498, %v490
        %v579 = vpack.c.b16 %v499, %v491
        %v580 = vpack.c.b16 %v500, %v492
        %v581 = vpack.c.b16 %v501, %v493
        %v582 = vpack.c.b16 %v502, %v494
        %v583 = vpack.c.b16 %v511, %v503
        %v584 = vpack.c.b16 %v512, %v504
        %v585 = vpack.c.b16 %v513, %v505
        %v586 = vpack.c.b16 %v514, %v506
        %v587 = vpack.c.b16 %v515, %v507
        %v588 = vpack.c.b16 %v516, %v508
        %v589 = vpack.c.b16 %v517, %v509
        %v590 = vpack.c.b16 %v518, %v510
        %v591 = vpack.c.b16 %v527, %v519
        %v592 = vpack.c.b16 %v528, %v520
        %v593 = vpack.c.b16 %v529, %v521
        %v594 = vpack.c.b16 %v530, %v522
        %v595 = vpack.c.b16 %v531, %v523
        %v596 = vpack.c.b16 %v532, %v524
        %v597 = vpack.c.b16 %v533, %v525
        %v598 = vpack.c.b16 %v534, %v526
        %663 = vmatpush.bf16.msra.mxu0 %v591
        %664 = vmatpush.bf16.msra.mxu0 %v583
        %665 = vmatpush.bf16.msra.mxu0 %v575
        %666 = vmatpush.bf16.msra.mxu0 %v567
        %667 = vmatpush.bf16.msra.mxu0 %v559
        %668 = vmatpush.bf16.msra.mxu0 %v551
        %669 = vmatpush.bf16.msra.mxu0 %v543
        %670 = vmatpush.bf16.msra.mxu0 %v535
        %671 = vmatmul.bf16.gmra.mxu0 %v339
        %v672 = vpop.f32.mrf.mxu0
        %v673 = vadd.f32 %v315, %v672
        %v674 = vpop.f32.mrf.mxu0
        %v675 = vadd.f32 %v315, %v674
        %676 = vmatmul.bf16.gmra.mxu0 %v340
        %v677 = vpop.f32.mrf.mxu0
        %v678 = vadd.f32 %v315, %v677
        %v679 = vpop.f32.mrf.mxu0
        %v680 = vadd.f32 %v315, %v679
        %681 = vdwg.mxu0
        %682 = vmatpush.bf16.msra.mxu0 %v592
        %683 = vmatpush.bf16.msra.mxu0 %v584
        %684 = vmatpush.bf16.msra.mxu0 %v576
        %685 = vmatpush.bf16.msra.mxu0 %v568
        %686 = vmatpush.bf16.msra.mxu0 %v560
        %687 = vmatpush.bf16.msra.mxu0 %v552
        %688 = vmatpush.bf16.msra.mxu0 %v544
        %689 = vmatpush.bf16.msra.mxu0 %v536
        %690 = vmatmul.bf16.gmra.mxu0 %v339
        %v691 = vpop.f32.mrf.mxu0
        %v692 = vadd.f32 %v316, %v691
        %v693 = vpop.f32.mrf.mxu0
        %v694 = vadd.f32 %v316, %v693
        %695 = vmatmul.bf16.gmra.mxu0 %v340
        %v696 = vpop.f32.mrf.mxu0
        %v697 = vadd.f32 %v316, %v696
        %v698 = vpop.f32.mrf.mxu0
        %v699 = vadd.f32 %v316, %v698
        %700 = vdwg.mxu0
        %701 = vmatpush.bf16.msra.mxu0 %v593
        %702 = vmatpush.bf16.msra.mxu0 %v585
        %703 = vmatpush.bf16.msra.mxu0 %v577
        %704 = vmatpush.bf16.msra.mxu0 %v569
        %705 = vmatpush.bf16.msra.mxu0 %v561
        %706 = vmatpush.bf16.msra.mxu0 %v553
        %707 = vmatpush.bf16.msra.mxu0 %v545
        %708 = vmatpush.bf16.msra.mxu0 %v537
        %709 = vmatmul.bf16.gmra.mxu0 %v339
        %v710 = vpop.f32.mrf.mxu0
        %v711 = vadd.f32 %v317, %v710
        %v712 = vpop.f32.mrf.mxu0
        %v713 = vadd.f32 %v317, %v712
        %714 = vmatmul.bf16.gmra.mxu0 %v340
        %v715 = vpop.f32.mrf.mxu0
        %v716 = vadd.f32 %v317, %v715
        %v717 = vpop.f32.mrf.mxu0
        %v718 = vadd.f32 %v317, %v717
        %719 = vdwg.mxu0
        %720 = vmatpush.bf16.msra.mxu0 %v594
        %721 = vmatpush.bf16.msra.mxu0 %v586
        %722 = vmatpush.bf16.msra.mxu0 %v578
        %723 = vmatpush.bf16.msra.mxu0 %v570
        %724 = vmatpush.bf16.msra.mxu0 %v562
        %725 = vmatpush.bf16.msra.mxu0 %v554
        %726 = vmatpush.bf16.msra.mxu0 %v546
        %727 = vmatpush.bf16.msra.mxu0 %v538
        %728 = vmatmul.bf16.gmra.mxu0 %v339
        %v729 = vpop.f32.mrf.mxu0
        %v730 = vadd.f32 %v318, %v729
        %v731 = vpop.f32.mrf.mxu0
        %v732 = vadd.f32 %v318, %v731
        %733 = vmatmul.bf16.gmra.mxu0 %v340
        %v734 = vpop.f32.mrf.mxu0
        %v735 = vadd.f32 %v318, %v734
        %v736 = vpop.f32.mrf.mxu0
        %v737 = vadd.f32 %v318, %v736
        %738 = vdwg.mxu0
        %739 = vmatpush.bf16.msra.mxu0 %v595
        %740 = vmatpush.bf16.msra.mxu0 %v587
        %741 = vmatpush.bf16.msra.mxu0 %v579
        %742 = vmatpush.bf16.msra.mxu0 %v571
        %743 = vmatpush.bf16.msra.mxu0 %v563
        %744 = vmatpush.bf16.msra.mxu0 %v555
        %745 = vmatpush.bf16.msra.mxu0 %v547
        %746 = vmatpush.bf16.msra.mxu0 %v539
        %747 = vmatmul.bf16.gmra.mxu0 %v339
        %v748 = vpop.f32.mrf.mxu0
        %v749 = vadd.f32 %v319, %v748
        %v750 = vpop.f32.mrf.mxu0
        %v751 = vadd.f32 %v319, %v750
        %752 = vmatmul.bf16.gmra.mxu0 %v340
        %v753 = vpop.f32.mrf.mxu0
        %v754 = vadd.f32 %v319, %v753
        %v755 = vpop.f32.mrf.mxu0
        %v756 = vadd.f32 %v319, %v755
        %757 = vdwg.mxu0
        %758 = vmatpush.bf16.msra.mxu0 %v596
        %759 = vmatpush.bf16.msra.mxu0 %v588
        %760 = vmatpush.bf16.msra.mxu0 %v580
        %761 = vmatpush.bf16.msra.mxu0 %v572
        %762 = vmatpush.bf16.msra.mxu0 %v564
        %763 = vmatpush.bf16.msra.mxu0 %v556
        %764 = vmatpush.bf16.msra.mxu0 %v548
        %765 = vmatpush.bf16.msra.mxu0 %v540
        %766 = vmatmul.bf16.gmra.mxu0 %v339
        %v767 = vpop.f32.mrf.mxu0
        %v768 = vadd.f32 %v320, %v767
        %v769 = vpop.f32.mrf.mxu0
        %v770 = vadd.f32 %v320, %v769
        %771 = vmatmul.bf16.gmra.mxu0 %v340
        %v772 = vpop.f32.mrf.mxu0
        %v773 = vadd.f32 %v320, %v772
        %v774 = vpop.f32.mrf.mxu0
        %v775 = vadd.f32 %v320, %v774
        %776 = vdwg.mxu0
        %777 = vmatpush.bf16.msra.mxu0 %v597
        %778 = vmatpush.bf16.msra.mxu0 %v589
        %779 = vmatpush.bf16.msra.mxu0 %v581
        %780 = vmatpush.bf16.msra.mxu0 %v573
        %781 = vmatpush.bf16.msra.mxu0 %v565
        %782 = vmatpush.bf16.msra.mxu0 %v557
        %783 = vmatpush.bf16.msra.mxu0 %v549
        %784 = vmatpush.bf16.msra.mxu0 %v541
        %785 = vmatmul.bf16.gmra.mxu0 %v339
        %v786 = vpop.f32.mrf.mxu0
        %v787 = vadd.f32 %v321, %v786
        %v788 = vpop.f32.mrf.mxu0
        %v789 = vadd.f32 %v321, %v788
        %790 = vmatmul.bf16.gmra.mxu0 %v340
        %v791 = vpop.f32.mrf.mxu0
        %v792 = vadd.f32 %v321, %v791
        %v793 = vpop.f32.mrf.mxu0
        %v794 = vadd.f32 %v321, %v793
        %795 = vdwg.mxu0
        %796 = vmatpush.bf16.msra.mxu0 %v598
        %797 = vmatpush.bf16.msra.mxu0 %v590
        %798 = vmatpush.bf16.msra.mxu0 %v582
        %799 = vmatpush.bf16.msra.mxu0 %v574
        %800 = vmatpush.bf16.msra.mxu0 %v566
        %801 = vmatpush.bf16.msra.mxu0 %v558
        %802 = vmatpush.bf16.msra.mxu0 %v550
        %803 = vmatpush.bf16.msra.mxu0 %v542
        %804 = vmatmul.bf16.gmra.mxu0 %v339
        %v805 = vpop.f32.mrf.mxu0
        %v806 = vadd.f32 %v322, %v805
        %v807 = vpop.f32.mrf.mxu0
        %v808 = vadd.f32 %v322, %v807
        %809 = vmatmul.bf16.gmra.mxu0 %v340
        %v810 = vpop.f32.mrf.mxu0
        %v811 = vadd.f32 %v322, %v810
        %v812 = vpop.f32.mrf.mxu0
        %v813 = vadd.f32 %v322, %v812
        %814 = vdwg.mxu0
        %v815 = vmul.f32 %v673, 0.5
        %v816 = vmul.f32 %v692, 0.5
        %v817 = vmul.f32 %v711, 0.5
        %v818 = vmul.f32 %v730, 0.5
        %v819 = vmul.f32 %v749, 0.5
        %v820 = vmul.f32 %v768, 0.5
        %v821 = vmul.f32 %v787, 0.5
        %v822 = vmul.f32 %v806, 0.5
        %v823 = vmul.f32 %v675, 0.5
        %v824 = vmul.f32 %v694, 0.5
        %v825 = vmul.f32 %v713, 0.5
        %v826 = vmul.f32 %v732, 0.5
        %v827 = vmul.f32 %v751, 0.5
        %v828 = vmul.f32 %v770, 0.5
        %v829 = vmul.f32 %v789, 0.5
        %v830 = vmul.f32 %v808, 0.5
        %v831 = vmul.f32 %v678, 0.5
        %v832 = vmul.f32 %v697, 0.5
        %v833 = vmul.f32 %v716, 0.5
        %v834 = vmul.f32 %v735, 0.5
        %v835 = vmul.f32 %v754, 0.5
        %v836 = vmul.f32 %v773, 0.5
        %v837 = vmul.f32 %v792, 0.5
        %v838 = vmul.f32 %v811, 0.5
        %v839 = vmul.f32 %v680, 0.5
        %v840 = vmul.f32 %v699, 0.5
        %v841 = vmul.f32 %v718, 0.5
        %v842 = vmul.f32 %v737, 0.5
        %v843 = vmul.f32 %v756, 0.5
        %v844 = vmul.f32 %v775, 0.5
        %v845 = vmul.f32 %v794, 0.5
        %v846 = vmul.f32 %v813, 0.5
        %v847 = vmul.f32 %v673, 0.70710677
        %v848 = vmul.f32 %v692, 0.70710677
        %v849 = vmul.f32 %v711, 0.70710677
        %v850 = vmul.f32 %v730, 0.70710677
        %v851 = vmul.f32 %v749, 0.70710677
        %v852 = vmul.f32 %v768, 0.70710677
        %v853 = vmul.f32 %v787, 0.70710677
        %v854 = vmul.f32 %v806, 0.70710677
        %v855 = vmul.f32 %v675, 0.70710677
        %v856 = vmul.f32 %v694, 0.70710677
        %v857 = vmul.f32 %v713, 0.70710677
        %v858 = vmul.f32 %v732, 0.70710677
        %v859 = vmul.f32 %v751, 0.70710677
        %v860 = vmul.f32 %v770, 0.70710677
        %v861 = vmul.f32 %v789, 0.70710677
        %v862 = vmul.f32 %v808, 0.70710677
        %v863 = vmul.f32 %v678, 0.70710677
        %v864 = vmul.f32 %v697, 0.70710677
        %v865 = vmul.f32 %v716, 0.70710677
        %v866 = vmul.f32 %v735, 0.70710677
        %v867 = vmul.f32 %v754, 0.70710677
        %v868 = vmul.f32 %v773, 0.70710677
        %v869 = vmul.f32 %v792, 0.70710677
        %v870 = vmul.f32 %v811, 0.70710677
        %v871 = vmul.f32 %v680, 0.70710677
        %v872 = vmul.f32 %v699, 0.70710677
        %v873 = vmul.f32 %v718, 0.70710677
        %v874 = vmul.f32 %v737, 0.70710677
        %v875 = vmul.f32 %v756, 0.70710677
        %v876 = vmul.f32 %v775, 0.70710677
        %v877 = vmul.f32 %v794, 0.70710677
        %v878 = vmul.f32 %v813, 0.70710677
        %v879 = vmul.f32 %v847, %v847
        %v880 = vmin.f32 16.0, %v879
        %v881 = vmul.f32 %v880, 2.1237322e-06
        %v882 = vadd.f32 %v881, 0.00028619796
        %v883 = vmul.f32 %v880, %v882
        %v884 = vadd.f32 %v883, 0.0036580483
        %v885 = vmul.f32 %v880, %v884
        %v886 = vadd.f32 %v885, 0.05243302
        %v887 = vmul.f32 %v880, %v886
        %v888 = vadd.f32 %v887, 0.18741608
        %v889 = vmul.f32 %v880, %v888
        %v890 = vadd.f32 %v889, 1.1283791
        %v891 = vmul.f32 %v847, %v890
        %v892 = vmul.f32 %v880, 3.8918573e-05
        %v893 = vadd.f32 %v892, 0.001143296
        %v894 = vmul.f32 %v880, %v893
        %v895 = vadd.f32 %v894, 0.014752088
        %v896 = vmul.f32 %v880, %v895
        %v897 = vadd.f32 %v896, 0.112945676
        %v898 = vmul.f32 %v880, %v897
        %v899 = vadd.f32 %v898, 0.4994258
        %v900 = vmul.f32 %v880, %v899
        %v901 = vadd.f32 %v900, 1.0
        %v902 = vrcp.pop %v901
        %v903 = vmul.f32 %v901, %v902
        %v904 = vsub.f32 1.0, %v903
        %v905 = vmul.f32 %v902, %v904
        %v906 = vadd.f32 %v902, %v905
        %vm907 = vweird.f32 %v901
        %vm908 = vweird.f32 %v902
        %vm909 = vmor %vm907, %vm908
        %v910 = vsel %vm909, %v902, %v906
        %v911 = vand.u32 2147483647, %v901
        %vm912 = vcmp.eq.f32.partialorder %v911, 8.507059e+37
        %v913 = vand.u32 %v901, 2147483648
        %v914 = vor.u32 1.1754944e-38, %v913
        %v915 = vsel %vm912, %v914, %v910
        %v916 = vmul.f32 %v891, %v915
        %v917 = vmin.f32 %v916, 1.0
        %v918 = vmax.f32 %v917, -1.0
        %v919 = vmul.f32 %v848, %v848
        %v920 = vmin.f32 16.0, %v919
        %v921 = vmul.f32 %v920, 2.1237322e-06
        %v922 = vadd.f32 %v921, 0.00028619796
        %v923 = vmul.f32 %v920, %v922
        %v924 = vadd.f32 %v923, 0.0036580483
        %v925 = vmul.f32 %v920, %v924
        %v926 = vadd.f32 %v925, 0.05243302
        %v927 = vmul.f32 %v920, %v926
        %v928 = vadd.f32 %v927, 0.18741608
        %v929 = vmul.f32 %v920, %v928
        %v930 = vadd.f32 %v929, 1.1283791
        %v931 = vmul.f32 %v848, %v930
        %v932 = vmul.f32 %v920, 3.8918573e-05
        %v933 = vadd.f32 %v932, 0.001143296
        %v934 = vmul.f32 %v920, %v933
        %v935 = vadd.f32 %v934, 0.014752088
        %v936 = vmul.f32 %v920, %v935
        %v937 = vadd.f32 %v936, 0.112945676
        %v938 = vmul.f32 %v920, %v937
        %v939 = vadd.f32 %v938, 0.4994258
        %v940 = vmul.f32 %v920, %v939
        %v941 = vadd.f32 %v940, 1.0
        %v942 = vrcp.pop %v941
        %v943 = vmul.f32 %v941, %v942
        %v944 = vsub.f32 1.0, %v943
        %v945 = vmul.f32 %v942, %v944
        %v946 = vadd.f32 %v942, %v945
        %vm947 = vweird.f32 %v941
        %vm948 = vweird.f32 %v942
        %vm949 = vmor %vm947, %vm948
        %v950 = vsel %vm949, %v942, %v946
        %v951 = vand.u32 2147483647, %v941
        %vm952 = vcmp.eq.f32.partialorder %v951, 8.507059e+37
        %v953 = vand.u32 %v941, 2147483648
        %v954 = vor.u32 1.1754944e-38, %v953
        %v955 = vsel %vm952, %v954, %v950
        %v956 = vmul.f32 %v931, %v955
        %v957 = vmin.f32 %v956, 1.0
        %v958 = vmax.f32 %v957, -1.0
        %v959 = vmul.f32 %v849, %v849
        %v960 = vmin.f32 16.0, %v959
        %v961 = vmul.f32 %v960, 2.1237322e-06
        %v962 = vadd.f32 %v961, 0.00028619796
        %v963 = vmul.f32 %v960, %v962
        %v964 = vadd.f32 %v963, 0.0036580483
        %v965 = vmul.f32 %v960, %v964
        %v966 = vadd.f32 %v965, 0.05243302
        %v967 = vmul.f32 %v960, %v966
        %v968 = vadd.f32 %v967, 0.18741608
        %v969 = vmul.f32 %v960, %v968
        %v970 = vadd.f32 %v969, 1.1283791
        %v971 = vmul.f32 %v849, %v970
        %v972 = vmul.f32 %v960, 3.8918573e-05
        %v973 = vadd.f32 %v972, 0.001143296
        %v974 = vmul.f32 %v960, %v973
        %v975 = vadd.f32 %v974, 0.014752088
        %v976 = vmul.f32 %v960, %v975
        %v977 = vadd.f32 %v976, 0.112945676
        %v978 = vmul.f32 %v960, %v977
        %v979 = vadd.f32 %v978, 0.4994258
        %v980 = vmul.f32 %v960, %v979
        %v981 = vadd.f32 %v980, 1.0
        %v982 = vrcp.pop %v981
        %v983 = vmul.f32 %v981, %v982
        %v984 = vsub.f32 1.0, %v983
        %v985 = vmul.f32 %v982, %v984
        %v986 = vadd.f32 %v982, %v985
        %vm987 = vweird.f32 %v981
        %vm988 = vweird.f32 %v982
        %vm989 = vmor %vm987, %vm988
        %v990 = vsel %vm989, %v982, %v986
        %v991 = vand.u32 2147483647, %v981
        %vm992 = vcmp.eq.f32.partialorder %v991, 8.507059e+37
        %v993 = vand.u32 %v981, 2147483648
        %v994 = vor.u32 1.1754944e-38, %v993
        %v995 = vsel %vm992, %v994, %v990
        %v996 = vmul.f32 %v971, %v995
        %v997 = vmin.f32 %v996, 1.0
        %v998 = vmax.f32 %v997, -1.0
        %v999 = vmul.f32 %v850, %v850
        %v1000 = vmin.f32 16.0, %v999
        %v1001 = vmul.f32 %v1000, 2.1237322e-06
        %v1002 = vadd.f32 %v1001, 0.00028619796
        %v1003 = vmul.f32 %v1000, %v1002
        %v1004 = vadd.f32 %v1003, 0.0036580483
        %v1005 = vmul.f32 %v1000, %v1004
        %v1006 = vadd.f32 %v1005, 0.05243302
        %v1007 = vmul.f32 %v1000, %v1006
        %v1008 = vadd.f32 %v1007, 0.18741608
        %v1009 = vmul.f32 %v1000, %v1008
        %v1010 = vadd.f32 %v1009, 1.1283791
        %v1011 = vmul.f32 %v850, %v1010
        %v1012 = vmul.f32 %v1000, 3.8918573e-05
        %v1013 = vadd.f32 %v1012, 0.001143296
        %v1014 = vmul.f32 %v1000, %v1013
        %v1015 = vadd.f32 %v1014, 0.014752088
        %v1016 = vmul.f32 %v1000, %v1015
        %v1017 = vadd.f32 %v1016, 0.112945676
        %v1018 = vmul.f32 %v1000, %v1017
        %v1019 = vadd.f32 %v1018, 0.4994258
        %v1020 = vmul.f32 %v1000, %v1019
        %v1021 = vadd.f32 %v1020, 1.0
        %v1022 = vrcp.pop %v1021
        %v1023 = vmul.f32 %v1021, %v1022
        %v1024 = vsub.f32 1.0, %v1023
        %v1025 = vmul.f32 %v1022, %v1024
        %v1026 = vadd.f32 %v1022, %v1025
        %vm1027 = vweird.f32 %v1021
        %vm1028 = vweird.f32 %v1022
        %vm1029 = vmor %vm1027, %vm1028
        %v1030 = vsel %vm1029, %v1022, %v1026
        %v1031 = vand.u32 2147483647, %v1021
        %vm1032 = vcmp.eq.f32.partialorder %v1031, 8.507059e+37
        %v1033 = vand.u32 %v1021, 2147483648
        %v1034 = vor.u32 1.1754944e-38, %v1033
        %v1035 = vsel %vm1032, %v1034, %v1030
        %v1036 = vmul.f32 %v1011, %v1035
        %v1037 = vmin.f32 %v1036, 1.0
        %v1038 = vmax.f32 %v1037, -1.0
        %v1039 = vmul.f32 %v851, %v851
        %v1040 = vmin.f32 16.0, %v1039
        %v1041 = vmul.f32 %v1040, 2.1237322e-06
        %v1042 = vadd.f32 %v1041, 0.00028619796
        %v1043 = vmul.f32 %v1040, %v1042
        %v1044 = vadd.f32 %v1043, 0.0036580483
        %v1045 = vmul.f32 %v1040, %v1044
        %v1046 = vadd.f32 %v1045, 0.05243302
        %v1047 = vmul.f32 %v1040, %v1046
        %v1048 = vadd.f32 %v1047, 0.18741608
        %v1049 = vmul.f32 %v1040, %v1048
        %v1050 = vadd.f32 %v1049, 1.1283791
        %v1051 = vmul.f32 %v851, %v1050
        %v1052 = vmul.f32 %v1040, 3.8918573e-05
        %v1053 = vadd.f32 %v1052, 0.001143296
        %v1054 = vmul.f32 %v1040, %v1053
        %v1055 = vadd.f32 %v1054, 0.014752088
        %v1056 = vmul.f32 %v1040, %v1055
        %v1057 = vadd.f32 %v1056, 0.112945676
        %v1058 = vmul.f32 %v1040, %v1057
        %v1059 = vadd.f32 %v1058, 0.4994258
        %v1060 = vmul.f32 %v1040, %v1059
        %v1061 = vadd.f32 %v1060, 1.0
        %v1062 = vrcp.pop %v1061
        %v1063 = vmul.f32 %v1061, %v1062
        %v1064 = vsub.f32 1.0, %v1063
        %v1065 = vmul.f32 %v1062, %v1064
        %v1066 = vadd.f32 %v1062, %v1065
        %vm1067 = vweird.f32 %v1061
        %vm1068 = vweird.f32 %v1062
        %vm1069 = vmor %vm1067, %vm1068
        %v1070 = vsel %vm1069, %v1062, %v1066
        %v1071 = vand.u32 2147483647, %v1061
        %vm1072 = vcmp.eq.f32.partialorder %v1071, 8.507059e+37
        %v1073 = vand.u32 %v1061, 2147483648
        %v1074 = vor.u32 1.1754944e-38, %v1073
        %v1075 = vsel %vm1072, %v1074, %v1070
        %v1076 = vmul.f32 %v1051, %v1075
        %v1077 = vmin.f32 %v1076, 1.0
        %v1078 = vmax.f32 %v1077, -1.0
        %v1079 = vmul.f32 %v852, %v852
        %v1080 = vmin.f32 16.0, %v1079
        %v1081 = vmul.f32 %v1080, 2.1237322e-06
        %v1082 = vadd.f32 %v1081, 0.00028619796
        %v1083 = vmul.f32 %v1080, %v1082
        %v1084 = vadd.f32 %v1083, 0.0036580483
        %v1085 = vmul.f32 %v1080, %v1084
        %v1086 = vadd.f32 %v1085, 0.05243302
        %v1087 = vmul.f32 %v1080, %v1086
        %v1088 = vadd.f32 %v1087, 0.18741608
        %v1089 = vmul.f32 %v1080, %v1088
        %v1090 = vadd.f32 %v1089, 1.1283791
        %v1091 = vmul.f32 %v852, %v1090
        %v1092 = vmul.f32 %v1080, 3.8918573e-05
        %v1093 = vadd.f32 %v1092, 0.001143296
        %v1094 = vmul.f32 %v1080, %v1093
        %v1095 = vadd.f32 %v1094, 0.014752088
        %v1096 = vmul.f32 %v1080, %v1095
        %v1097 = vadd.f32 %v1096, 0.112945676
        %v1098 = vmul.f32 %v1080, %v1097
        %v1099 = vadd.f32 %v1098, 0.4994258
        %v1100 = vmul.f32 %v1080, %v1099
        %v1101 = vadd.f32 %v1100, 1.0
        %v1102 = vrcp.pop %v1101
        %v1103 = vmul.f32 %v1101, %v1102
        %v1104 = vsub.f32 1.0, %v1103
        %v1105 = vmul.f32 %v1102, %v1104
        %v1106 = vadd.f32 %v1102, %v1105
        %vm1107 = vweird.f32 %v1101
        %vm1108 = vweird.f32 %v1102
        %vm1109 = vmor %vm1107, %vm1108
        %v1110 = vsel %vm1109, %v1102, %v1106
        %v1111 = vand.u32 2147483647, %v1101
        %vm1112 = vcmp.eq.f32.partialorder %v1111, 8.507059e+37
        %v1113 = vand.u32 %v1101, 2147483648
        %v1114 = vor.u32 1.1754944e-38, %v1113
        %v1115 = vsel %vm1112, %v1114, %v1110
        %v1116 = vmul.f32 %v1091, %v1115
        %v1117 = vmin.f32 %v1116, 1.0
        %v1118 = vmax.f32 %v1117, -1.0
        %v1119 = vmul.f32 %v853, %v853
        %v1120 = vmin.f32 16.0, %v1119
        %v1121 = vmul.f32 %v1120, 2.1237322e-06
        %v1122 = vadd.f32 %v1121, 0.00028619796
        %v1123 = vmul.f32 %v1120, %v1122
        %v1124 = vadd.f32 %v1123, 0.0036580483
        %v1125 = vmul.f32 %v1120, %v1124
        %v1126 = vadd.f32 %v1125, 0.05243302
        %v1127 = vmul.f32 %v1120, %v1126
        %v1128 = vadd.f32 %v1127, 0.18741608
        %v1129 = vmul.f32 %v1120, %v1128
        %v1130 = vadd.f32 %v1129, 1.1283791
        %v1131 = vmul.f32 %v853, %v1130
        %v1132 = vmul.f32 %v1120, 3.8918573e-05
        %v1133 = vadd.f32 %v1132, 0.001143296
        %v1134 = vmul.f32 %v1120, %v1133
        %v1135 = vadd.f32 %v1134, 0.014752088
        %v1136 = vmul.f32 %v1120, %v1135
        %v1137 = vadd.f32 %v1136, 0.112945676
        %v1138 = vmul.f32 %v1120, %v1137
        %v1139 = vadd.f32 %v1138, 0.4994258
        %v1140 = vmul.f32 %v1120, %v1139
        %v1141 = vadd.f32 %v1140, 1.0
        %v1142 = vrcp.pop %v1141
        %v1143 = vmul.f32 %v1141, %v1142
        %v1144 = vsub.f32 1.0, %v1143
        %v1145 = vmul.f32 %v1142, %v1144
        %v1146 = vadd.f32 %v1142, %v1145
        %vm1147 = vweird.f32 %v1141
        %vm1148 = vweird.f32 %v1142
        %vm1149 = vmor %vm1147, %vm1148
        %v1150 = vsel %vm1149, %v1142, %v1146
        %v1151 = vand.u32 2147483647, %v1141
        %vm1152 = vcmp.eq.f32.partialorder %v1151, 8.507059e+37
        %v1153 = vand.u32 %v1141, 2147483648
        %v1154 = vor.u32 1.1754944e-38, %v1153
        %v1155 = vsel %vm1152, %v1154, %v1150
        %v1156 = vmul.f32 %v1131, %v1155
        %v1157 = vmin.f32 %v1156, 1.0
        %v1158 = vmax.f32 %v1157, -1.0
        %v1159 = vmul.f32 %v854, %v854
        %v1160 = vmin.f32 16.0, %v1159
        %v1161 = vmul.f32 %v1160, 2.1237322e-06
        %v1162 = vadd.f32 %v1161, 0.00028619796
        %v1163 = vmul.f32 %v1160, %v1162
        %v1164 = vadd.f32 %v1163, 0.0036580483
        %v1165 = vmul.f32 %v1160, %v1164
        %v1166 = vadd.f32 %v1165, 0.05243302
        %v1167 = vmul.f32 %v1160, %v1166
        %v1168 = vadd.f32 %v1167, 0.18741608
        %v1169 = vmul.f32 %v1160, %v1168
        %v1170 = vadd.f32 %v1169, 1.1283791
        %v1171 = vmul.f32 %v854, %v1170
        %v1172 = vmul.f32 %v1160, 3.8918573e-05
        %v1173 = vadd.f32 %v1172, 0.001143296
        %v1174 = vmul.f32 %v1160, %v1173
        %v1175 = vadd.f32 %v1174, 0.014752088
        %v1176 = vmul.f32 %v1160, %v1175
        %v1177 = vadd.f32 %v1176, 0.112945676
        %v1178 = vmul.f32 %v1160, %v1177
        %v1179 = vadd.f32 %v1178, 0.4994258
        %v1180 = vmul.f32 %v1160, %v1179
        %v1181 = vadd.f32 %v1180, 1.0
        %v1182 = vrcp.pop %v1181
        %v1183 = vmul.f32 %v1181, %v1182
        %v1184 = vsub.f32 1.0, %v1183
        %v1185 = vmul.f32 %v1182, %v1184
        %v1186 = vadd.f32 %v1182, %v1185
        %vm1187 = vweird.f32 %v1181
        %vm1188 = vweird.f32 %v1182
        %vm1189 = vmor %vm1187, %vm1188
        %v1190 = vsel %vm1189, %v1182, %v1186
        %v1191 = vand.u32 2147483647, %v1181
        %vm1192 = vcmp.eq.f32.partialorder %v1191, 8.507059e+37
        %v1193 = vand.u32 %v1181, 2147483648
        %v1194 = vor.u32 1.1754944e-38, %v1193
        %v1195 = vsel %vm1192, %v1194, %v1190
        %v1196 = vmul.f32 %v1171, %v1195
        %v1197 = vmin.f32 %v1196, 1.0
        %v1198 = vmax.f32 %v1197, -1.0
        %v1199 = vmul.f32 %v855, %v855
        %v1200 = vmin.f32 16.0, %v1199
        %v1201 = vmul.f32 %v1200, 2.1237322e-06
        %v1202 = vadd.f32 %v1201, 0.00028619796
        %v1203 = vmul.f32 %v1200, %v1202
        %v1204 = vadd.f32 %v1203, 0.0036580483
        %v1205 = vmul.f32 %v1200, %v1204
        %v1206 = vadd.f32 %v1205, 0.05243302
        %v1207 = vmul.f32 %v1200, %v1206
        %v1208 = vadd.f32 %v1207, 0.18741608
        %v1209 = vmul.f32 %v1200, %v1208
        %v1210 = vadd.f32 %v1209, 1.1283791
        %v1211 = vmul.f32 %v855, %v1210
        %v1212 = vmul.f32 %v1200, 3.8918573e-05
        %v1213 = vadd.f32 %v1212, 0.001143296
        %v1214 = vmul.f32 %v1200, %v1213
        %v1215 = vadd.f32 %v1214, 0.014752088
        %v1216 = vmul.f32 %v1200, %v1215
        %v1217 = vadd.f32 %v1216, 0.112945676
        %v1218 = vmul.f32 %v1200, %v1217
        %v1219 = vadd.f32 %v1218, 0.4994258
        %v1220 = vmul.f32 %v1200, %v1219
        %v1221 = vadd.f32 %v1220, 1.0
        %v1222 = vrcp.pop %v1221
        %v1223 = vmul.f32 %v1221, %v1222
        %v1224 = vsub.f32 1.0, %v1223
        %v1225 = vmul.f32 %v1222, %v1224
        %v1226 = vadd.f32 %v1222, %v1225
        %vm1227 = vweird.f32 %v1221
        %vm1228 = vweird.f32 %v1222
        %vm1229 = vmor %vm1227, %vm1228
        %v1230 = vsel %vm1229, %v1222, %v1226
        %v1231 = vand.u32 2147483647, %v1221
        %vm1232 = vcmp.eq.f32.partialorder %v1231, 8.507059e+37
        %v1233 = vand.u32 %v1221, 2147483648
        %v1234 = vor.u32 1.1754944e-38, %v1233
        %v1235 = vsel %vm1232, %v1234, %v1230
        %v1236 = vmul.f32 %v1211, %v1235
        %v1237 = vmin.f32 %v1236, 1.0
        %v1238 = vmax.f32 %v1237, -1.0
        %v1239 = vmul.f32 %v856, %v856
        %v1240 = vmin.f32 16.0, %v1239
        %v1241 = vmul.f32 %v1240, 2.1237322e-06
        %v1242 = vadd.f32 %v1241, 0.00028619796
        %v1243 = vmul.f32 %v1240, %v1242
        %v1244 = vadd.f32 %v1243, 0.0036580483
        %v1245 = vmul.f32 %v1240, %v1244
        %v1246 = vadd.f32 %v1245, 0.05243302
        %v1247 = vmul.f32 %v1240, %v1246
        %v1248 = vadd.f32 %v1247, 0.18741608
        %v1249 = vmul.f32 %v1240, %v1248
        %v1250 = vadd.f32 %v1249, 1.1283791
        %v1251 = vmul.f32 %v856, %v1250
        %v1252 = vmul.f32 %v1240, 3.8918573e-05
        %v1253 = vadd.f32 %v1252, 0.001143296
        %v1254 = vmul.f32 %v1240, %v1253
        %v1255 = vadd.f32 %v1254, 0.014752088
        %v1256 = vmul.f32 %v1240, %v1255
        %v1257 = vadd.f32 %v1256, 0.112945676
        %v1258 = vmul.f32 %v1240, %v1257
        %v1259 = vadd.f32 %v1258, 0.4994258
        %v1260 = vmul.f32 %v1240, %v1259
        %v1261 = vadd.f32 %v1260, 1.0
        %v1262 = vrcp.pop %v1261
        %v1263 = vmul.f32 %v1261, %v1262
        %v1264 = vsub.f32 1.0, %v1263
        %v1265 = vmul.f32 %v1262, %v1264
        %v1266 = vadd.f32 %v1262, %v1265
        %vm1267 = vweird.f32 %v1261
        %vm1268 = vweird.f32 %v1262
        %vm1269 = vmor %vm1267, %vm1268
        %v1270 = vsel %vm1269, %v1262, %v1266
        %v1271 = vand.u32 2147483647, %v1261
        %vm1272 = vcmp.eq.f32.partialorder %v1271, 8.507059e+37
        %v1273 = vand.u32 %v1261, 2147483648
        %v1274 = vor.u32 1.1754944e-38, %v1273
        %v1275 = vsel %vm1272, %v1274, %v1270
        %v1276 = vmul.f32 %v1251, %v1275
        %v1277 = vmin.f32 %v1276, 1.0
        %v1278 = vmax.f32 %v1277, -1.0
        %v1279 = vmul.f32 %v857, %v857
        %v1280 = vmin.f32 16.0, %v1279
        %v1281 = vmul.f32 %v1280, 2.1237322e-06
        %v1282 = vadd.f32 %v1281, 0.00028619796
        %v1283 = vmul.f32 %v1280, %v1282
        %v1284 = vadd.f32 %v1283, 0.0036580483
        %v1285 = vmul.f32 %v1280, %v1284
        %v1286 = vadd.f32 %v1285, 0.05243302
        %v1287 = vmul.f32 %v1280, %v1286
        %v1288 = vadd.f32 %v1287, 0.18741608
        %v1289 = vmul.f32 %v1280, %v1288
        %v1290 = vadd.f32 %v1289, 1.1283791
        %v1291 = vmul.f32 %v857, %v1290
        %v1292 = vmul.f32 %v1280, 3.8918573e-05
        %v1293 = vadd.f32 %v1292, 0.001143296
        %v1294 = vmul.f32 %v1280, %v1293
        %v1295 = vadd.f32 %v1294, 0.014752088
        %v1296 = vmul.f32 %v1280, %v1295
        %v1297 = vadd.f32 %v1296, 0.112945676
        %v1298 = vmul.f32 %v1280, %v1297
        %v1299 = vadd.f32 %v1298, 0.4994258
        %v1300 = vmul.f32 %v1280, %v1299
        %v1301 = vadd.f32 %v1300, 1.0
        %v1302 = vrcp.pop %v1301
        %v1303 = vmul.f32 %v1301, %v1302
        %v1304 = vsub.f32 1.0, %v1303
        %v1305 = vmul.f32 %v1302, %v1304
        %v1306 = vadd.f32 %v1302, %v1305
        %vm1307 = vweird.f32 %v1301
        %vm1308 = vweird.f32 %v1302
        %vm1309 = vmor %vm1307, %vm1308
        %v1310 = vsel %vm1309, %v1302, %v1306
        %v1311 = vand.u32 2147483647, %v1301
        %vm1312 = vcmp.eq.f32.partialorder %v1311, 8.507059e+37
        %v1313 = vand.u32 %v1301, 2147483648
        %v1314 = vor.u32 1.1754944e-38, %v1313
        %v1315 = vsel %vm1312, %v1314, %v1310
        %v1316 = vmul.f32 %v1291, %v1315
        %v1317 = vmin.f32 %v1316, 1.0
        %v1318 = vmax.f32 %v1317, -1.0
        %v1319 = vmul.f32 %v858, %v858
        %v1320 = vmin.f32 16.0, %v1319
        %v1321 = vmul.f32 %v1320, 2.1237322e-06
        %v1322 = vadd.f32 %v1321, 0.00028619796
        %v1323 = vmul.f32 %v1320, %v1322
        %v1324 = vadd.f32 %v1323, 0.0036580483
        %v1325 = vmul.f32 %v1320, %v1324
        %v1326 = vadd.f32 %v1325, 0.05243302
        %v1327 = vmul.f32 %v1320, %v1326
        %v1328 = vadd.f32 %v1327, 0.18741608
        %v1329 = vmul.f32 %v1320, %v1328
        %v1330 = vadd.f32 %v1329, 1.1283791
        %v1331 = vmul.f32 %v858, %v1330
        %v1332 = vmul.f32 %v1320, 3.8918573e-05
        %v1333 = vadd.f32 %v1332, 0.001143296
        %v1334 = vmul.f32 %v1320, %v1333
        %v1335 = vadd.f32 %v1334, 0.014752088
        %v1336 = vmul.f32 %v1320, %v1335
        %v1337 = vadd.f32 %v1336, 0.112945676
        %v1338 = vmul.f32 %v1320, %v1337
        %v1339 = vadd.f32 %v1338, 0.4994258
        %v1340 = vmul.f32 %v1320, %v1339
        %v1341 = vadd.f32 %v1340, 1.0
        %v1342 = vrcp.pop %v1341
        %v1343 = vmul.f32 %v1341, %v1342
        %v1344 = vsub.f32 1.0, %v1343
        %v1345 = vmul.f32 %v1342, %v1344
        %v1346 = vadd.f32 %v1342, %v1345
        %vm1347 = vweird.f32 %v1341
        %vm1348 = vweird.f32 %v1342
        %vm1349 = vmor %vm1347, %vm1348
        %v1350 = vsel %vm1349, %v1342, %v1346
        %v1351 = vand.u32 2147483647, %v1341
        %vm1352 = vcmp.eq.f32.partialorder %v1351, 8.507059e+37
        %v1353 = vand.u32 %v1341, 2147483648
        %v1354 = vor.u32 1.1754944e-38, %v1353
        %v1355 = vsel %vm1352, %v1354, %v1350
        %v1356 = vmul.f32 %v1331, %v1355
        %v1357 = vmin.f32 %v1356, 1.0
        %v1358 = vmax.f32 %v1357, -1.0
        %v1359 = vmul.f32 %v859, %v859
        %v1360 = vmin.f32 16.0, %v1359
        %v1361 = vmul.f32 %v1360, 2.1237322e-06
        %v1362 = vadd.f32 %v1361, 0.00028619796
        %v1363 = vmul.f32 %v1360, %v1362
        %v1364 = vadd.f32 %v1363, 0.0036580483
        %v1365 = vmul.f32 %v1360, %v1364
        %v1366 = vadd.f32 %v1365, 0.05243302
        %v1367 = vmul.f32 %v1360, %v1366
        %v1368 = vadd.f32 %v1367, 0.18741608
        %v1369 = vmul.f32 %v1360, %v1368
        %v1370 = vadd.f32 %v1369, 1.1283791
        %v1371 = vmul.f32 %v859, %v1370
        %v1372 = vmul.f32 %v1360, 3.8918573e-05
        %v1373 = vadd.f32 %v1372, 0.001143296
        %v1374 = vmul.f32 %v1360, %v1373
        %v1375 = vadd.f32 %v1374, 0.014752088
        %v1376 = vmul.f32 %v1360, %v1375
        %v1377 = vadd.f32 %v1376, 0.112945676
        %v1378 = vmul.f32 %v1360, %v1377
        %v1379 = vadd.f32 %v1378, 0.4994258
        %v1380 = vmul.f32 %v1360, %v1379
        %v1381 = vadd.f32 %v1380, 1.0
        %v1382 = vrcp.pop %v1381
        %v1383 = vmul.f32 %v1381, %v1382
        %v1384 = vsub.f32 1.0, %v1383
        %v1385 = vmul.f32 %v1382, %v1384
        %v1386 = vadd.f32 %v1382, %v1385
        %vm1387 = vweird.f32 %v1381
        %vm1388 = vweird.f32 %v1382
        %vm1389 = vmor %vm1387, %vm1388
        %v1390 = vsel %vm1389, %v1382, %v1386
        %v1391 = vand.u32 2147483647, %v1381
        %vm1392 = vcmp.eq.f32.partialorder %v1391, 8.507059e+37
        %v1393 = vand.u32 %v1381, 2147483648
        %v1394 = vor.u32 1.1754944e-38, %v1393
        %v1395 = vsel %vm1392, %v1394, %v1390
        %v1396 = vmul.f32 %v1371, %v1395
        %v1397 = vmin.f32 %v1396, 1.0
        %v1398 = vmax.f32 %v1397, -1.0
        %v1399 = vmul.f32 %v860, %v860
        %v1400 = vmin.f32 16.0, %v1399
        %v1401 = vmul.f32 %v1400, 2.1237322e-06
        %v1402 = vadd.f32 %v1401, 0.00028619796
        %v1403 = vmul.f32 %v1400, %v1402
        %v1404 = vadd.f32 %v1403, 0.0036580483
        %v1405 = vmul.f32 %v1400, %v1404
        %v1406 = vadd.f32 %v1405, 0.05243302
        %v1407 = vmul.f32 %v1400, %v1406
        %v1408 = vadd.f32 %v1407, 0.18741608
        %v1409 = vmul.f32 %v1400, %v1408
        %v1410 = vadd.f32 %v1409, 1.1283791
        %v1411 = vmul.f32 %v860, %v1410
        %v1412 = vmul.f32 %v1400, 3.8918573e-05
        %v1413 = vadd.f32 %v1412, 0.001143296
        %v1414 = vmul.f32 %v1400, %v1413
        %v1415 = vadd.f32 %v1414, 0.014752088
        %v1416 = vmul.f32 %v1400, %v1415
        %v1417 = vadd.f32 %v1416, 0.112945676
        %v1418 = vmul.f32 %v1400, %v1417
        %v1419 = vadd.f32 %v1418, 0.4994258
        %v1420 = vmul.f32 %v1400, %v1419
        %v1421 = vadd.f32 %v1420, 1.0
        %v1422 = vrcp.pop %v1421
        %v1423 = vmul.f32 %v1421, %v1422
        %v1424 = vsub.f32 1.0, %v1423
        %v1425 = vmul.f32 %v1422, %v1424
        %v1426 = vadd.f32 %v1422, %v1425
        %vm1427 = vweird.f32 %v1421
        %vm1428 = vweird.f32 %v1422
        %vm1429 = vmor %vm1427, %vm1428
        %v1430 = vsel %vm1429, %v1422, %v1426
        %v1431 = vand.u32 2147483647, %v1421
        %vm1432 = vcmp.eq.f32.partialorder %v1431, 8.507059e+37
        %v1433 = vand.u32 %v1421, 2147483648
        %v1434 = vor.u32 1.1754944e-38, %v1433
        %v1435 = vsel %vm1432, %v1434, %v1430
        %v1436 = vmul.f32 %v1411, %v1435
        %v1437 = vmin.f32 %v1436, 1.0
        %v1438 = vmax.f32 %v1437, -1.0
        %v1439 = vmul.f32 %v861, %v861
        %v1440 = vmin.f32 16.0, %v1439
        %v1441 = vmul.f32 %v1440, 2.1237322e-06
        %v1442 = vadd.f32 %v1441, 0.00028619796
        %v1443 = vmul.f32 %v1440, %v1442
        %v1444 = vadd.f32 %v1443, 0.0036580483
        %v1445 = vmul.f32 %v1440, %v1444
        %v1446 = vadd.f32 %v1445, 0.05243302
        %v1447 = vmul.f32 %v1440, %v1446
        %v1448 = vadd.f32 %v1447, 0.18741608
        %v1449 = vmul.f32 %v1440, %v1448
        %v1450 = vadd.f32 %v1449, 1.1283791
        %v1451 = vmul.f32 %v861, %v1450
        %v1452 = vmul.f32 %v1440, 3.8918573e-05
        %v1453 = vadd.f32 %v1452, 0.001143296
        %v1454 = vmul.f32 %v1440, %v1453
        %v1455 = vadd.f32 %v1454, 0.014752088
        %v1456 = vmul.f32 %v1440, %v1455
        %v1457 = vadd.f32 %v1456, 0.112945676
        %v1458 = vmul.f32 %v1440, %v1457
        %v1459 = vadd.f32 %v1458, 0.4994258
        %v1460 = vmul.f32 %v1440, %v1459
        %v1461 = vadd.f32 %v1460, 1.0
        %v1462 = vrcp.pop %v1461
        %v1463 = vmul.f32 %v1461, %v1462
        %v1464 = vsub.f32 1.0, %v1463
        %v1465 = vmul.f32 %v1462, %v1464
        %v1466 = vadd.f32 %v1462, %v1465
        %vm1467 = vweird.f32 %v1461
        %vm1468 = vweird.f32 %v1462
        %vm1469 = vmor %vm1467, %vm1468
        %v1470 = vsel %vm1469, %v1462, %v1466
        %v1471 = vand.u32 2147483647, %v1461
        %vm1472 = vcmp.eq.f32.partialorder %v1471, 8.507059e+37
        %v1473 = vand.u32 %v1461, 2147483648
        %v1474 = vor.u32 1.1754944e-38, %v1473
        %v1475 = vsel %vm1472, %v1474, %v1470
        %v1476 = vmul.f32 %v1451, %v1475
        %v1477 = vmin.f32 %v1476, 1.0
        %v1478 = vmax.f32 %v1477, -1.0
        %v1479 = vmul.f32 %v862, %v862
        %v1480 = vmin.f32 16.0, %v1479
        %v1481 = vmul.f32 %v1480, 2.1237322e-06
        %v1482 = vadd.f32 %v1481, 0.00028619796
        %v1483 = vmul.f32 %v1480, %v1482
        %v1484 = vadd.f32 %v1483, 0.0036580483
        %v1485 = vmul.f32 %v1480, %v1484
        %v1486 = vadd.f32 %v1485, 0.05243302
        %v1487 = vmul.f32 %v1480, %v1486
        %v1488 = vadd.f32 %v1487, 0.18741608
        %v1489 = vmul.f32 %v1480, %v1488
        %v1490 = vadd.f32 %v1489, 1.1283791
        %v1491 = vmul.f32 %v862, %v1490
        %v1492 = vmul.f32 %v1480, 3.8918573e-05
        %v1493 = vadd.f32 %v1492, 0.001143296
        %v1494 = vmul.f32 %v1480, %v1493
        %v1495 = vadd.f32 %v1494, 0.014752088
        %v1496 = vmul.f32 %v1480, %v1495
        %v1497 = vadd.f32 %v1496, 0.112945676
        %v1498 = vmul.f32 %v1480, %v1497
        %v1499 = vadd.f32 %v1498, 0.4994258
        %v1500 = vmul.f32 %v1480, %v1499
        %v1501 = vadd.f32 %v1500, 1.0
        %v1502 = vrcp.pop %v1501
        %v1503 = vmul.f32 %v1501, %v1502
        %v1504 = vsub.f32 1.0, %v1503
        %v1505 = vmul.f32 %v1502, %v1504
        %v1506 = vadd.f32 %v1502, %v1505
        %vm1507 = vweird.f32 %v1501
        %vm1508 = vweird.f32 %v1502
        %vm1509 = vmor %vm1507, %vm1508
        %v1510 = vsel %vm1509, %v1502, %v1506
        %v1511 = vand.u32 2147483647, %v1501
        %vm1512 = vcmp.eq.f32.partialorder %v1511, 8.507059e+37
        %v1513 = vand.u32 %v1501, 2147483648
        %v1514 = vor.u32 1.1754944e-38, %v1513
        %v1515 = vsel %vm1512, %v1514, %v1510
        %v1516 = vmul.f32 %v1491, %v1515
        %v1517 = vmin.f32 %v1516, 1.0
        %v1518 = vmax.f32 %v1517, -1.0
        %v1519 = vmul.f32 %v863, %v863
        %v1520 = vmin.f32 16.0, %v1519
        %v1521 = vmul.f32 %v1520, 2.1237322e-06
        %v1522 = vadd.f32 %v1521, 0.00028619796
        %v1523 = vmul.f32 %v1520, %v1522
        %v1524 = vadd.f32 %v1523, 0.0036580483
        %v1525 = vmul.f32 %v1520, %v1524
        %v1526 = vadd.f32 %v1525, 0.05243302
        %v1527 = vmul.f32 %v1520, %v1526
        %v1528 = vadd.f32 %v1527, 0.18741608
        %v1529 = vmul.f32 %v1520, %v1528
        %v1530 = vadd.f32 %v1529, 1.1283791
        %v1531 = vmul.f32 %v863, %v1530
        %v1532 = vmul.f32 %v1520, 3.8918573e-05
        %v1533 = vadd.f32 %v1532, 0.001143296
        %v1534 = vmul.f32 %v1520, %v1533
        %v1535 = vadd.f32 %v1534, 0.014752088
        %v1536 = vmul.f32 %v1520, %v1535
        %v1537 = vadd.f32 %v1536, 0.112945676
        %v1538 = vmul.f32 %v1520, %v1537
        %v1539 = vadd.f32 %v1538, 0.4994258
        %v1540 = vmul.f32 %v1520, %v1539
        %v1541 = vadd.f32 %v1540, 1.0
        %v1542 = vrcp.pop %v1541
        %v1543 = vmul.f32 %v1541, %v1542
        %v1544 = vsub.f32 1.0, %v1543
        %v1545 = vmul.f32 %v1542, %v1544
        %v1546 = vadd.f32 %v1542, %v1545
        %vm1547 = vweird.f32 %v1541
        %vm1548 = vweird.f32 %v1542
        %vm1549 = vmor %vm1547, %vm1548
        %v1550 = vsel %vm1549, %v1542, %v1546
        %v1551 = vand.u32 2147483647, %v1541
        %vm1552 = vcmp.eq.f32.partialorder %v1551, 8.507059e+37
        %v1553 = vand.u32 %v1541, 2147483648
        %v1554 = vor.u32 1.1754944e-38, %v1553
        %v1555 = vsel %vm1552, %v1554, %v1550
        %v1556 = vmul.f32 %v1531, %v1555
        %v1557 = vmin.f32 %v1556, 1.0
        %v1558 = vmax.f32 %v1557, -1.0
        %v1559 = vmul.f32 %v864, %v864
        %v1560 = vmin.f32 16.0, %v1559
        %v1561 = vmul.f32 %v1560, 2.1237322e-06
        %v1562 = vadd.f32 %v1561, 0.00028619796
        %v1563 = vmul.f32 %v1560, %v1562
        %v1564 = vadd.f32 %v1563, 0.0036580483
        %v1565 = vmul.f32 %v1560, %v1564
        %v1566 = vadd.f32 %v1565, 0.05243302
        %v1567 = vmul.f32 %v1560, %v1566
        %v1568 = vadd.f32 %v1567, 0.18741608
        %v1569 = vmul.f32 %v1560, %v1568
        %v1570 = vadd.f32 %v1569, 1.1283791
        %v1571 = vmul.f32 %v864, %v1570
        %v1572 = vmul.f32 %v1560, 3.8918573e-05
        %v1573 = vadd.f32 %v1572, 0.001143296
        %v1574 = vmul.f32 %v1560, %v1573
        %v1575 = vadd.f32 %v1574, 0.014752088
        %v1576 = vmul.f32 %v1560, %v1575
        %v1577 = vadd.f32 %v1576, 0.112945676
        %v1578 = vmul.f32 %v1560, %v1577
        %v1579 = vadd.f32 %v1578, 0.4994258
        %v1580 = vmul.f32 %v1560, %v1579
        %v1581 = vadd.f32 %v1580, 1.0
        %v1582 = vrcp.pop %v1581
        %v1583 = vmul.f32 %v1581, %v1582
        %v1584 = vsub.f32 1.0, %v1583
        %v1585 = vmul.f32 %v1582, %v1584
        %v1586 = vadd.f32 %v1582, %v1585
        %vm1587 = vweird.f32 %v1581
        %vm1588 = vweird.f32 %v1582
        %vm1589 = vmor %vm1587, %vm1588
        %v1590 = vsel %vm1589, %v1582, %v1586
        %v1591 = vand.u32 2147483647, %v1581
        %vm1592 = vcmp.eq.f32.partialorder %v1591, 8.507059e+37
        %v1593 = vand.u32 %v1581, 2147483648
        %v1594 = vor.u32 1.1754944e-38, %v1593
        %v1595 = vsel %vm1592, %v1594, %v1590
        %v1596 = vmul.f32 %v1571, %v1595
        %v1597 = vmin.f32 %v1596, 1.0
        %v1598 = vmax.f32 %v1597, -1.0
        %v1599 = vmul.f32 %v865, %v865
        %v1600 = vmin.f32 16.0, %v1599
        %v1601 = vmul.f32 %v1600, 2.1237322e-06
        %v1602 = vadd.f32 %v1601, 0.00028619796
        %v1603 = vmul.f32 %v1600, %v1602
        %v1604 = vadd.f32 %v1603, 0.0036580483
        %v1605 = vmul.f32 %v1600, %v1604
        %v1606 = vadd.f32 %v1605, 0.05243302
        %v1607 = vmul.f32 %v1600, %v1606
        %v1608 = vadd.f32 %v1607, 0.18741608
        %v1609 = vmul.f32 %v1600, %v1608
        %v1610 = vadd.f32 %v1609, 1.1283791
        %v1611 = vmul.f32 %v865, %v1610
        %v1612 = vmul.f32 %v1600, 3.8918573e-05
        %v1613 = vadd.f32 %v1612, 0.001143296
        %v1614 = vmul.f32 %v1600, %v1613
        %v1615 = vadd.f32 %v1614, 0.014752088
        %v1616 = vmul.f32 %v1600, %v1615
        %v1617 = vadd.f32 %v1616, 0.112945676
        %v1618 = vmul.f32 %v1600, %v1617
        %v1619 = vadd.f32 %v1618, 0.4994258
        %v1620 = vmul.f32 %v1600, %v1619
        %v1621 = vadd.f32 %v1620, 1.0
        %v1622 = vrcp.pop %v1621
        %v1623 = vmul.f32 %v1621, %v1622
        %v1624 = vsub.f32 1.0, %v1623
        %v1625 = vmul.f32 %v1622, %v1624
        %v1626 = vadd.f32 %v1622, %v1625
        %vm1627 = vweird.f32 %v1621
        %vm1628 = vweird.f32 %v1622
        %vm1629 = vmor %vm1627, %vm1628
        %v1630 = vsel %vm1629, %v1622, %v1626
        %v1631 = vand.u32 2147483647, %v1621
        %vm1632 = vcmp.eq.f32.partialorder %v1631, 8.507059e+37
        %v1633 = vand.u32 %v1621, 2147483648
        %v1634 = vor.u32 1.1754944e-38, %v1633
        %v1635 = vsel %vm1632, %v1634, %v1630
        %v1636 = vmul.f32 %v1611, %v1635
        %v1637 = vmin.f32 %v1636, 1.0
        %v1638 = vmax.f32 %v1637, -1.0
        %v1639 = vmul.f32 %v866, %v866
        %v1640 = vmin.f32 16.0, %v1639
        %v1641 = vmul.f32 %v1640, 2.1237322e-06
        %v1642 = vadd.f32 %v1641, 0.00028619796
        %v1643 = vmul.f32 %v1640, %v1642
        %v1644 = vadd.f32 %v1643, 0.0036580483
        %v1645 = vmul.f32 %v1640, %v1644
        %v1646 = vadd.f32 %v1645, 0.05243302
        %v1647 = vmul.f32 %v1640, %v1646
        %v1648 = vadd.f32 %v1647, 0.18741608
        %v1649 = vmul.f32 %v1640, %v1648
        %v1650 = vadd.f32 %v1649, 1.1283791
        %v1651 = vmul.f32 %v866, %v1650
        %v1652 = vmul.f32 %v1640, 3.8918573e-05
        %v1653 = vadd.f32 %v1652, 0.001143296
        %v1654 = vmul.f32 %v1640, %v1653
        %v1655 = vadd.f32 %v1654, 0.014752088
        %v1656 = vmul.f32 %v1640, %v1655
        %v1657 = vadd.f32 %v1656, 0.112945676
        %v1658 = vmul.f32 %v1640, %v1657
        %v1659 = vadd.f32 %v1658, 0.4994258
        %v1660 = vmul.f32 %v1640, %v1659
        %v1661 = vadd.f32 %v1660, 1.0
        %v1662 = vrcp.pop %v1661
        %v1663 = vmul.f32 %v1661, %v1662
        %v1664 = vsub.f32 1.0, %v1663
        %v1665 = vmul.f32 %v1662, %v1664
        %v1666 = vadd.f32 %v1662, %v1665
        %vm1667 = vweird.f32 %v1661
        %vm1668 = vweird.f32 %v1662
        %vm1669 = vmor %vm1667, %vm1668
        %v1670 = vsel %vm1669, %v1662, %v1666
        %v1671 = vand.u32 2147483647, %v1661
        %vm1672 = vcmp.eq.f32.partialorder %v1671, 8.507059e+37
        %v1673 = vand.u32 %v1661, 2147483648
        %v1674 = vor.u32 1.1754944e-38, %v1673
        %v1675 = vsel %vm1672, %v1674, %v1670
        %v1676 = vmul.f32 %v1651, %v1675
        %v1677 = vmin.f32 %v1676, 1.0
        %v1678 = vmax.f32 %v1677, -1.0
        %v1679 = vmul.f32 %v867, %v867
        %v1680 = vmin.f32 16.0, %v1679
        %v1681 = vmul.f32 %v1680, 2.1237322e-06
        %v1682 = vadd.f32 %v1681, 0.00028619796
        %v1683 = vmul.f32 %v1680, %v1682
        %v1684 = vadd.f32 %v1683, 0.0036580483
        %v1685 = vmul.f32 %v1680, %v1684
        %v1686 = vadd.f32 %v1685, 0.05243302
        %v1687 = vmul.f32 %v1680, %v1686
        %v1688 = vadd.f32 %v1687, 0.18741608
        %v1689 = vmul.f32 %v1680, %v1688
        %v1690 = vadd.f32 %v1689, 1.1283791
        %v1691 = vmul.f32 %v867, %v1690
        %v1692 = vmul.f32 %v1680, 3.8918573e-05
        %v1693 = vadd.f32 %v1692, 0.001143296
        %v1694 = vmul.f32 %v1680, %v1693
        %v1695 = vadd.f32 %v1694, 0.014752088
        %v1696 = vmul.f32 %v1680, %v1695
        %v1697 = vadd.f32 %v1696, 0.112945676
        %v1698 = vmul.f32 %v1680, %v1697
        %v1699 = vadd.f32 %v1698, 0.4994258
        %v1700 = vmul.f32 %v1680, %v1699
        %v1701 = vadd.f32 %v1700, 1.0
        %v1702 = vrcp.pop %v1701
        %v1703 = vmul.f32 %v1701, %v1702
        %v1704 = vsub.f32 1.0, %v1703
        %v1705 = vmul.f32 %v1702, %v1704
        %v1706 = vadd.f32 %v1702, %v1705
        %vm1707 = vweird.f32 %v1701
        %vm1708 = vweird.f32 %v1702
        %vm1709 = vmor %vm1707, %vm1708
        %v1710 = vsel %vm1709, %v1702, %v1706
        %v1711 = vand.u32 2147483647, %v1701
        %vm1712 = vcmp.eq.f32.partialorder %v1711, 8.507059e+37
        %v1713 = vand.u32 %v1701, 2147483648
        %v1714 = vor.u32 1.1754944e-38, %v1713
        %v1715 = vsel %vm1712, %v1714, %v1710
        %v1716 = vmul.f32 %v1691, %v1715
        %v1717 = vmin.f32 %v1716, 1.0
        %v1718 = vmax.f32 %v1717, -1.0
        %v1719 = vmul.f32 %v868, %v868
        %v1720 = vmin.f32 16.0, %v1719
        %v1721 = vmul.f32 %v1720, 2.1237322e-06
        %v1722 = vadd.f32 %v1721, 0.00028619796
        %v1723 = vmul.f32 %v1720, %v1722
        %v1724 = vadd.f32 %v1723, 0.0036580483
        %v1725 = vmul.f32 %v1720, %v1724
        %v1726 = vadd.f32 %v1725, 0.05243302
        %v1727 = vmul.f32 %v1720, %v1726
        %v1728 = vadd.f32 %v1727, 0.18741608
        %v1729 = vmul.f32 %v1720, %v1728
        %v1730 = vadd.f32 %v1729, 1.1283791
        %v1731 = vmul.f32 %v868, %v1730
        %v1732 = vmul.f32 %v1720, 3.8918573e-05
        %v1733 = vadd.f32 %v1732, 0.001143296
        %v1734 = vmul.f32 %v1720, %v1733
        %v1735 = vadd.f32 %v1734, 0.014752088
        %v1736 = vmul.f32 %v1720, %v1735
        %v1737 = vadd.f32 %v1736, 0.112945676
        %v1738 = vmul.f32 %v1720, %v1737
        %v1739 = vadd.f32 %v1738, 0.4994258
        %v1740 = vmul.f32 %v1720, %v1739
        %v1741 = vadd.f32 %v1740, 1.0
        %v1742 = vrcp.pop %v1741
        %v1743 = vmul.f32 %v1741, %v1742
        %v1744 = vsub.f32 1.0, %v1743
        %v1745 = vmul.f32 %v1742, %v1744
        %v1746 = vadd.f32 %v1742, %v1745
        %vm1747 = vweird.f32 %v1741
        %vm1748 = vweird.f32 %v1742
        %vm1749 = vmor %vm1747, %vm1748
        %v1750 = vsel %vm1749, %v1742, %v1746
        %v1751 = vand.u32 2147483647, %v1741
        %vm1752 = vcmp.eq.f32.partialorder %v1751, 8.507059e+37
        %v1753 = vand.u32 %v1741, 2147483648
        %v1754 = vor.u32 1.1754944e-38, %v1753
        %v1755 = vsel %vm1752, %v1754, %v1750
        %v1756 = vmul.f32 %v1731, %v1755
        %v1757 = vmin.f32 %v1756, 1.0
        %v1758 = vmax.f32 %v1757, -1.0
        %v1759 = vmul.f32 %v869, %v869
        %v1760 = vmin.f32 16.0, %v1759
        %v1761 = vmul.f32 %v1760, 2.1237322e-06
        %v1762 = vadd.f32 %v1761, 0.00028619796
        %v1763 = vmul.f32 %v1760, %v1762
        %v1764 = vadd.f32 %v1763, 0.0036580483
        %v1765 = vmul.f32 %v1760, %v1764
        %v1766 = vadd.f32 %v1765, 0.05243302
        %v1767 = vmul.f32 %v1760, %v1766
        %v1768 = vadd.f32 %v1767, 0.18741608
        %v1769 = vmul.f32 %v1760, %v1768
        %v1770 = vadd.f32 %v1769, 1.1283791
        %v1771 = vmul.f32 %v869, %v1770
        %v1772 = vmul.f32 %v1760, 3.8918573e-05
        %v1773 = vadd.f32 %v1772, 0.001143296
        %v1774 = vmul.f32 %v1760, %v1773
        %v1775 = vadd.f32 %v1774, 0.014752088
        %v1776 = vmul.f32 %v1760, %v1775
        %v1777 = vadd.f32 %v1776, 0.112945676
        %v1778 = vmul.f32 %v1760, %v1777
        %v1779 = vadd.f32 %v1778, 0.4994258
        %v1780 = vmul.f32 %v1760, %v1779
        %v1781 = vadd.f32 %v1780, 1.0
        %v1782 = vrcp.pop %v1781
        %v1783 = vmul.f32 %v1781, %v1782
        %v1784 = vsub.f32 1.0, %v1783
        %v1785 = vmul.f32 %v1782, %v1784
        %v1786 = vadd.f32 %v1782, %v1785
        %vm1787 = vweird.f32 %v1781
        %vm1788 = vweird.f32 %v1782
        %vm1789 = vmor %vm1787, %vm1788
        %v1790 = vsel %vm1789, %v1782, %v1786
        %v1791 = vand.u32 2147483647, %v1781
        %vm1792 = vcmp.eq.f32.partialorder %v1791, 8.507059e+37
        %v1793 = vand.u32 %v1781, 2147483648
        %v1794 = vor.u32 1.1754944e-38, %v1793
        %v1795 = vsel %vm1792, %v1794, %v1790
        %v1796 = vmul.f32 %v1771, %v1795
        %v1797 = vmin.f32 %v1796, 1.0
        %v1798 = vmax.f32 %v1797, -1.0
        %v1799 = vmul.f32 %v870, %v870
        %v1800 = vmin.f32 16.0, %v1799
        %v1801 = vmul.f32 %v1800, 2.1237322e-06
        %v1802 = vadd.f32 %v1801, 0.00028619796
        %v1803 = vmul.f32 %v1800, %v1802
        %v1804 = vadd.f32 %v1803, 0.0036580483
        %v1805 = vmul.f32 %v1800, %v1804
        %v1806 = vadd.f32 %v1805, 0.05243302
        %v1807 = vmul.f32 %v1800, %v1806
        %v1808 = vadd.f32 %v1807, 0.18741608
        %v1809 = vmul.f32 %v1800, %v1808
        %v1810 = vadd.f32 %v1809, 1.1283791
        %v1811 = vmul.f32 %v870, %v1810
        %v1812 = vmul.f32 %v1800, 3.8918573e-05
        %v1813 = vadd.f32 %v1812, 0.001143296
        %v1814 = vmul.f32 %v1800, %v1813
        %v1815 = vadd.f32 %v1814, 0.014752088
        %v1816 = vmul.f32 %v1800, %v1815
        %v1817 = vadd.f32 %v1816, 0.112945676
        %v1818 = vmul.f32 %v1800, %v1817
        %v1819 = vadd.f32 %v1818, 0.4994258
        %v1820 = vmul.f32 %v1800, %v1819
        %v1821 = vadd.f32 %v1820, 1.0
        %v1822 = vrcp.pop %v1821
        %v1823 = vmul.f32 %v1821, %v1822
        %v1824 = vsub.f32 1.0, %v1823
        %v1825 = vmul.f32 %v1822, %v1824
        %v1826 = vadd.f32 %v1822, %v1825
        %vm1827 = vweird.f32 %v1821
        %vm1828 = vweird.f32 %v1822
        %vm1829 = vmor %vm1827, %vm1828
        %v1830 = vsel %vm1829, %v1822, %v1826
        %v1831 = vand.u32 2147483647, %v1821
        %vm1832 = vcmp.eq.f32.partialorder %v1831, 8.507059e+37
        %v1833 = vand.u32 %v1821, 2147483648
        %v1834 = vor.u32 1.1754944e-38, %v1833
        %v1835 = vsel %vm1832, %v1834, %v1830
        %v1836 = vmul.f32 %v1811, %v1835
        %v1837 = vmin.f32 %v1836, 1.0
        %v1838 = vmax.f32 %v1837, -1.0
        %v1839 = vmul.f32 %v871, %v871
        %v1840 = vmin.f32 16.0, %v1839
        %v1841 = vmul.f32 %v1840, 2.1237322e-06
        %v1842 = vadd.f32 %v1841, 0.00028619796
        %v1843 = vmul.f32 %v1840, %v1842
        %v1844 = vadd.f32 %v1843, 0.0036580483
        %v1845 = vmul.f32 %v1840, %v1844
        %v1846 = vadd.f32 %v1845, 0.05243302
        %v1847 = vmul.f32 %v1840, %v1846
        %v1848 = vadd.f32 %v1847, 0.18741608
        %v1849 = vmul.f32 %v1840, %v1848
        %v1850 = vadd.f32 %v1849, 1.1283791
        %v1851 = vmul.f32 %v871, %v1850
        %v1852 = vmul.f32 %v1840, 3.8918573e-05
        %v1853 = vadd.f32 %v1852, 0.001143296
        %v1854 = vmul.f32 %v1840, %v1853
        %v1855 = vadd.f32 %v1854, 0.014752088
        %v1856 = vmul.f32 %v1840, %v1855
        %v1857 = vadd.f32 %v1856, 0.112945676
        %v1858 = vmul.f32 %v1840, %v1857
        %v1859 = vadd.f32 %v1858, 0.4994258
        %v1860 = vmul.f32 %v1840, %v1859
        %v1861 = vadd.f32 %v1860, 1.0
        %v1862 = vrcp.pop %v1861
        %v1863 = vmul.f32 %v1861, %v1862
        %v1864 = vsub.f32 1.0, %v1863
        %v1865 = vmul.f32 %v1862, %v1864
        %v1866 = vadd.f32 %v1862, %v1865
        %vm1867 = vweird.f32 %v1861
        %vm1868 = vweird.f32 %v1862
        %vm1869 = vmor %vm1867, %vm1868
        %v1870 = vsel %vm1869, %v1862, %v1866
        %v1871 = vand.u32 2147483647, %v1861
        %vm1872 = vcmp.eq.f32.partialorder %v1871, 8.507059e+37
        %v1873 = vand.u32 %v1861, 2147483648
        %v1874 = vor.u32 1.1754944e-38, %v1873
        %v1875 = vsel %vm1872, %v1874, %v1870
        %v1876 = vmul.f32 %v1851, %v1875
        %v1877 = vmin.f32 %v1876, 1.0
        %v1878 = vmax.f32 %v1877, -1.0
        %v1879 = vmul.f32 %v872, %v872
        %v1880 = vmin.f32 16.0, %v1879
        %v1881 = vmul.f32 %v1880, 2.1237322e-06
        %v1882 = vadd.f32 %v1881, 0.00028619796
        %v1883 = vmul.f32 %v1880, %v1882
        %v1884 = vadd.f32 %v1883, 0.0036580483
        %v1885 = vmul.f32 %v1880, %v1884
        %v1886 = vadd.f32 %v1885, 0.05243302
        %v1887 = vmul.f32 %v1880, %v1886
        %v1888 = vadd.f32 %v1887, 0.18741608
        %v1889 = vmul.f32 %v1880, %v1888
        %v1890 = vadd.f32 %v1889, 1.1283791
        %v1891 = vmul.f32 %v872, %v1890
        %v1892 = vmul.f32 %v1880, 3.8918573e-05
        %v1893 = vadd.f32 %v1892, 0.001143296
        %v1894 = vmul.f32 %v1880, %v1893
        %v1895 = vadd.f32 %v1894, 0.014752088
        %v1896 = vmul.f32 %v1880, %v1895
        %v1897 = vadd.f32 %v1896, 0.112945676
        %v1898 = vmul.f32 %v1880, %v1897
        %v1899 = vadd.f32 %v1898, 0.4994258
        %v1900 = vmul.f32 %v1880, %v1899
        %v1901 = vadd.f32 %v1900, 1.0
        %v1902 = vrcp.pop %v1901
        %v1903 = vmul.f32 %v1901, %v1902
        %v1904 = vsub.f32 1.0, %v1903
        %v1905 = vmul.f32 %v1902, %v1904
        %v1906 = vadd.f32 %v1902, %v1905
        %vm1907 = vweird.f32 %v1901
        %vm1908 = vweird.f32 %v1902
        %vm1909 = vmor %vm1907, %vm1908
        %v1910 = vsel %vm1909, %v1902, %v1906
        %v1911 = vand.u32 2147483647, %v1901
        %vm1912 = vcmp.eq.f32.partialorder %v1911, 8.507059e+37
        %v1913 = vand.u32 %v1901, 2147483648
        %v1914 = vor.u32 1.1754944e-38, %v1913
        %v1915 = vsel %vm1912, %v1914, %v1910
        %v1916 = vmul.f32 %v1891, %v1915
        %v1917 = vmin.f32 %v1916, 1.0
        %v1918 = vmax.f32 %v1917, -1.0
        %v1919 = vmul.f32 %v873, %v873
        %v1920 = vmin.f32 16.0, %v1919
        %v1921 = vmul.f32 %v1920, 2.1237322e-06
        %v1922 = vadd.f32 %v1921, 0.00028619796
        %v1923 = vmul.f32 %v1920, %v1922
        %v1924 = vadd.f32 %v1923, 0.0036580483
        %v1925 = vmul.f32 %v1920, %v1924
        %v1926 = vadd.f32 %v1925, 0.05243302
        %v1927 = vmul.f32 %v1920, %v1926
        %v1928 = vadd.f32 %v1927, 0.18741608
        %v1929 = vmul.f32 %v1920, %v1928
        %v1930 = vadd.f32 %v1929, 1.1283791
        %v1931 = vmul.f32 %v873, %v1930
        %v1932 = vmul.f32 %v1920, 3.8918573e-05
        %v1933 = vadd.f32 %v1932, 0.001143296
        %v1934 = vmul.f32 %v1920, %v1933
        %v1935 = vadd.f32 %v1934, 0.014752088
        %v1936 = vmul.f32 %v1920, %v1935
        %v1937 = vadd.f32 %v1936, 0.112945676
        %v1938 = vmul.f32 %v1920, %v1937
        %v1939 = vadd.f32 %v1938, 0.4994258
        %v1940 = vmul.f32 %v1920, %v1939
        %v1941 = vadd.f32 %v1940, 1.0
        %v1942 = vrcp.pop %v1941
        %v1943 = vmul.f32 %v1941, %v1942
        %v1944 = vsub.f32 1.0, %v1943
        %v1945 = vmul.f32 %v1942, %v1944
        %v1946 = vadd.f32 %v1942, %v1945
        %vm1947 = vweird.f32 %v1941
        %vm1948 = vweird.f32 %v1942
        %vm1949 = vmor %vm1947, %vm1948
        %v1950 = vsel %vm1949, %v1942, %v1946
        %v1951 = vand.u32 2147483647, %v1941
        %vm1952 = vcmp.eq.f32.partialorder %v1951, 8.507059e+37
        %v1953 = vand.u32 %v1941, 2147483648
        %v1954 = vor.u32 1.1754944e-38, %v1953
        %v1955 = vsel %vm1952, %v1954, %v1950
        %v1956 = vmul.f32 %v1931, %v1955
        %v1957 = vmin.f32 %v1956, 1.0
        %v1958 = vmax.f32 %v1957, -1.0
        %v1959 = vmul.f32 %v874, %v874
        %v1960 = vmin.f32 16.0, %v1959
        %v1961 = vmul.f32 %v1960, 2.1237322e-06
        %v1962 = vadd.f32 %v1961, 0.00028619796
        %v1963 = vmul.f32 %v1960, %v1962
        %v1964 = vadd.f32 %v1963, 0.0036580483
        %v1965 = vmul.f32 %v1960, %v1964
        %v1966 = vadd.f32 %v1965, 0.05243302
        %v1967 = vmul.f32 %v1960, %v1966
        %v1968 = vadd.f32 %v1967, 0.18741608
        %v1969 = vmul.f32 %v1960, %v1968
        %v1970 = vadd.f32 %v1969, 1.1283791
        %v1971 = vmul.f32 %v874, %v1970
        %v1972 = vmul.f32 %v1960, 3.8918573e-05
        %v1973 = vadd.f32 %v1972, 0.001143296
        %v1974 = vmul.f32 %v1960, %v1973
        %v1975 = vadd.f32 %v1974, 0.014752088
        %v1976 = vmul.f32 %v1960, %v1975
        %v1977 = vadd.f32 %v1976, 0.112945676
        %v1978 = vmul.f32 %v1960, %v1977
        %v1979 = vadd.f32 %v1978, 0.4994258
        %v1980 = vmul.f32 %v1960, %v1979
        %v1981 = vadd.f32 %v1980, 1.0
        %v1982 = vrcp.pop %v1981
        %v1983 = vmul.f32 %v1981, %v1982
        %v1984 = vsub.f32 1.0, %v1983
        %v1985 = vmul.f32 %v1982, %v1984
        %v1986 = vadd.f32 %v1982, %v1985
        %vm1987 = vweird.f32 %v1981
        %vm1988 = vweird.f32 %v1982
        %vm1989 = vmor %vm1987, %vm1988
        %v1990 = vsel %vm1989, %v1982, %v1986
        %v1991 = vand.u32 2147483647, %v1981
        %vm1992 = vcmp.eq.f32.partialorder %v1991, 8.507059e+37
        %v1993 = vand.u32 %v1981, 2147483648
        %v1994 = vor.u32 1.1754944e-38, %v1993
        %v1995 = vsel %vm1992, %v1994, %v1990
        %v1996 = vmul.f32 %v1971, %v1995
        %v1997 = vmin.f32 %v1996, 1.0
        %v1998 = vmax.f32 %v1997, -1.0
        %v1999 = vmul.f32 %v875, %v875
        %v2000 = vmin.f32 16.0, %v1999
        %v2001 = vmul.f32 %v2000, 2.1237322e-06
        %v2002 = vadd.f32 %v2001, 0.00028619796
        %v2003 = vmul.f32 %v2000, %v2002
        %v2004 = vadd.f32 %v2003, 0.0036580483
        %v2005 = vmul.f32 %v2000, %v2004
        %v2006 = vadd.f32 %v2005, 0.05243302
        %v2007 = vmul.f32 %v2000, %v2006
        %v2008 = vadd.f32 %v2007, 0.18741608
        %v2009 = vmul.f32 %v2000, %v2008
        %v2010 = vadd.f32 %v2009, 1.1283791
        %v2011 = vmul.f32 %v875, %v2010
        %v2012 = vmul.f32 %v2000, 3.8918573e-05
        %v2013 = vadd.f32 %v2012, 0.001143296
        %v2014 = vmul.f32 %v2000, %v2013
        %v2015 = vadd.f32 %v2014, 0.014752088
        %v2016 = vmul.f32 %v2000, %v2015
        %v2017 = vadd.f32 %v2016, 0.112945676
        %v2018 = vmul.f32 %v2000, %v2017
        %v2019 = vadd.f32 %v2018, 0.4994258
        %v2020 = vmul.f32 %v2000, %v2019
        %v2021 = vadd.f32 %v2020, 1.0
        %v2022 = vrcp.pop %v2021
        %v2023 = vmul.f32 %v2021, %v2022
        %v2024 = vsub.f32 1.0, %v2023
        %v2025 = vmul.f32 %v2022, %v2024
        %v2026 = vadd.f32 %v2022, %v2025
        %vm2027 = vweird.f32 %v2021
        %vm2028 = vweird.f32 %v2022
        %vm2029 = vmor %vm2027, %vm2028
        %v2030 = vsel %vm2029, %v2022, %v2026
        %v2031 = vand.u32 2147483647, %v2021
        %vm2032 = vcmp.eq.f32.partialorder %v2031, 8.507059e+37
        %v2033 = vand.u32 %v2021, 2147483648
        %v2034 = vor.u32 1.1754944e-38, %v2033
        %v2035 = vsel %vm2032, %v2034, %v2030
        %v2036 = vmul.f32 %v2011, %v2035
        %v2037 = vmin.f32 %v2036, 1.0
        %v2038 = vmax.f32 %v2037, -1.0
        %v2039 = vmul.f32 %v876, %v876
        %v2040 = vmin.f32 16.0, %v2039
        %v2041 = vmul.f32 %v2040, 2.1237322e-06
        %v2042 = vadd.f32 %v2041, 0.00028619796
        %v2043 = vmul.f32 %v2040, %v2042
        %v2044 = vadd.f32 %v2043, 0.0036580483
        %v2045 = vmul.f32 %v2040, %v2044
        %v2046 = vadd.f32 %v2045, 0.05243302
        %v2047 = vmul.f32 %v2040, %v2046
        %v2048 = vadd.f32 %v2047, 0.18741608
        %v2049 = vmul.f32 %v2040, %v2048
        %v2050 = vadd.f32 %v2049, 1.1283791
        %v2051 = vmul.f32 %v876, %v2050
        %v2052 = vmul.f32 %v2040, 3.8918573e-05
        %v2053 = vadd.f32 %v2052, 0.001143296
        %v2054 = vmul.f32 %v2040, %v2053
        %v2055 = vadd.f32 %v2054, 0.014752088
        %v2056 = vmul.f32 %v2040, %v2055
        %v2057 = vadd.f32 %v2056, 0.112945676
        %v2058 = vmul.f32 %v2040, %v2057
        %v2059 = vadd.f32 %v2058, 0.4994258
        %v2060 = vmul.f32 %v2040, %v2059
        %v2061 = vadd.f32 %v2060, 1.0
        %v2062 = vrcp.pop %v2061
        %v2063 = vmul.f32 %v2061, %v2062
        %v2064 = vsub.f32 1.0, %v2063
        %v2065 = vmul.f32 %v2062, %v2064
        %v2066 = vadd.f32 %v2062, %v2065
        %vm2067 = vweird.f32 %v2061
        %vm2068 = vweird.f32 %v2062
        %vm2069 = vmor %vm2067, %vm2068
        %v2070 = vsel %vm2069, %v2062, %v2066
        %v2071 = vand.u32 2147483647, %v2061
        %vm2072 = vcmp.eq.f32.partialorder %v2071, 8.507059e+37
        %v2073 = vand.u32 %v2061, 2147483648
        %v2074 = vor.u32 1.1754944e-38, %v2073
        %v2075 = vsel %vm2072, %v2074, %v2070
        %v2076 = vmul.f32 %v2051, %v2075
        %v2077 = vmin.f32 %v2076, 1.0
        %v2078 = vmax.f32 %v2077, -1.0
        %v2079 = vmul.f32 %v877, %v877
        %v2080 = vmin.f32 16.0, %v2079
        %v2081 = vmul.f32 %v2080, 2.1237322e-06
        %v2082 = vadd.f32 %v2081, 0.00028619796
        %v2083 = vmul.f32 %v2080, %v2082
        %v2084 = vadd.f32 %v2083, 0.0036580483
        %v2085 = vmul.f32 %v2080, %v2084
        %v2086 = vadd.f32 %v2085, 0.05243302
        %v2087 = vmul.f32 %v2080, %v2086
        %v2088 = vadd.f32 %v2087, 0.18741608
        %v2089 = vmul.f32 %v2080, %v2088
        %v2090 = vadd.f32 %v2089, 1.1283791
        %v2091 = vmul.f32 %v877, %v2090
        %v2092 = vmul.f32 %v2080, 3.8918573e-05
        %v2093 = vadd.f32 %v2092, 0.001143296
        %v2094 = vmul.f32 %v2080, %v2093
        %v2095 = vadd.f32 %v2094, 0.014752088
        %v2096 = vmul.f32 %v2080, %v2095
        %v2097 = vadd.f32 %v2096, 0.112945676
        %v2098 = vmul.f32 %v2080, %v2097
        %v2099 = vadd.f32 %v2098, 0.4994258
        %v2100 = vmul.f32 %v2080, %v2099
        %v2101 = vadd.f32 %v2100, 1.0
        %v2102 = vrcp.pop %v2101
        %v2103 = vmul.f32 %v2101, %v2102
        %v2104 = vsub.f32 1.0, %v2103
        %v2105 = vmul.f32 %v2102, %v2104
        %v2106 = vadd.f32 %v2102, %v2105
        %vm2107 = vweird.f32 %v2101
        %vm2108 = vweird.f32 %v2102
        %vm2109 = vmor %vm2107, %vm2108
        %v2110 = vsel %vm2109, %v2102, %v2106
        %v2111 = vand.u32 2147483647, %v2101
        %vm2112 = vcmp.eq.f32.partialorder %v2111, 8.507059e+37
        %v2113 = vand.u32 %v2101, 2147483648
        %v2114 = vor.u32 1.1754944e-38, %v2113
        %v2115 = vsel %vm2112, %v2114, %v2110
        %v2116 = vmul.f32 %v2091, %v2115
        %v2117 = vmin.f32 %v2116, 1.0
        %v2118 = vmax.f32 %v2117, -1.0
        %v2119 = vmul.f32 %v878, %v878
        %v2120 = vmin.f32 16.0, %v2119
        %v2121 = vmul.f32 %v2120, 2.1237322e-06
        %v2122 = vadd.f32 %v2121, 0.00028619796
        %v2123 = vmul.f32 %v2120, %v2122
        %v2124 = vadd.f32 %v2123, 0.0036580483
        %v2125 = vmul.f32 %v2120, %v2124
        %v2126 = vadd.f32 %v2125, 0.05243302
        %v2127 = vmul.f32 %v2120, %v2126
        %v2128 = vadd.f32 %v2127, 0.18741608
        %v2129 = vmul.f32 %v2120, %v2128
        %v2130 = vadd.f32 %v2129, 1.1283791
        %v2131 = vmul.f32 %v878, %v2130
        %v2132 = vmul.f32 %v2120, 3.8918573e-05
        %v2133 = vadd.f32 %v2132, 0.001143296
        %v2134 = vmul.f32 %v2120, %v2133
        %v2135 = vadd.f32 %v2134, 0.014752088
        %v2136 = vmul.f32 %v2120, %v2135
        %v2137 = vadd.f32 %v2136, 0.112945676
        %v2138 = vmul.f32 %v2120, %v2137
        %v2139 = vadd.f32 %v2138, 0.4994258
        %v2140 = vmul.f32 %v2120, %v2139
        %v2141 = vadd.f32 %v2140, 1.0
        %v2142 = vrcp.pop %v2141
        %v2143 = vmul.f32 %v2141, %v2142
        %v2144 = vsub.f32 1.0, %v2143
        %v2145 = vmul.f32 %v2142, %v2144
        %v2146 = vadd.f32 %v2142, %v2145
        %vm2147 = vweird.f32 %v2141
        %vm2148 = vweird.f32 %v2142
        %vm2149 = vmor %vm2147, %vm2148
        %v2150 = vsel %vm2149, %v2142, %v2146
        %v2151 = vand.u32 2147483647, %v2141
        %vm2152 = vcmp.eq.f32.partialorder %v2151, 8.507059e+37
        %v2153 = vand.u32 %v2141, 2147483648
        %v2154 = vor.u32 1.1754944e-38, %v2153
        %v2155 = vsel %vm2152, %v2154, %v2150
        %v2156 = vmul.f32 %v2131, %v2155
        %v2157 = vmin.f32 %v2156, 1.0
        %v2158 = vmax.f32 %v2157, -1.0
        %v2159 = vadd.f32 %v918, 1.0
        %v2160 = vadd.f32 %v958, 1.0
        %v2161 = vadd.f32 %v998, 1.0
        %v2162 = vadd.f32 %v1038, 1.0
        %v2163 = vadd.f32 %v1078, 1.0
        %v2164 = vadd.f32 %v1118, 1.0
        %v2165 = vadd.f32 %v1158, 1.0
        %v2166 = vadd.f32 %v1198, 1.0
        %v2167 = vadd.f32 %v1238, 1.0
        %v2168 = vadd.f32 %v1278, 1.0
        %v2169 = vadd.f32 %v1318, 1.0
        %v2170 = vadd.f32 %v1358, 1.0
        %v2171 = vadd.f32 %v1398, 1.0
        %v2172 = vadd.f32 %v1438, 1.0
        %v2173 = vadd.f32 %v1478, 1.0
        %v2174 = vadd.f32 %v1518, 1.0
        %v2175 = vadd.f32 %v1558, 1.0
        %v2176 = vadd.f32 %v1598, 1.0
        %v2177 = vadd.f32 %v1638, 1.0
        %v2178 = vadd.f32 %v1678, 1.0
        %v2179 = vadd.f32 %v1718, 1.0
        %v2180 = vadd.f32 %v1758, 1.0
        %v2181 = vadd.f32 %v1798, 1.0
        %v2182 = vadd.f32 %v1838, 1.0
        %v2183 = vadd.f32 %v1878, 1.0
        %v2184 = vadd.f32 %v1918, 1.0
        %v2185 = vadd.f32 %v1958, 1.0
        %v2186 = vadd.f32 %v1998, 1.0
        %v2187 = vadd.f32 %v2038, 1.0
        %v2188 = vadd.f32 %v2078, 1.0
        %v2189 = vadd.f32 %v2118, 1.0
        %v2190 = vadd.f32 %v2158, 1.0
        %v2191 = vmul.f32 %v815, %v2159
        %v2192 = vmul.f32 %v816, %v2160
        %v2193 = vmul.f32 %v817, %v2161
        %v2194 = vmul.f32 %v818, %v2162
        %v2195 = vmul.f32 %v819, %v2163
        %v2196 = vmul.f32 %v820, %v2164
        %v2197 = vmul.f32 %v821, %v2165
        %v2198 = vmul.f32 %v822, %v2166
        %v2199 = vmul.f32 %v823, %v2167
        %v2200 = vmul.f32 %v824, %v2168
        %v2201 = vmul.f32 %v825, %v2169
        %v2202 = vmul.f32 %v826, %v2170
        %v2203 = vmul.f32 %v827, %v2171
        %v2204 = vmul.f32 %v828, %v2172
        %v2205 = vmul.f32 %v829, %v2173
        %v2206 = vmul.f32 %v830, %v2174
        %v2207 = vmul.f32 %v831, %v2175
        %v2208 = vmul.f32 %v832, %v2176
        %v2209 = vmul.f32 %v833, %v2177
        %v2210 = vmul.f32 %v834, %v2178
        %v2211 = vmul.f32 %v835, %v2179
        %v2212 = vmul.f32 %v836, %v2180
        %v2213 = vmul.f32 %v837, %v2181
        %v2214 = vmul.f32 %v838, %v2182
        %v2215 = vmul.f32 %v839, %v2183
        %v2216 = vmul.f32 %v840, %v2184
        %v2217 = vmul.f32 %v841, %v2185
        %v2218 = vmul.f32 %v842, %v2186
        %v2219 = vmul.f32 %v843, %v2187
        %v2220 = vmul.f32 %v844, %v2188
        %v2221 = vmul.f32 %v845, %v2189
        %v2222 = vmul.f32 %v846, %v2190
        %v2223 = vpack.c.bf16 %v2192, %v2191
        %v2224 = vpack.c.bf16 %v2194, %v2193
        %v2225 = vpack.c.bf16 %v2196, %v2195
        %v2226 = vpack.c.bf16 %v2198, %v2197
        %v2227 = vpack.c.bf16 %v2200, %v2199
        %v2228 = vpack.c.bf16 %v2202, %v2201
        %v2229 = vpack.c.bf16 %v2204, %v2203
        %v2230 = vpack.c.bf16 %v2206, %v2205
        %v2231 = vpack.c.bf16 %v2208, %v2207
        %v2232 = vpack.c.bf16 %v2210, %v2209
        %v2233 = vpack.c.bf16 %v2212, %v2211
        %v2234 = vpack.c.bf16 %v2214, %v2213
        %v2235 = vpack.c.bf16 %v2216, %v2215
        %v2236 = vpack.c.bf16 %v2218, %v2217
        %v2237 = vpack.c.bf16 %v2220, %v2219
        %v2238 = vpack.c.bf16 %v2222, %v2221
        %2239 = vst [vmem:[%s230] sm:$0xff] %v2223
        %2240 = vst [vmem:[%s230 + $0x8] sm:$0xff] %v2224
        %2241 = vst [vmem:[%s230 + $0x10] sm:$0xff] %v2225
        %2242 = vst [vmem:[%s230 + $0x18] sm:$0xff] %v2226
        %2243 = vst [vmem:[%s230 + $0x20] sm:$0xff] %v2227
        %2244 = vst [vmem:[%s230 + $0x28] sm:$0xff] %v2228
        %2245 = vst [vmem:[%s230 + $0x30] sm:$0xff] %v2229
        %2246 = vst [vmem:[%s230 + $0x38] sm:$0xff] %v2230
        %2247 = vst [vmem:[%s230 + $0x40] sm:$0xff] %v2231
        %2248 = vst [vmem:[%s230 + $0x48] sm:$0xff] %v2232
        %2249 = vst [vmem:[%s230 + $0x50] sm:$0xff] %v2233
        %2250 = vst [vmem:[%s230 + $0x58] sm:$0xff] %v2234
        %2251 = vst [vmem:[%s230 + $0x60] sm:$0xff] %v2235
        %2252 = vst [vmem:[%s230 + $0x68] sm:$0xff] %v2236
        %2253 = vst [vmem:[%s230 + $0x70] sm:$0xff] %v2237
        %2254 = vst [vmem:[%s230 + $0x78] sm:$0xff] %v2238
        %s2255 = sand.u32 %s117, 1
        %s2256 = sand.u32 %s117, 1
        %s2257 = smul.addr %s2256, 128
        %s2258 = scalar_lea.vmem [#allocation4], %s2257
        // Predicated region
        $region37: #{bioclinicalbert_ft_forward.15} parent=31 // pred_check
          %p2259 = pneg %p127
        $region38: #{bioclinicalbert_ft_forward.15} parent=31 // pred_check_branch
          %2261 = sbr.rel (%p2259) target = $region40
        $region39: #{bioclinicalbert_ft_forward.15} parent=31 // pred_region
          %s2262 = smul.u32 4, %s21
          %s2263 = smul.u32 8, %s22
          %s2264 = smul.addr %s2262, 16
          %s2265 = sadd.s32 %s2263, %s2264
          %s2266 = smul.addr %s2265, 4
          %s2267 = scalar_lea.vmem %s3, %s2266
          // Predicated region
          $region41: #{bioclinicalbert_ft_forward.15} parent=39 // pred_check
            _
          $region42: #{bioclinicalbert_ft_forward.15} parent=39 // pred_check_branch
            %2269 = sbr.rel (0) target = $region44
          $region43: #{bioclinicalbert_ft_forward.15} parent=39 // pred_region
            // Predicated region
            $region45: #{bioclinicalbert_ft_forward.15} parent=43 // pred_check
              _
            $region46: #{bioclinicalbert_ft_forward.15} parent=43 // pred_check_branch
              %2271 = sbr.rel (0) target = $region48
            $region47: #{bioclinicalbert_ft_forward.15} parent=43 // pred_region
              loop: start=0, step=1, limit=1
              $region49: #{bioclinicalbert_ft_forward.15} parent=47 // loop_pre_header
                _
              $region50: #{bioclinicalbert_ft_forward.15} parent=47 // loop_header
                %s2273 = sphi 0, %s2277
                %p2274 = scmp.ge.s32.totalorder %s2273, 1
                %s2278 = sphi %s2258, %s2258
                %s2279 = sphi %s2267, %s2267
              $region51: #{bioclinicalbert_ft_forward.15} parent=47 // loop_header_branch
                %2276 = sbr.rel (%p2274) target = $region55
              $region52: #{bioclinicalbert_ft_forward.15} parent=47 // loop_body
                %v2280 = vld [vmem:[%s2278] sm:$0xff]
                %2281 = vst [vmem:[%s2279] sm:$0xff] %v2280
                %v2282 = vld [vmem:[%s2278 + $0x8] sm:$0xff]
                %2283 = vst [vmem:[%s2279 + $0x8] sm:$0xff] %v2282
                %v2284 = vld [vmem:[%s2278 + $0x10] sm:$0xff]
                %2285 = vst [vmem:[%s2279 + $0x10] sm:$0xff] %v2284
                %v2286 = vld [vmem:[%s2278 + $0x18] sm:$0xff]
                %2287 = vst [vmem:[%s2279 + $0x18] sm:$0xff] %v2286
                %v2288 = vld [vmem:[%s2278 + $0x20] sm:$0xff]
                %2289 = vst [vmem:[%s2279 + $0x40] sm:$0xff] %v2288
                %v2290 = vld [vmem:[%s2278 + $0x28] sm:$0xff]
                %2291 = vst [vmem:[%s2279 + $0x48] sm:$0xff] %v2290
                %v2292 = vld [vmem:[%s2278 + $0x30] sm:$0xff]
                %2293 = vst [vmem:[%s2279 + $0x50] sm:$0xff] %v2292
                %v2294 = vld [vmem:[%s2278 + $0x38] sm:$0xff]
                %2295 = vst [vmem:[%s2279 + $0x58] sm:$0xff] %v2294
                %v2296 = vld [vmem:[%s2278 + $0x40] sm:$0xff]
                %2297 = vst [vmem:[%s2279 + $0x80] sm:$0xff] %v2296
                %v2298 = vld [vmem:[%s2278 + $0x48] sm:$0xff]
                %2299 = vst [vmem:[%s2279 + $0x88] sm:$0xff] %v2298
                %v2300 = vld [vmem:[%s2278 + $0x50] sm:$0xff]
                %2301 = vst [vmem:[%s2279 + $0x90] sm:$0xff] %v2300
                %v2302 = vld [vmem:[%s2278 + $0x58] sm:$0xff]
                %2303 = vst [vmem:[%s2279 + $0x98] sm:$0xff] %v2302
                %v2304 = vld [vmem:[%s2278 + $0x60] sm:$0xff]
                %2305 = vst [vmem:[%s2279 + $0xc0] sm:$0xff] %v2304
                %v2306 = vld [vmem:[%s2278 + $0x68] sm:$0xff]
                %2307 = vst [vmem:[%s2279 + $0xc8] sm:$0xff] %v2306
                %v2308 = vld [vmem:[%s2278 + $0x70] sm:$0xff]
                %2309 = vst [vmem:[%s2279 + $0xd0] sm:$0xff] %v2308
                %v2310 = vld [vmem:[%s2278 + $0x78] sm:$0xff]
                %2311 = vst [vmem:[%s2279 + $0xd8] sm:$0xff] %v2310
              $region53: #{bioclinicalbert_ft_forward.15} parent=47 // loop_footer
                %s2277 = sadd.s32 1, %s2273
              $region54: #{bioclinicalbert_ft_forward.15} parent=47 // loop_footer_branch
                %2272 = sbr.rel target = $region50
              $region55: #{bioclinicalbert_ft_forward.15} parent=47 // loop_exit
                _
            $region48: #{bioclinicalbert_ft_forward.15} parent=43 // pred_fallthru
              _
            // Predicated region
            $region56: #{bioclinicalbert_ft_forward.15} parent=43 // pred_check
              _
            $region57: #{bioclinicalbert_ft_forward.15} parent=43 // pred_check_branch
              %2313 = sbr.rel target = $region59
            $region58: #{bioclinicalbert_ft_forward.15} parent=43 // pred_region
              _
            $region59: #{bioclinicalbert_ft_forward.15} parent=43 // pred_fallthru
              _
          $region44: #{bioclinicalbert_ft_forward.15} parent=39 // pred_fallthru
            _
          %2314 = vnop
        $region40: #{bioclinicalbert_ft_forward.15} parent=31 // pred_fallthru
          _
      $region32: #{bioclinicalbert_ft_forward.15} parent=5 // pred_fallthru
        _
      %p2315 = scmp.le.s32.totalorder 2, %s12
      // Predicated region
      $region60: #{bioclinicalbert_ft_forward.15} parent=5 // pred_check
        %p2316 = pneg %p2315
      $region61: #{bioclinicalbert_ft_forward.15} parent=5 // pred_check_branch
        %2318 = sbr.rel (%p2316) target = $region63
      $region62: #{bioclinicalbert_ft_forward.15} parent=5 // pred_region
        %s2319 = ssub.s32 %s12, 2
        // Predicated region
        $region64: #{bioclinicalbert_ft_forward.15} parent=62 // pred_check
          %p2320 = pneg %p133
        $region65: #{bioclinicalbert_ft_forward.15} parent=62 // pred_check_branch
          %2322 = sbr.rel (%p2320) target = $region67
        $region66: #{bioclinicalbert_ft_forward.15} parent=62 // pred_region
          %s2323 = sand.u32 %s118, 1
          %s2324 = sand.u32 %s118, 1
          %s2325 = smul.addr %s2324, 128
          %s2326 = scalar_lea.vmem [#allocation4], %s2325
        $region67: #{bioclinicalbert_ft_forward.15} parent=62 // pred_fallthru
          _
      $region63: #{bioclinicalbert_ft_forward.15} parent=5 // pred_fallthru
        _
    $region6: #{bioclinicalbert_ft_forward.15} parent=1 // loop_footer
      %s16 = sadd.s32 1, %s12
    $region7: #{bioclinicalbert_ft_forward.15} parent=1 // loop_footer_branch
      %11 = sbr.rel target = $region3
    $region8: #{bioclinicalbert_ft_forward.15} parent=1 // loop_exit
      _
    %2327 = vsyncpa [#allocation3], 1
    %s2328 = scalar_lea.sflag [#allocation3], 1
    %2329 = vsyncpa %s2328, 1

// kernel: bioclinicalbert_ft_forward.17
$region0: #{bioclinicalbert_ft_forward.17}
  #allocation0 [shape = 'u32[]', space=smem, size = 0x4, offset = 0x4, fixed_abs, tag = 'smem constant byte address 0x4 - core index']
  #allocation1 [shape = 'u32[72,128]{1,0:T(1,128)}', space=vmem, size = 0x9000, scoped, tag = 'internal scratch']
  %s0 = inlined_call_operand.vmem [shape: bf16[32,128], index: 0, kind: input, shape index: {}]
  %s1 = inlined_call_operand.hbm [shape: bf16[128,384], index: 1, kind: input, shape index: {}]
  %s2 = inlined_call_operand.vmem [shape: f32[1,384], index: 2, kind: input, shape index: {}]
  %s3 = inlined_call_operand.vmem [shape: bf16[32,384], index: 3, kind: output, shape index: {}]
  %s4 = sld [smem:[#allocation0]]
  $region26: #{bioclinicalbert_ft_forward.17} parent=0
    _
  %s6 = ssub.s32 1, %s4
  %s7 = scalar_select 0, %s6, %s4
  $region1: #{bioclinicalbert_ft_forward.17} parent=0
    #allocation2 [shape = 'u8[98304]{0}', space=vmem, size = 0x18000, scoped, tag = 'input window, operand 1, single buffered']
    #allocation3 [shape = 's32[1]{0}', space=sflag, size = 0x4, scoped, tag = 'scoped memory for bioclinicalbert_ft_forward.17']
    %8 = vsyncpa [#allocation3], 0
    // Predicated region
    $region2: #{bioclinicalbert_ft_forward.17} parent=1 // pred_check
      _
    $region3: #{bioclinicalbert_ft_forward.17} parent=1 // pred_check_branch
      %10 = sbr.rel (0) target = $region5
    $region4: #{bioclinicalbert_ft_forward.17} parent=1 // pred_region
      _
    $region5: #{bioclinicalbert_ft_forward.17} parent=1 // pred_fallthru
      _
    // Predicated region
    $region6: #{bioclinicalbert_ft_forward.17} parent=1 // pred_check
      _
    $region7: #{bioclinicalbert_ft_forward.17} parent=1 // pred_check_branch
      %12 = sbr.rel (0) target = $region9
    $region8: #{bioclinicalbert_ft_forward.17} parent=1 // pred_region
      %14 = vsyncadd [#allocation3], 0
      %s15 = sshll.u32 %s1, 4
      %s16 = int_to_ptr.hbm [resolvable:$true] %s15
      %s17 = sshll.u32 [#allocation2], 4
      %s18 = int_to_ptr.vmem [resolvable:$true] %s17
      %23 = dma.hbm_to_vmem [thread:$0]  %s16, 3072, %s18, [#allocation3], 192, 192, 12
    $region9: #{bioclinicalbert_ft_forward.17} parent=1 // pred_fallthru
      _
    // Predicated region
    $region10: #{bioclinicalbert_ft_forward.17} parent=1 // pred_check
      _
    $region11: #{bioclinicalbert_ft_forward.17} parent=1 // pred_check_branch
      %25 = sbr.rel (0) target = $region13
    $region12: #{bioclinicalbert_ft_forward.17} parent=1 // pred_region
      _
    $region13: #{bioclinicalbert_ft_forward.17} parent=1 // pred_fallthru
      _
    // Predicated region
    $region14: #{bioclinicalbert_ft_forward.17} parent=1 // pred_check
      _
    $region15: #{bioclinicalbert_ft_forward.17} parent=1 // pred_check_branch
      %27 = sbr.rel (0) target = $region17
    $region16: #{bioclinicalbert_ft_forward.17} parent=1 // pred_region
      %29 = dma.done [#allocation3], 3072
    $region17: #{bioclinicalbert_ft_forward.17} parent=1 // pred_fallthru
      _
    %v30 = vld [vmem:[%s0] sm:$0xf]
    %v31 = vld [vmem:[%s0 + $0x4] sm:$0xf]
    %v32 = vld [vmem:[%s0 + $0x8] sm:$0xf]
    %v33 = vld [vmem:[%s0 + $0xc] sm:$0xf]
    %v34 = vld [vmem:[#allocation2] sm:$0xff]
    %v35 = vld [vmem:[#allocation2 + $0x8] sm:$0xf]
    %v36 = vld [vmem:[#allocation2 + $0xc] sm:$0xff]
    %v37 = vld [vmem:[#allocation2 + $0x14] sm:$0xf]
    %v38 = vld [vmem:[#allocation2 + $0x18] sm:$0xff]
    %v39 = vld [vmem:[#allocation2 + $0x20] sm:$0xf]
    %v40 = vld [vmem:[#allocation2 + $0x24] sm:$0xff]
    %v41 = vld [vmem:[#allocation2 + $0x2c] sm:$0xf]
    %v42 = vld [vmem:[#allocation2 + $0x30] sm:$0xff]
    %v43 = vld [vmem:[#allocation2 + $0x38] sm:$0xf]
    %v44 = vld [vmem:[#allocation2 + $0x3c] sm:$0xff]
    %v45 = vld [vmem:[#allocation2 + $0x44] sm:$0xf]
    %v46 = vld [vmem:[#allocation2 + $0x48] sm:$0xff]
    %v47 = vld [vmem:[#allocation2 + $0x50] sm:$0xf]
    %v48 = vld [vmem:[#allocation2 + $0x54] sm:$0xff]
    %v49 = vld [vmem:[#allocation2 + $0x5c] sm:$0xf]
    %v50 = vld [vmem:[#allocation2 + $0x60] sm:$0xff]
    %v51 = vld [vmem:[#allocation2 + $0x68] sm:$0xf]
    %v52 = vld [vmem:[#allocation2 + $0x6c] sm:$0xff]
    %v53 = vld [vmem:[#allocation2 + $0x74] sm:$0xf]
    %v54 = vld [vmem:[#allocation2 + $0x78] sm:$0xff]
    %v55 = vld [vmem:[#allocation2 + $0x80] sm:$0xf]
    %v56 = vld [vmem:[#allocation2 + $0x84] sm:$0xff]
    %v57 = vld [vmem:[#allocation2 + $0x8c] sm:$0xf]
    %v58 = vld [vmem:[#allocation2 + $0x90] sm:$0xff]
    %v59 = vld [vmem:[#allocation2 + $0x98] sm:$0xf]
    %v60 = vld [vmem:[#allocation2 + $0x9c] sm:$0xff]
    %v61 = vld [vmem:[#allocation2 + $0xa4] sm:$0xf]
    %v62 = vld [vmem:[#allocation2 + $0xa8] sm:$0xff]
    %v63 = vld [vmem:[#allocation2 + $0xb0] sm:$0xf]
    %v64 = vld [vmem:[#allocation2 + $0xb4] sm:$0xff]
    %v65 = vld [vmem:[#allocation2 + $0xbc] sm:$0xf]
    %v66 = vld [vmem:[%s2] sm:$0x7]
    %v68 = vperm.slane %v66, 0
    %v69 = vperm.slane %v66, 1
    %v70 = vperm.slane %v66, 2
    %v78 = vunpack.c.l.b16 %v30
    %v79 = vunpack.c.l.b16 %v31
    %v80 = vunpack.c.l.b16 %v32
    %v81 = vunpack.c.l.b16 %v33
    %v82 = vpack.c.b16 %v79, %v78
    %v83 = vpack.c.b16 %v81, %v80
    %v118 = vunpack.c.l.b16 %v34
    %v119 = vunpack.c.h.b16 %v34
    %v120 = vunpack.c.l.b16 %v35
    %v121 = vunpack.c.l.b16 %v36
    %v122 = vunpack.c.h.b16 %v36
    %v123 = vunpack.c.l.b16 %v37
    %v124 = vunpack.c.l.b16 %v38
    %v125 = vunpack.c.h.b16 %v38
    %v126 = vunpack.c.l.b16 %v39
    %v127 = vunpack.c.l.b16 %v40
    %v128 = vunpack.c.h.b16 %v40
    %v129 = vunpack.c.l.b16 %v41
    %v130 = vunpack.c.l.b16 %v42
    %v131 = vunpack.c.h.b16 %v42
    %v132 = vunpack.c.l.b16 %v43
    %v133 = vunpack.c.l.b16 %v44
    %v134 = vunpack.c.h.b16 %v44
    %v135 = vunpack.c.l.b16 %v45
    %v136 = vunpack.c.l.b16 %v46
    %v137 = vunpack.c.h.b16 %v46
    %v138 = vunpack.c.l.b16 %v47
    %v139 = vunpack.c.l.b16 %v48
    %v140 = vunpack.c.h.b16 %v48
    %v141 = vunpack.c.l.b16 %v49
    %v142 = vunpack.c.l.b16 %v50
    %v143 = vunpack.c.h.b16 %v50
    %v144 = vunpack.c.l.b16 %v51
    %v145 = vunpack.c.l.b16 %v52
    %v146 = vunpack.c.h.b16 %v52
    %v147 = vunpack.c.l.b16 %v53
    %v148 = vunpack.c.l.b16 %v54
    %v149 = vunpack.c.h.b16 %v54
    %v150 = vunpack.c.l.b16 %v55
    %v151 = vunpack.c.l.b16 %v56
    %v152 = vunpack.c.h.b16 %v56
    %v153 = vunpack.c.l.b16 %v57
    %v154 = vunpack.c.l.b16 %v58
    %v155 = vunpack.c.h.b16 %v58
    %v156 = vunpack.c.l.b16 %v59
    %v157 = vunpack.c.l.b16 %v60
    %v158 = vunpack.c.h.b16 %v60
    %v159 = vunpack.c.l.b16 %v61
    %v160 = vunpack.c.l.b16 %v62
    %v161 = vunpack.c.h.b16 %v62
    %v162 = vunpack.c.l.b16 %v63
    %v163 = vunpack.c.l.b16 %v64
    %v164 = vunpack.c.h.b16 %v64
    %v165 = vunpack.c.l.b16 %v65
    %v166 = vpack.c.b16 %v121, %v118
    %v167 = vpack.c.b16 %v122, %v119
    %v168 = vpack.c.b16 %v123, %v120
    %v169 = vpack.c.b16 %v127, %v124
    %v170 = vpack.c.b16 %v128, %v125
    %v171 = vpack.c.b16 %v129, %v126
    %v172 = vpack.c.b16 %v133, %v130
    %v173 = vpack.c.b16 %v134, %v131
    %v174 = vpack.c.b16 %v135, %v132
    %v175 = vpack.c.b16 %v139, %v136
    %v176 = vpack.c.b16 %v140, %v137
    %v177 = vpack.c.b16 %v141, %v138
    %v178 = vpack.c.b16 %v145, %v142
    %v179 = vpack.c.b16 %v146, %v143
    %v180 = vpack.c.b16 %v147, %v144
    %v181 = vpack.c.b16 %v151, %v148
    %v182 = vpack.c.b16 %v152, %v149
    %v183 = vpack.c.b16 %v153, %v150
    %v184 = vpack.c.b16 %v157, %v154
    %v185 = vpack.c.b16 %v158, %v155
    %v186 = vpack.c.b16 %v159, %v156
    %v187 = vpack.c.b16 %v163, %v160
    %v188 = vpack.c.b16 %v164, %v161
    %v189 = vpack.c.b16 %v165, %v162
    %214 = vmatpush.bf16.msra.mxu0 %v187
    %215 = vmatpush.bf16.msra.mxu0 %v184
    %216 = vmatpush.bf16.msra.mxu0 %v181
    %217 = vmatpush.bf16.msra.mxu0 %v178
    %218 = vmatpush.bf16.msra.mxu0 %v175
    %219 = vmatpush.bf16.msra.mxu0 %v172
    %220 = vmatpush.bf16.msra.mxu0 %v169
    %221 = vmatpush.bf16.msra.mxu0 %v166
    %222 = vmatmul.bf16.gmra.mxu0 %v82
    %v223 = vpop.f32.mrf.mxu0
    %v224 = vadd.f32 %v68, %v223
    %v225 = vpop.f32.mrf.mxu0
    %v226 = vadd.f32 %v68, %v225
    %227 = vmatmul.bf16.gmra.mxu0 %v83
    %v228 = vpop.f32.mrf.mxu0
    %v229 = vadd.f32 %v68, %v228
    %v230 = vpop.f32.mrf.mxu0
    %v231 = vadd.f32 %v68, %v230
    %232 = vdwg.mxu0
    %233 = vmatpush.bf16.msra.mxu0 %v188
    %234 = vmatpush.bf16.msra.mxu0 %v185
    %235 = vmatpush.bf16.msra.mxu0 %v182
    %236 = vmatpush.bf16.msra.mxu0 %v179
    %237 = vmatpush.bf16.msra.mxu0 %v176
    %238 = vmatpush.bf16.msra.mxu0 %v173
    %239 = vmatpush.bf16.msra.mxu0 %v170
    %240 = vmatpush.bf16.msra.mxu0 %v167
    %241 = vmatmul.bf16.gmra.mxu0 %v82
    %v242 = vpop.f32.mrf.mxu0
    %v243 = vadd.f32 %v69, %v242
    %v244 = vpop.f32.mrf.mxu0
    %v245 = vadd.f32 %v69, %v244
    %246 = vmatmul.bf16.gmra.mxu0 %v83
    %v247 = vpop.f32.mrf.mxu0
    %v248 = vadd.f32 %v69, %v247
    %v249 = vpop.f32.mrf.mxu0
    %v250 = vadd.f32 %v69, %v249
    %251 = vdwg.mxu0
    %252 = vmatpush.bf16.msra.mxu0 %v189
    %253 = vmatpush.bf16.msra.mxu0 %v186
    %254 = vmatpush.bf16.msra.mxu0 %v183
    %255 = vmatpush.bf16.msra.mxu0 %v180
    %256 = vmatpush.bf16.msra.mxu0 %v177
    %257 = vmatpush.bf16.msra.mxu0 %v174
    %258 = vmatpush.bf16.msra.mxu0 %v171
    %259 = vmatpush.bf16.msra.mxu0 %v168
    %260 = vmatmul.bf16.gmra.mxu0 %v82
    %v261 = vpop.f32.mrf.mxu0
    %v262 = vadd.f32 %v70, %v261
    %v263 = vpop.f32.mrf.mxu0
    %v264 = vadd.f32 %v70, %v263
    %265 = vmatmul.bf16.gmra.mxu0 %v83
    %v266 = vpop.f32.mrf.mxu0
    %v267 = vadd.f32 %v70, %v266
    %v268 = vpop.f32.mrf.mxu0
    %v269 = vadd.f32 %v70, %v268
    %270 = vdwg.mxu0
    %v271 = vpack.c.bf16 %v243, %v224
    %v272 = vpack.c.bf16 %v262, %v262
    %v273 = vpack.c.bf16 %v245, %v226
    %v274 = vpack.c.bf16 %v264, %v264
    %v275 = vpack.c.bf16 %v248, %v229
    %v276 = vpack.c.bf16 %v267, %v267
    %v277 = vpack.c.bf16 %v250, %v231
    %v278 = vpack.c.bf16 %v269, %v269
    %279 = vst [vmem:[%s3] sm:$0xff] %v271
    %280 = vst [vmem:[%s3 + $0x8] sm:$0xf] %v272
    %281 = vst [vmem:[%s3 + $0xc] sm:$0xff] %v273
    %282 = vst [vmem:[%s3 + $0x14] sm:$0xf] %v274
    %283 = vst [vmem:[%s3 + $0x18] sm:$0xff] %v275
    %284 = vst [vmem:[%s3 + $0x20] sm:$0xf] %v276
    %285 = vst [vmem:[%s3 + $0x24] sm:$0xff] %v277
    %286 = vst [vmem:[%s3 + $0x2c] sm:$0xf] %v278
    // Predicated region
    $region18: #{bioclinicalbert_ft_forward.17} parent=1 // pred_check
      _
    $region19: #{bioclinicalbert_ft_forward.17} parent=1 // pred_check_branch
      %288 = sbr.rel (0) target = $region21
    $region20: #{bioclinicalbert_ft_forward.17} parent=1 // pred_region
      _
    $region21: #{bioclinicalbert_ft_forward.17} parent=1 // pred_fallthru
      _
    // Predicated region
    $region22: #{bioclinicalbert_ft_forward.17} parent=1 // pred_check
      _
    $region23: #{bioclinicalbert_ft_forward.17} parent=1 // pred_check_branch
      %290 = sbr.rel (0) target = $region25
    $region24: #{bioclinicalbert_ft_forward.17} parent=1 // pred_region
      _
    $region25: #{bioclinicalbert_ft_forward.17} parent=1 // pred_fallthru
      _
    %291 = vsyncpa [#allocation3], 1

// kernel: bioclinicalbert_ft_forward.16
$region0: #{bioclinicalbert_ft_forward.16}
  #allocation0 [shape = 'u32[]', space=smem, size = 0x4, offset = 0x4, fixed_abs, tag = 'smem constant byte address 0x4 - core index']
  #allocation1 [shape = 'u32[72,128]{1,0:T(1,128)}', space=vmem, size = 0x9000, scoped, tag = 'internal scratch']
  #allocation2 [shape = 'f32[32,128]{1,0:T(8,128)}', space=vmem, size = 0x4000, scoped, tag = 'scratch operand']
  %s0 = inlined_call_operand.vmem [shape: bf16[32,2048], index: 0, kind: input, shape index: {}]
  %s1 = inlined_call_operand.hbm [shape: bf16[2048,128], index: 1, kind: input, shape index: {}]
  %s2 = inlined_call_operand.vmem [shape: f32[1,128], index: 2, kind: input, shape index: {}]
  %s3 = inlined_call_operand.vmem [shape: bf16[32,128], index: 3, kind: input, shape index: {}]
  %s4 = inlined_call_operand.vmem [shape: f32[1,128], index: 4, kind: input, shape index: {}]
  %s5 = inlined_call_operand.vmem [shape: f32[1,128], index: 5, kind: input, shape index: {}]
  %s6 = inlined_call_operand.vmem [shape: bf16[32,128], index: 6, kind: output, shape index: {}]
  %s7 = sld [smem:[#allocation0]]
  $region92: #{bioclinicalbert_ft_forward.16} parent=0
    _
  %s9 = ssub.s32 1, %s7
  %s10 = scalar_select 0, %s9, %s7
  $region1: #{bioclinicalbert_ft_forward.16} parent=0
    #allocation3 [shape = 'u8[131072]{0}', space=vmem, size = 0x20000, scoped, tag = 'input window, operand 0']
    #allocation4 [shape = 'u8[524288]{0}', space=vmem, size = 0x80000, scoped, tag = 'input window, operand 1']
    #allocation5 [shape = 's32[2]{0}', space=sflag, size = 0x8, scoped, tag = 'scoped memory for bioclinicalbert_ft_forward.16']
    %11 = vsyncpa [#allocation5], 0
    %s12 = scalar_lea.sflag [#allocation5], 1
    %13 = vsyncpa %s12, 0
    loop: start=0, step=1, limit=4
    $region2: #{bioclinicalbert_ft_forward.16} parent=1 // loop_pre_header
      _
    $region3: #{bioclinicalbert_ft_forward.16} parent=1 // loop_header
      %s15 = sphi 0, %s19
      %p16 = scmp.ge.s32.totalorder %s15, 4
      %s22 = sphi 0, %s34
      %s23 = sphi 0, %s30
      %s24 = sphi 0, %s22
      %s25 = sphi 0, %s23
      %s26 = sphi 0, %s24
      %s27 = sphi 0, %s25
      %s39 = sphi 0, %s41
      %s42 = sphi 0, %s39
      %s43 = sphi 0, %s42
      %s59 = sphi 0, %s43
      %s65 = sphi 0, %s67
      %s68 = sphi 0, %s65
      %s69 = sphi 0, %s68
      %s85 = sphi 0, %s69
      %s89 = sphi 0, %s89
      %s91 = sphi 0, %s89
      %s92 = sphi 0, %s91
      %s106 = sphi 0, %s92
      %s112 = sphi 0, %s114
      %s115 = sphi 0, %s112
      %s116 = sphi 0, %s115
      %s132 = sphi 0, %s116
      %s136 = sphi 0, %s136
      %s138 = sphi 0, %s136
      %s139 = sphi 0, %s138
      %s153 = sphi 0, %s139
      %s157 = sphi 0, %s157
      %s159 = sphi 0, %s157
      %s160 = sphi 0, %s159
      %s174 = sphi 0, %s160
      %s180 = sphi 0, %s182
      %s183 = sphi 0, %s180
      %s184 = sphi 0, %s183
      %s200 = sphi 0, %s184
    $region4: #{bioclinicalbert_ft_forward.16} parent=1 // loop_header_branch
      %18 = sbr.rel (%p16) target = $region8
    $region5: #{bioclinicalbert_ft_forward.16} parent=1 // loop_body
      %s20 = ssub.s32 %s15, 1
      %s21 = ssub.s32 %s15, 2
      %s28 = sadd.s32 1, %s23
      %p29 = scmp.ge.s32.totalorder %s28, 2
      %s30 = scalar_select %p29, 0, %s28
      %s31 = sadd.s32 1, %s22
      %s32 = scalar_select %p29, %s31, %s22
      %p33 = scmp.ge.s32.totalorder %s32, 1
      %s34 = scalar_select %p33, 0, %s32
      %s35 = ssub.s32 %s22, %s34
      %s36 = ssub.s32 %s23, %s30
      %s37 = sor.u32 %s35, %s36
      %p38 = scmp.eq.s32.totalorder %s37, 0
      %s40 = sadd.s32 %s39, 1
      %s41 = scalar_select %p38, %s39, %s40
      %p44 = pneg %p38
      %p45 = scmp.eq.s32.totalorder %s15, 1
      %p46 = por %p44, %p45
      %p47 = scmp.ne.s32.totalorder %s39, %s42
      %p48 = scmp.eq.s32.totalorder %s15, 0
      %p49 = por %p47, %p48
      %p50 = scmp.ne.s32.totalorder %s39, %s42
      %p51 = scmp.eq.s32.totalorder %s20, 1
      %p52 = por %p50, %p51
      %p53 = scmp.ne.s32.totalorder %s42, %s43
      %p54 = scmp.eq.s32.totalorder %s20, 0
      %p55 = por %p53, %p54
      %p56 = scmp.ne.s32.totalorder %s42, %s43
      %p57 = scmp.eq.s32.totalorder %s21, 1
      %p58 = por %p56, %p57
      %p60 = scmp.ne.s32.totalorder %s43, %s59
      %p61 = scmp.eq.s32.totalorder %s21, 0
      %p62 = por %p60, %p61
      %s63 = ssub.s32 %s23, %s30
      %p64 = scmp.eq.s32.totalorder %s63, 0
      %s66 = sadd.s32 %s65, 1
      %s67 = scalar_select %p64, %s65, %s66
      %p70 = pneg %p64
      %p71 = scmp.eq.s32.totalorder %s15, 1
      %p72 = por %p70, %p71
      %p73 = scmp.ne.s32.totalorder %s65, %s68
      %p74 = scmp.eq.s32.totalorder %s15, 0
      %p75 = por %p73, %p74
      %p76 = scmp.ne.s32.totalorder %s65, %s68
      %p77 = scmp.eq.s32.totalorder %s20, 1
      %p78 = por %p76, %p77
      %p79 = scmp.ne.s32.totalorder %s68, %s69
      %p80 = scmp.eq.s32.totalorder %s20, 0
      %p81 = por %p79, %p80
      %p82 = scmp.ne.s32.totalorder %s68, %s69
      %p83 = scmp.eq.s32.totalorder %s21, 1
      %p84 = por %p82, %p83
      %p86 = scmp.ne.s32.totalorder %s69, %s85
      %p87 = scmp.eq.s32.totalorder %s21, 0
      %p88 = por %p86, %p87
      %s90 = sadd.s32 %s89, 1
      %p93 = scmp.eq.s32.totalorder %s15, 1
      %p94 = scmp.ne.s32.totalorder %s89, %s91
      %p95 = scmp.eq.s32.totalorder %s15, 0
      %p96 = por %p94, %p95
      %p97 = scmp.ne.s32.totalorder %s89, %s91
      %p98 = scmp.eq.s32.totalorder %s20, 1
      %p99 = por %p97, %p98
      %p100 = scmp.ne.s32.totalorder %s91, %s92
      %p101 = scmp.eq.s32.totalorder %s20, 0
      %p102 = por %p100, %p101
      %p103 = scmp.ne.s32.totalorder %s91, %s92
      %p104 = scmp.eq.s32.totalorder %s21, 1
      %p105 = por %p103, %p104
      %p107 = scmp.ne.s32.totalorder %s92, %s106
      %p108 = scmp.eq.s32.totalorder %s21, 0
      %p109 = por %p107, %p108
      %s110 = ssub.s32 %s22, %s34
      %p111 = scmp.eq.s32.totalorder %s110, 0
      %s113 = sadd.s32 %s112, 1
      %s114 = scalar_select %p111, %s112, %s113
      %p117 = pneg %p111
      %p118 = scmp.eq.s32.totalorder %s15, 1
      %p119 = por %p117, %p118
      %p120 = scmp.ne.s32.totalorder %s112, %s115
      %p121 = scmp.eq.s32.totalorder %s15, 0
      %p122 = por %p120, %p121
      %p123 = scmp.ne.s32.totalorder %s112, %s115
      %p124 = scmp.eq.s32.totalorder %s20, 1
      %p125 = por %p123, %p124
      %p126 = scmp.ne.s32.totalorder %s115, %s116
      %p127 = scmp.eq.s32.totalorder %s20, 0
      %p128 = por %p126, %p127
      %p129 = scmp.ne.s32.totalorder %s115, %s116
      %p130 = scmp.eq.s32.totalorder %s21, 1
      %p131 = por %p129, %p130
      %p133 = scmp.ne.s32.totalorder %s116, %s132
      %p134 = scmp.eq.s32.totalorder %s21, 0
      %p135 = por %p133, %p134
      %s137 = sadd.s32 %s136, 1
      %p140 = scmp.eq.s32.totalorder %s15, 1
      %p141 = scmp.ne.s32.totalorder %s136, %s138
      %p142 = scmp.eq.s32.totalorder %s15, 0
      %p143 = por %p141, %p142
      %p144 = scmp.ne.s32.totalorder %s136, %s138
      %p145 = scmp.eq.s32.totalorder %s20, 1
      %p146 = por %p144, %p145
      %p147 = scmp.ne.s32.totalorder %s138, %s139
      %p148 = scmp.eq.s32.totalorder %s20, 0
      %p149 = por %p147, %p148
      %p150 = scmp.ne.s32.totalorder %s138, %s139
      %p151 = scmp.eq.s32.totalorder %s21, 1
      %p152 = por %p150, %p151
      %p154 = scmp.ne.s32.totalorder %s139, %s153
      %p155 = scmp.eq.s32.totalorder %s21, 0
      %p156 = por %p154, %p155
      %s158 = sadd.s32 %s157, 1
      %p161 = scmp.eq.s32.totalorder %s15, 1
      %p162 = scmp.ne.s32.totalorder %s157, %s159
      %p163 = scmp.eq.s32.totalorder %s15, 0
      %p164 = por %p162, %p163
      %p165 = scmp.ne.s32.totalorder %s157, %s159
      %p166 = scmp.eq.s32.totalorder %s20, 1
      %p167 = por %p165, %p166
      %p168 = scmp.ne.s32.totalorder %s159, %s160
      %p169 = scmp.eq.s32.totalorder %s20, 0
      %p170 = por %p168, %p169
      %p171 = scmp.ne.s32.totalorder %s159, %s160
      %p172 = scmp.eq.s32.totalorder %s21, 1
      %p173 = por %p171, %p172
      %p175 = scmp.ne.s32.totalorder %s160, %s174
      %p176 = scmp.eq.s32.totalorder %s21, 0
      %p177 = por %p175, %p176
      %s178 = ssub.s32 %s22, %s34
      %p179 = scmp.eq.s32.totalorder %s178, 0
      %s181 = sadd.s32 %s180, 1
      %s182 = scalar_select %p179, %s180, %s181
      %p185 = pneg %p179
      %p186 = scmp.eq.s32.totalorder %s15, 1
      %p187 = por %p185, %p186
      %p188 = scmp.ne.s32.totalorder %s180, %s183
      %p189 = scmp.eq.s32.totalorder %s15, 0
      %p190 = por %p188, %p189
      %p191 = scmp.ne.s32.totalorder %s180, %s183
      %p192 = scmp.eq.s32.totalorder %s20, 1
      %p193 = por %p191, %p192
      %p194 = scmp.ne.s32.totalorder %s183, %s184
      %p195 = scmp.eq.s32.totalorder %s20, 0
      %p196 = por %p194, %p195
      %p197 = scmp.ne.s32.totalorder %s183, %s184
      %p198 = scmp.eq.s32.totalorder %s21, 1
      %p199 = por %p197, %p198
      %p201 = scmp.ne.s32.totalorder %s184, %s200
      %p202 = scmp.eq.s32.totalorder %s21, 0
      %p203 = por %p201, %p202
      %p204 = scmp.le.s32.totalorder 1, %s15
      %p205 = scmp.lt.s32.totalorder %s15, 3
      %p206 = pnand %p204, %p205
      %p207 = pneg %p206
      // Predicated region
      $region9: #{bioclinicalbert_ft_forward.16} parent=5 // pred_check
        _
      $region10: #{bioclinicalbert_ft_forward.16} parent=5 // pred_check_branch
        %209 = sbr.rel (%p206) target = $region12
      $region11: #{bioclinicalbert_ft_forward.16} parent=5 // pred_region
        %s210 = ssub.s32 %s15, 1
        // Predicated region
        $region13: #{bioclinicalbert_ft_forward.16} parent=11 // pred_check
          %p211 = pneg %p102
        $region14: #{bioclinicalbert_ft_forward.16} parent=11 // pred_check_branch
          %213 = sbr.rel (%p211) target = $region16
        $region15: #{bioclinicalbert_ft_forward.16} parent=11 // pred_region
          _
        $region16: #{bioclinicalbert_ft_forward.16} parent=11 // pred_fallthru
          _
        // Predicated region
        $region17: #{bioclinicalbert_ft_forward.16} parent=11 // pred_check
          %p214 = pneg %p128
        $region18: #{bioclinicalbert_ft_forward.16} parent=11 // pred_check_branch
          %216 = sbr.rel (%p214) target = $region20
        $region19: #{bioclinicalbert_ft_forward.16} parent=11 // pred_region
          %s217 = smul.u32 4, %s24
          %p218 = scmp.lt.s32.totalorder %s217, 3
          %s219 = scalar_select %p218, %s217, 3
          %s220 = smul.addr %s219, 4
          %s221 = scalar_lea.vmem %s3, %s220
          %s222 = smul.u32 4, %s24
        $region20: #{bioclinicalbert_ft_forward.16} parent=11 // pred_fallthru
          _
        // Predicated region
        $region21: #{bioclinicalbert_ft_forward.16} parent=11 // pred_check
          %p223 = pneg %p149
        $region22: #{bioclinicalbert_ft_forward.16} parent=11 // pred_check_branch
          %225 = sbr.rel (%p223) target = $region24
        $region23: #{bioclinicalbert_ft_forward.16} parent=11 // pred_region
          _
        $region24: #{bioclinicalbert_ft_forward.16} parent=11 // pred_fallthru
          _
        // Predicated region
        $region25: #{bioclinicalbert_ft_forward.16} parent=11 // pred_check
          %p226 = pneg %p170
        $region26: #{bioclinicalbert_ft_forward.16} parent=11 // pred_check_branch
          %228 = sbr.rel (%p226) target = $region28
        $region27: #{bioclinicalbert_ft_forward.16} parent=11 // pred_region
          _
        $region28: #{bioclinicalbert_ft_forward.16} parent=11 // pred_fallthru
          _
      $region12: #{bioclinicalbert_ft_forward.16} parent=5 // pred_fallthru
        _
      %p229 = scmp.lt.s32.totalorder %s15, 2
      // Predicated region
      $region29: #{bioclinicalbert_ft_forward.16} parent=5 // pred_check
        %p230 = pneg %p229
      $region30: #{bioclinicalbert_ft_forward.16} parent=5 // pred_check_branch
        %232 = sbr.rel (%p230) target = $region32
      $region31: #{bioclinicalbert_ft_forward.16} parent=5 // pred_region
        // Predicated region
        $region33: #{bioclinicalbert_ft_forward.16} parent=31 // pred_check
          %p233 = pneg %p49
        $region34: #{bioclinicalbert_ft_forward.16} parent=31 // pred_check_branch
          %235 = sbr.rel (%p233) target = $region36
        $region35: #{bioclinicalbert_ft_forward.16} parent=31 // pred_region
          %s236 = sand.u32 %s39, 1
          %s237 = sand.u32 %s39, 1
          %s238 = smul.addr %s237, 128
          %s239 = scalar_lea.vmem [#allocation3], %s238
          %s240 = smul.u32 4, %s22
          %s241 = smul.u32 8, %s23
          %s242 = smul.addr %s240, 16
          %s243 = sadd.s32 %s241, %s242
          %s244 = smul.addr %s243, 4
          %s245 = scalar_lea.vmem %s0, %s244
          // Predicated region
          $region37: #{bioclinicalbert_ft_forward.16} parent=35 // pred_check
            _
          $region38: #{bioclinicalbert_ft_forward.16} parent=35 // pred_check_branch
            %247 = sbr.rel (0) target = $region40
          $region39: #{bioclinicalbert_ft_forward.16} parent=35 // pred_region
            // Predicated region
            $region41: #{bioclinicalbert_ft_forward.16} parent=39 // pred_check
              _
            $region42: #{bioclinicalbert_ft_forward.16} parent=39 // pred_check_branch
              %249 = sbr.rel (0) target = $region44
            $region43: #{bioclinicalbert_ft_forward.16} parent=39 // pred_region
              loop: start=0, step=1, limit=1
              $region45: #{bioclinicalbert_ft_forward.16} parent=43 // loop_pre_header
                _
              $region46: #{bioclinicalbert_ft_forward.16} parent=43 // loop_header
                %s251 = sphi 0, %s255
                %p252 = scmp.ge.s32.totalorder %s251, 1
                %s256 = sphi %s245, %s245
                %s257 = sphi %s239, %s239
              $region47: #{bioclinicalbert_ft_forward.16} parent=43 // loop_header_branch
                %254 = sbr.rel (%p252) target = $region51
              $region48: #{bioclinicalbert_ft_forward.16} parent=43 // loop_body
                %v258 = vld [vmem:[%s256] sm:$0xff]
                %259 = vst [vmem:[%s257] sm:$0xff] %v258
                %v260 = vld [vmem:[%s256 + $0x8] sm:$0xff]
                %261 = vst [vmem:[%s257 + $0x8] sm:$0xff] %v260
                %v262 = vld [vmem:[%s256 + $0x10] sm:$0xff]
                %263 = vst [vmem:[%s257 + $0x10] sm:$0xff] %v262
                %v264 = vld [vmem:[%s256 + $0x18] sm:$0xff]
                %265 = vst [vmem:[%s257 + $0x18] sm:$0xff] %v264
                %v266 = vld [vmem:[%s256 + $0x40] sm:$0xff]
                %267 = vst [vmem:[%s257 + $0x20] sm:$0xff] %v266
                %v268 = vld [vmem:[%s256 + $0x48] sm:$0xff]
                %269 = vst [vmem:[%s257 + $0x28] sm:$0xff] %v268
                %v270 = vld [vmem:[%s256 + $0x50] sm:$0xff]
                %271 = vst [vmem:[%s257 + $0x30] sm:$0xff] %v270
                %v272 = vld [vmem:[%s256 + $0x58] sm:$0xff]
                %273 = vst [vmem:[%s257 + $0x38] sm:$0xff] %v272
                %v274 = vld [vmem:[%s256 + $0x80] sm:$0xff]
                %275 = vst [vmem:[%s257 + $0x40] sm:$0xff] %v274
                %v276 = vld [vmem:[%s256 + $0x88] sm:$0xff]
                %277 = vst [vmem:[%s257 + $0x48] sm:$0xff] %v276
                %v278 = vld [vmem:[%s256 + $0x90] sm:$0xff]
                %279 = vst [vmem:[%s257 + $0x50] sm:$0xff] %v278
                %v280 = vld [vmem:[%s256 + $0x98] sm:$0xff]
                %281 = vst [vmem:[%s257 + $0x58] sm:$0xff] %v280
                %v282 = vld [vmem:[%s256 + $0xc0] sm:$0xff]
                %283 = vst [vmem:[%s257 + $0x60] sm:$0xff] %v282
                %v284 = vld [vmem:[%s256 + $0xc8] sm:$0xff]
                %285 = vst [vmem:[%s257 + $0x68] sm:$0xff] %v284
                %v286 = vld [vmem:[%s256 + $0xd0] sm:$0xff]
                %287 = vst [vmem:[%s257 + $0x70] sm:$0xff] %v286
                %v288 = vld [vmem:[%s256 + $0xd8] sm:$0xff]
                %289 = vst [vmem:[%s257 + $0x78] sm:$0xff] %v288
              $region49: #{bioclinicalbert_ft_forward.16} parent=43 // loop_footer
                %s255 = sadd.s32 1, %s251
              $region50: #{bioclinicalbert_ft_forward.16} parent=43 // loop_footer_branch
                %250 = sbr.rel target = $region46
              $region51: #{bioclinicalbert_ft_forward.16} parent=43 // loop_exit
                _
            $region44: #{bioclinicalbert_ft_forward.16} parent=39 // pred_fallthru
              _
            // Predicated region
            $region52: #{bioclinicalbert_ft_forward.16} parent=39 // pred_check
              _
            $region53: #{bioclinicalbert_ft_forward.16} parent=39 // pred_check_branch
              %291 = sbr.rel target = $region55
            $region54: #{bioclinicalbert_ft_forward.16} parent=39 // pred_region
              _
            $region55: #{bioclinicalbert_ft_forward.16} parent=39 // pred_fallthru
              _
          $region40: #{bioclinicalbert_ft_forward.16} parent=35 // pred_fallthru
            _
          %292 = vnop
        $region36: #{bioclinicalbert_ft_forward.16} parent=31 // pred_fallthru
          _
        // Predicated region
        $region56: #{bioclinicalbert_ft_forward.16} parent=31 // pred_check
          %p293 = pneg %p75
        $region57: #{bioclinicalbert_ft_forward.16} parent=31 // pred_check_branch
          %295 = sbr.rel (%p293) target = $region59
        $region58: #{bioclinicalbert_ft_forward.16} parent=31 // pred_region
          %s296 = sand.u32 %s65, 1
          %s297 = scalar_lea.sflag [#allocation5], %s296
          %s298 = sand.u32 %s65, 1
          %s299 = smul.addr %s298, 512
          %s300 = scalar_lea.vmem [#allocation4], %s299
          %s301 = smul.u32 128, %s23
          %303 = vsyncadd %s297, 0
          %s304 = smul.addr %s301, 4
          %s305 = scalar_lea.hbm %s1, %s304
          %s306 = sshll.u32 %s305, 4
          %s307 = int_to_ptr.hbm [resolvable:$true] %s306
          %s308 = sshll.u32 %s300, 4
          %s309 = int_to_ptr.vmem [resolvable:$true] %s308
          %314 = dma.hbm_to_vmem [thread:$0]  %s307, 8192, %s309, %s297, 64, 64, 4
        $region59: #{bioclinicalbert_ft_forward.16} parent=31 // pred_fallthru
          _
      $region32: #{bioclinicalbert_ft_forward.16} parent=5 // pred_fallthru
        _
      %p315 = scmp.le.s32.totalorder 1, %s15
      %p316 = scmp.lt.s32.totalorder %s15, 3
      %p317 = pnand %p315, %p316
      %p318 = pneg %p317
      // Predicated region
      $region60: #{bioclinicalbert_ft_forward.16} parent=5 // pred_check
        _
      $region61: #{bioclinicalbert_ft_forward.16} parent=5 // pred_check_branch
        %320 = sbr.rel (%p317) target = $region63
      $region62: #{bioclinicalbert_ft_forward.16} parent=5 // pred_region
        %s321 = ssub.s32 %s15, 1
        %s322 = sand.u32 %s42, 1
        %s323 = sand.u32 %s42, 1
        %s324 = smul.addr %s323, 128
        %s325 = scalar_lea.vmem [#allocation3], %s324
        // Predicated region
        $region64: #{bioclinicalbert_ft_forward.16} parent=62 // pred_check
          %p326 = pneg %p55
        $region65: #{bioclinicalbert_ft_forward.16} parent=62 // pred_check_branch
          %328 = sbr.rel (%p326) target = $region67
        $region66: #{bioclinicalbert_ft_forward.16} parent=62 // pred_region
          _
        $region67: #{bioclinicalbert_ft_forward.16} parent=62 // pred_fallthru
          _
        %s329 = sand.u32 %s68, 1
        %s330 = scalar_lea.sflag [#allocation5], %s329
        %s331 = sand.u32 %s68, 1
        %s332 = smul.addr %s331, 512
        %s333 = scalar_lea.vmem [#allocation4], %s332
        // Predicated region
        $region68: #{bioclinicalbert_ft_forward.16} parent=62 // pred_check
          %p334 = pneg %p81
        $region69: #{bioclinicalbert_ft_forward.16} parent=62 // pred_check_branch
          %336 = sbr.rel (%p334) target = $region71
        $region70: #{bioclinicalbert_ft_forward.16} parent=62 // pred_region
          %338 = dma.done %s330, 8192
        $region71: #{bioclinicalbert_ft_forward.16} parent=62 // pred_fallthru
          _
        %s339 = sand.u32 %s42, 1
        %s340 = sand.u32 %s42, 1
        %s341 = smul.addr %s340, 128
        %s342 = scalar_lea.vmem [#allocation3], %s341
        %p343 = pneg %p55
        %p344 = pneg %p52
        %s345 = sand.u32 %s68, 1
        %s346 = scalar_lea.sflag [#allocation5], %s345
        %s347 = sand.u32 %s68, 1
        %s348 = smul.addr %s347, 512
        %s349 = scalar_lea.vmem [#allocation4], %s348
        %p350 = pneg %p81
        %p351 = pneg %p78
        %p352 = pneg %p102
        %p353 = pneg %p99
        %s354 = smul.u32 4, %s24
        %p355 = scmp.lt.s32.totalorder %s354, 3
        %s356 = scalar_select %p355, %s354, 3
        %s357 = smul.addr %s356, 4
        %s358 = scalar_lea.vmem %s3, %s357
        %p359 = pneg %p128
        %p360 = pneg %p125
        %p361 = pneg %p149
        %p362 = pneg %p146
        %p363 = pneg %p170
        %p364 = pneg %p167
        %p365 = pneg %p196
        %p366 = pneg %p193
        %s367 = smul.u32 4, %s24
        %p368 = scmp.lt.s32.totalorder %s367, 3
        %s369 = scalar_select %p368, %s367, 3
        %s370 = smul.addr %s369, 4
        %s371 = scalar_lea.vmem %s6, %s370
        %s372 = smul.u32 4, %s24
        %s373 = smul.u32 8, %s25
        %s374 = smul.u32 128, %s25
        %s375 = smul.u32 4, %s24
        %p376 = scmp.lt.s32.totalorder %s375, 3
        %s377 = scalar_select %p376, %s375, 3
        %s378 = smul.addr %s377, 4
        %s379 = scalar_lea.vmem %s3, %s378
        %s380 = smul.u32 4, %s24
        %s381 = smul.u32 4, %s24
        %p382 = scmp.lt.s32.totalorder %s381, 3
        %s383 = scalar_select %p382, %s381, 3
        %s384 = smul.addr %s383, 4
        %s385 = scalar_lea.vmem %s6, %s384
        %s386 = smul.u32 4, %s24
        %p387 = scmp.eq.s32.totalorder %s25, 0
        // Predicated region
        $region72: #{bioclinicalbert_ft_forward.16} parent=62 // pred_check
          %p388 = pneg %p387
        $region73: #{bioclinicalbert_ft_forward.16} parent=62 // pred_check_branch
          %390 = sbr.rel (%p388) target = $region75
        $region74: #{bioclinicalbert_ft_forward.16} parent=62 // pred_region
          %391 = vst [vmem:[#allocation2] sm:$0xff] 0.0
          %392 = vst [vmem:[#allocation2 + $0x8] sm:$0xff] 0.0
          %393 = vst [vmem:[#allocation2 + $0x10] sm:$0xff] 0.0
          %394 = vst [vmem:[#allocation2 + $0x18] sm:$0xff] 0.0
        $region75: #{bioclinicalbert_ft_forward.16} parent=62 // pred_fallthru
          _
        %v395 = vld [vmem:[#allocation2] sm:$0xff]
        %v396 = vld [vmem:[#allocation2 + $0x8] sm:$0xff]
        %v397 = vld [vmem:[#allocation2 + $0x10] sm:$0xff]
        %v398 = vld [vmem:[#allocation2 + $0x18] sm:$0xff]
        %v399 = vld [vmem:[%s325] sm:$0xff]
        %v400 = vld [vmem:[%s325 + $0x8] sm:$0xff]
        %v401 = vld [vmem:[%s325 + $0x10] sm:$0xff]
        %v402 = vld [vmem:[%s325 + $0x18] sm:$0xff]
        %v403 = vld [vmem:[%s325 + $0x20] sm:$0xff]
        %v404 = vld [vmem:[%s325 + $0x28] sm:$0xff]
        %v405 = vld [vmem:[%s325 + $0x30] sm:$0xff]
        %v406 = vld [vmem:[%s325 + $0x38] sm:$0xff]
        %v407 = vld [vmem:[%s325 + $0x40] sm:$0xff]
        %v408 = vld [vmem:[%s325 + $0x48] sm:$0xff]
        %v409 = vld [vmem:[%s325 + $0x50] sm:$0xff]
        %v410 = vld [vmem:[%s325 + $0x58] sm:$0xff]
        %v411 = vld [vmem:[%s325 + $0x60] sm:$0xff]
        %v412 = vld [vmem:[%s325 + $0x68] sm:$0xff]
        %v413 = vld [vmem:[%s325 + $0x70] sm:$0xff]
        %v414 = vld [vmem:[%s325 + $0x78] sm:$0xff]
        %v415 = vld [vmem:[%s333] sm:$0xf]
        %v416 = vld [vmem:[%s333 + $0x4] sm:$0xf]
        %v417 = vld [vmem:[%s333 + $0x8] sm:$0xf]
        %v418 = vld [vmem:[%s333 + $0xc] sm:$0xf]
        %v419 = vld [vmem:[%s333 + $0x10] sm:$0xf]
        %v420 = vld [vmem:[%s333 + $0x14] sm:$0xf]
        %v421 = vld [vmem:[%s333 + $0x18] sm:$0xf]
        %v422 = vld [vmem:[%s333 + $0x1c] sm:$0xf]
        %v423 = vld [vmem:[%s333 + $0x20] sm:$0xf]
        %v424 = vld [vmem:[%s333 + $0x24] sm:$0xf]
        %v425 = vld [vmem:[%s333 + $0x28] sm:$0xf]
        %v426 = vld [vmem:[%s333 + $0x2c] sm:$0xf]
        %v427 = vld [vmem:[%s333 + $0x30] sm:$0xf]
        %v428 = vld [vmem:[%s333 + $0x34] sm:$0xf]
        %v429 = vld [vmem:[%s333 + $0x38] sm:$0xf]
        %v430 = vld [vmem:[%s333 + $0x3c] sm:$0xf]
        %v431 = vld [vmem:[%s333 + $0x40] sm:$0xf]
        %v432 = vld [vmem:[%s333 + $0x44] sm:$0xf]
        %v433 = vld [vmem:[%s333 + $0x48] sm:$0xf]
        %v434 = vld [vmem:[%s333 + $0x4c] sm:$0xf]
        %v435 = vld [vmem:[%s333 + $0x50] sm:$0xf]
        %v436 = vld [vmem:[%s333 + $0x54] sm:$0xf]
        %v437 = vld [vmem:[%s333 + $0x58] sm:$0xf]
        %v438 = vld [vmem:[%s333 + $0x5c] sm:$0xf]
        %v439 = vld [vmem:[%s333 + $0x60] sm:$0xf]
        %v440 = vld [vmem:[%s333 + $0x64] sm:$0xf]
        %v441 = vld [vmem:[%s333 + $0x68] sm:$0xf]
        %v442 = vld [vmem:[%s333 + $0x6c] sm:$0xf]
        %v443 = vld [vmem:[%s333 + $0x70] sm:$0xf]
        %v444 = vld [vmem:[%s333 + $0x74] sm:$0xf]
        %v445 = vld [vmem:[%s333 + $0x78] sm:$0xf]
        %v446 = vld [vmem:[%s333 + $0x7c] sm:$0xf]
        %v447 = vld [vmem:[%s333 + $0x80] sm:$0xf]
        %v448 = vld [vmem:[%s333 + $0x84] sm:$0xf]
        %v449 = vld [vmem:[%s333 + $0x88] sm:$0xf]
        %v450 = vld [vmem:[%s333 + $0x8c] sm:$0xf]
        %v451 = vld [vmem:[%s333 + $0x90] sm:$0xf]
        %v452 = vld [vmem:[%s333 + $0x94] sm:$0xf]
        %v453 = vld [vmem:[%s333 + $0x98] sm:$0xf]
        %v454 = vld [vmem:[%s333 + $0x9c] sm:$0xf]
        %v455 = vld [vmem:[%s333 + $0xa0] sm:$0xf]
        %v456 = vld [vmem:[%s333 + $0xa4] sm:$0xf]
        %v457 = vld [vmem:[%s333 + $0xa8] sm:$0xf]
        %v458 = vld [vmem:[%s333 + $0xac] sm:$0xf]
        %v459 = vld [vmem:[%s333 + $0xb0] sm:$0xf]
        %v460 = vld [vmem:[%s333 + $0xb4] sm:$0xf]
        %v461 = vld [vmem:[%s333 + $0xb8] sm:$0xf]
        %v462 = vld [vmem:[%s333 + $0xbc] sm:$0xf]
        %v463 = vld [vmem:[%s333 + $0xc0] sm:$0xf]
        %v464 = vld [vmem:[%s333 + $0xc4] sm:$0xf]
        %v465 = vld [vmem:[%s333 + $0xc8] sm:$0xf]
        %v466 = vld [vmem:[%s333 + $0xcc] sm:$0xf]
        %v467 = vld [vmem:[%s333 + $0xd0] sm:$0xf]
        %v468 = vld [vmem:[%s333 + $0xd4] sm:$0xf]
        %v469 = vld [vmem:[%s333 + $0xd8] sm:$0xf]
        %v470 = vld [vmem:[%s333 + $0xdc] sm:$0xf]
        %v471 = vld [vmem:[%s333 + $0xe0] sm:$0xf]
        %v472 = vld [vmem:[%s333 + $0xe4] sm:$0xf]
        %v473 = vld [vmem:[%s333 + $0xe8] sm:$0xf]
        %v474 = vld [vmem:[%s333 + $0xec] sm:$0xf]
        %v475 = vld [vmem:[%s333 + $0xf0] sm:$0xf]
        %v476 = vld [vmem:[%s333 + $0xf4] sm:$0xf]
        %v477 = vld [vmem:[%s333 + $0xf8] sm:$0xf]
        %v478 = vld [vmem:[%s333 + $0xfc] sm:$0xf]
        %v479 = vld [vmem:[%s333 + $0x100] sm:$0xf]
        %v480 = vld [vmem:[%s333 + $0x104] sm:$0xf]
        %v481 = vld [vmem:[%s333 + $0x108] sm:$0xf]
        %v482 = vld [vmem:[%s333 + $0x10c] sm:$0xf]
        %v483 = vld [vmem:[%s333 + $0x110] sm:$0xf]
        %v484 = vld [vmem:[%s333 + $0x114] sm:$0xf]
        %v485 = vld [vmem:[%s333 + $0x118] sm:$0xf]
        %v486 = vld [vmem:[%s333 + $0x11c] sm:$0xf]
        %v487 = vld [vmem:[%s333 + $0x120] sm:$0xf]
        %v488 = vld [vmem:[%s333 + $0x124] sm:$0xf]
        %v489 = vld [vmem:[%s333 + $0x128] sm:$0xf]
        %v490 = vld [vmem:[%s333 + $0x12c] sm:$0xf]
        %v491 = vld [vmem:[%s333 + $0x130] sm:$0xf]
        %v492 = vld [vmem:[%s333 + $0x134] sm:$0xf]
        %v493 = vld [vmem:[%s333 + $0x138] sm:$0xf]
        %v494 = vld [vmem:[%s333 + $0x13c] sm:$0xf]
        %v495 = vld [vmem:[%s333 + $0x140] sm:$0xf]
        %v496 = vld [vmem:[%s333 + $0x144] sm:$0xf]
        %v497 = vld [vmem:[%s333 + $0x148] sm:$0xf]
        %v498 = vld [vmem:[%s333 + $0x14c] sm:$0xf]
        %v499 = vld [vmem:[%s333 + $0x150] sm:$0xf]
        %v500 = vld [vmem:[%s333 + $0x154] sm:$0xf]
        %v501 = vld [vmem:[%s333 + $0x158] sm:$0xf]
        %v502 = vld [vmem:[%s333 + $0x15c] sm:$0xf]
        %v503 = vld [vmem:[%s333 + $0x160] sm:$0xf]
        %v504 = vld [vmem:[%s333 + $0x164] sm:$0xf]
        %v505 = vld [vmem:[%s333 + $0x168] sm:$0xf]
        %v506 = vld [vmem:[%s333 + $0x16c] sm:$0xf]
        %v507 = vld [vmem:[%s333 + $0x170] sm:$0xf]
        %v508 = vld [vmem:[%s333 + $0x174] sm:$0xf]
        %v509 = vld [vmem:[%s333 + $0x178] sm:$0xf]
        %v510 = vld [vmem:[%s333 + $0x17c] sm:$0xf]
        %v511 = vld [vmem:[%s333 + $0x180] sm:$0xf]
        %v512 = vld [vmem:[%s333 + $0x184] sm:$0xf]
        %v513 = vld [vmem:[%s333 + $0x188] sm:$0xf]
        %v514 = vld [vmem:[%s333 + $0x18c] sm:$0xf]
        %v515 = vld [vmem:[%s333 + $0x190] sm:$0xf]
        %v516 = vld [vmem:[%s333 + $0x194] sm:$0xf]
        %v517 = vld [vmem:[%s333 + $0x198] sm:$0xf]
        %v518 = vld [vmem:[%s333 + $0x19c] sm:$0xf]
        %v519 = vld [vmem:[%s333 + $0x1a0] sm:$0xf]
        %v520 = vld [vmem:[%s333 + $0x1a4] sm:$0xf]
        %v521 = vld [vmem:[%s333 + $0x1a8] sm:$0xf]
        %v522 = vld [vmem:[%s333 + $0x1ac] sm:$0xf]
        %v523 = vld [vmem:[%s333 + $0x1b0] sm:$0xf]
        %v524 = vld [vmem:[%s333 + $0x1b4] sm:$0xf]
        %v525 = vld [vmem:[%s333 + $0x1b8] sm:$0xf]
        %v526 = vld [vmem:[%s333 + $0x1bc] sm:$0xf]
        %v527 = vld [vmem:[%s333 + $0x1c0] sm:$0xf]
        %v528 = vld [vmem:[%s333 + $0x1c4] sm:$0xf]
        %v529 = vld [vmem:[%s333 + $0x1c8] sm:$0xf]
        %v530 = vld [vmem:[%s333 + $0x1cc] sm:$0xf]
        %v531 = vld [vmem:[%s333 + $0x1d0] sm:$0xf]
        %v532 = vld [vmem:[%s333 + $0x1d4] sm:$0xf]
        %v533 = vld [vmem:[%s333 + $0x1d8] sm:$0xf]
        %v534 = vld [vmem:[%s333 + $0x1dc] sm:$0xf]
        %v535 = vld [vmem:[%s333 + $0x1e0] sm:$0xf]
        %v536 = vld [vmem:[%s333 + $0x1e4] sm:$0xf]
        %v537 = vld [vmem:[%s333 + $0x1e8] sm:$0xf]
        %v538 = vld [vmem:[%s333 + $0x1ec] sm:$0xf]
        %v539 = vld [vmem:[%s333 + $0x1f0] sm:$0xf]
        %v540 = vld [vmem:[%s333 + $0x1f4] sm:$0xf]
        %v541 = vld [vmem:[%s333 + $0x1f8] sm:$0xf]
        %v542 = vld [vmem:[%s333 + $0x1fc] sm:$0xf]
        %v559 = vunpack.c.l.b16 %v399
        %v560 = vunpack.c.h.b16 %v399
        %v561 = vunpack.c.l.b16 %v400
        %v562 = vunpack.c.h.b16 %v400
        %v563 = vunpack.c.l.b16 %v401
        %v564 = vunpack.c.h.b16 %v401
        %v565 = vunpack.c.l.b16 %v402
        %v566 = vunpack.c.h.b16 %v402
        %v567 = vunpack.c.l.b16 %v403
        %v568 = vunpack.c.h.b16 %v403
        %v569 = vunpack.c.l.b16 %v404
        %v570 = vunpack.c.h.b16 %v404
        %v571 = vunpack.c.l.b16 %v405
        %v572 = vunpack.c.h.b16 %v405
        %v573 = vunpack.c.l.b16 %v406
        %v574 = vunpack.c.h.b16 %v406
        %v575 = vunpack.c.l.b16 %v407
        %v576 = vunpack.c.h.b16 %v407
        %v577 = vunpack.c.l.b16 %v408
        %v578 = vunpack.c.h.b16 %v408
        %v579 = vunpack.c.l.b16 %v409
        %v580 = vunpack.c.h.b16 %v409
        %v581 = vunpack.c.l.b16 %v410
        %v582 = vunpack.c.h.b16 %v410
        %v583 = vunpack.c.l.b16 %v411
        %v584 = vunpack.c.h.b16 %v411
        %v585 = vunpack.c.l.b16 %v412
        %v586 = vunpack.c.h.b16 %v412
        %v587 = vunpack.c.l.b16 %v413
        %v588 = vunpack.c.h.b16 %v413
        %v589 = vunpack.c.l.b16 %v414
        %v590 = vunpack.c.h.b16 %v414
        %v591 = vpack.c.b16 %v567, %v559
        %v592 = vpack.c.b16 %v568, %v560
        %v593 = vpack.c.b16 %v569, %v561
        %v594 = vpack.c.b16 %v570, %v562
        %v595 = vpack.c.b16 %v571, %v563
        %v596 = vpack.c.b16 %v572, %v564
        %v597 = vpack.c.b16 %v573, %v565
        %v598 = vpack.c.b16 %v574, %v566
        %v599 = vpack.c.b16 %v583, %v575
        %v600 = vpack.c.b16 %v584, %v576
        %v601 = vpack.c.b16 %v585, %v577
        %v602 = vpack.c.b16 %v586, %v578
        %v603 = vpack.c.b16 %v587, %v579
        %v604 = vpack.c.b16 %v588, %v580
        %v605 = vpack.c.b16 %v589, %v581
        %v606 = vpack.c.b16 %v590, %v582
        %v751 = vunpack.c.l.b16 %v415
        %v752 = vunpack.c.l.b16 %v416
        %v753 = vunpack.c.l.b16 %v417
        %v754 = vunpack.c.l.b16 %v418
        %v755 = vunpack.c.l.b16 %v419
        %v756 = vunpack.c.l.b16 %v420
        %v757 = vunpack.c.l.b16 %v421
        %v758 = vunpack.c.l.b16 %v422
        %v759 = vunpack.c.l.b16 %v423
        %v760 = vunpack.c.l.b16 %v424
        %v761 = vunpack.c.l.b16 %v425
        %v762 = vunpack.c.l.b16 %v426
        %v763 = vunpack.c.l.b16 %v427
        %v764 = vunpack.c.l.b16 %v428
        %v765 = vunpack.c.l.b16 %v429
        %v766 = vunpack.c.l.b16 %v430
        %v767 = vunpack.c.l.b16 %v431
        %v768 = vunpack.c.l.b16 %v432
        %v769 = vunpack.c.l.b16 %v433
        %v770 = vunpack.c.l.b16 %v434
        %v771 = vunpack.c.l.b16 %v435
        %v772 = vunpack.c.l.b16 %v436
        %v773 = vunpack.c.l.b16 %v437
        %v774 = vunpack.c.l.b16 %v438
        %v775 = vunpack.c.l.b16 %v439
        %v776 = vunpack.c.l.b16 %v440
        %v777 = vunpack.c.l.b16 %v441
        %v778 = vunpack.c.l.b16 %v442
        %v779 = vunpack.c.l.b16 %v443
        %v780 = vunpack.c.l.b16 %v444
        %v781 = vunpack.c.l.b16 %v445
        %v782 = vunpack.c.l.b16 %v446
        %v783 = vunpack.c.l.b16 %v447
        %v784 = vunpack.c.l.b16 %v448
        %v785 = vunpack.c.l.b16 %v449
        %v786 = vunpack.c.l.b16 %v450
        %v787 = vunpack.c.l.b16 %v451
        %v788 = vunpack.c.l.b16 %v452
        %v789 = vunpack.c.l.b16 %v453
        %v790 = vunpack.c.l.b16 %v454
        %v791 = vunpack.c.l.b16 %v455
        %v792 = vunpack.c.l.b16 %v456
        %v793 = vunpack.c.l.b16 %v457
        %v794 = vunpack.c.l.b16 %v458
        %v795 = vunpack.c.l.b16 %v459
        %v796 = vunpack.c.l.b16 %v460
        %v797 = vunpack.c.l.b16 %v461
        %v798 = vunpack.c.l.b16 %v462
        %v799 = vunpack.c.l.b16 %v463
        %v800 = vunpack.c.l.b16 %v464
        %v801 = vunpack.c.l.b16 %v465
        %v802 = vunpack.c.l.b16 %v466
        %v803 = vunpack.c.l.b16 %v467
        %v804 = vunpack.c.l.b16 %v468
        %v805 = vunpack.c.l.b16 %v469
        %v806 = vunpack.c.l.b16 %v470
        %v807 = vunpack.c.l.b16 %v471
        %v808 = vunpack.c.l.b16 %v472
        %v809 = vunpack.c.l.b16 %v473
        %v810 = vunpack.c.l.b16 %v474
        %v811 = vunpack.c.l.b16 %v475
        %v812 = vunpack.c.l.b16 %v476
        %v813 = vunpack.c.l.b16 %v477
        %v814 = vunpack.c.l.b16 %v478
        %v815 = vunpack.c.l.b16 %v479
        %v816 = vunpack.c.l.b16 %v480
        %v817 = vunpack.c.l.b16 %v481
        %v818 = vunpack.c.l.b16 %v482
        %v819 = vunpack.c.l.b16 %v483
        %v820 = vunpack.c.l.b16 %v484
        %v821 = vunpack.c.l.b16 %v485
        %v822 = vunpack.c.l.b16 %v486
        %v823 = vunpack.c.l.b16 %v487
        %v824 = vunpack.c.l.b16 %v488
        %v825 = vunpack.c.l.b16 %v489
        %v826 = vunpack.c.l.b16 %v490
        %v827 = vunpack.c.l.b16 %v491
        %v828 = vunpack.c.l.b16 %v492
        %v829 = vunpack.c.l.b16 %v493
        %v830 = vunpack.c.l.b16 %v494
        %v831 = vunpack.c.l.b16 %v495
        %v832 = vunpack.c.l.b16 %v496
        %v833 = vunpack.c.l.b16 %v497
        %v834 = vunpack.c.l.b16 %v498
        %v835 = vunpack.c.l.b16 %v499
        %v836 = vunpack.c.l.b16 %v500
        %v837 = vunpack.c.l.b16 %v501
        %v838 = vunpack.c.l.b16 %v502
        %v839 = vunpack.c.l.b16 %v503
        %v840 = vunpack.c.l.b16 %v504
        %v841 = vunpack.c.l.b16 %v505
        %v842 = vunpack.c.l.b16 %v506
        %v843 = vunpack.c.l.b16 %v507
        %v844 = vunpack.c.l.b16 %v508
        %v845 = vunpack.c.l.b16 %v509
        %v846 = vunpack.c.l.b16 %v510
        %v847 = vunpack.c.l.b16 %v511
        %v848 = vunpack.c.l.b16 %v512
        %v849 = vunpack.c.l.b16 %v513
        %v850 = vunpack.c.l.b16 %v514
        %v851 = vunpack.c.l.b16 %v515
        %v852 = vunpack.c.l.b16 %v516
        %v853 = vunpack.c.l.b16 %v517
        %v854 = vunpack.c.l.b16 %v518
        %v855 = vunpack.c.l.b16 %v519
        %v856 = vunpack.c.l.b16 %v520
        %v857 = vunpack.c.l.b16 %v521
        %v858 = vunpack.c.l.b16 %v522
        %v859 = vunpack.c.l.b16 %v523
        %v860 = vunpack.c.l.b16 %v524
        %v861 = vunpack.c.l.b16 %v525
        %v862 = vunpack.c.l.b16 %v526
        %v863 = vunpack.c.l.b16 %v527
        %v864 = vunpack.c.l.b16 %v528
        %v865 = vunpack.c.l.b16 %v529
        %v866 = vunpack.c.l.b16 %v530
        %v867 = vunpack.c.l.b16 %v531
        %v868 = vunpack.c.l.b16 %v532
        %v869 = vunpack.c.l.b16 %v533
        %v870 = vunpack.c.l.b16 %v534
        %v871 = vunpack.c.l.b16 %v535
        %v872 = vunpack.c.l.b16 %v536
        %v873 = vunpack.c.l.b16 %v537
        %v874 = vunpack.c.l.b16 %v538
        %v875 = vunpack.c.l.b16 %v539
        %v876 = vunpack.c.l.b16 %v540
        %v877 = vunpack.c.l.b16 %v541
        %v878 = vunpack.c.l.b16 %v542
        %v879 = vpack.c.b16 %v752, %v751
        %v880 = vpack.c.b16 %v754, %v753
        %v881 = vpack.c.b16 %v756, %v755
        %v882 = vpack.c.b16 %v758, %v757
        %v883 = vpack.c.b16 %v760, %v759
        %v884 = vpack.c.b16 %v762, %v761
        %v885 = vpack.c.b16 %v764, %v763
        %v886 = vpack.c.b16 %v766, %v765
        %v887 = vpack.c.b16 %v768, %v767
        %v888 = vpack.c.b16 %v770, %v769
        %v889 = vpack.c.b16 %v772, %v771
        %v890 = vpack.c.b16 %v774, %v773
        %v891 = vpack.c.b16 %v776, %v775
        %v892 = vpack.c.b16 %v778, %v777
        %v893 = vpack.c.b16 %v780, %v779
        %v894 = vpack.c.b16 %v782, %v781
        %v895 = vpack.c.b16 %v784, %v783
        %v896 = vpack.c.b16 %v786, %v785
        %v897 = vpack.c.b16 %v788, %v787
        %v898 = vpack.c.b16 %v790, %v789
        %v899 = vpack.c.b16 %v792, %v791
        %v900 = vpack.c.b16 %v794, %v793
        %v901 = vpack.c.b16 %v796, %v795
        %v902 = vpack.c.b16 %v798, %v797
        %v903 = vpack.c.b16 %v800, %v799
        %v904 = vpack.c.b16 %v802, %v801
        %v905 = vpack.c.b16 %v804, %v803
        %v906 = vpack.c.b16 %v806, %v805
        %v907 = vpack.c.b16 %v808, %v807
        %v908 = vpack.c.b16 %v810, %v809
        %v909 = vpack.c.b16 %v812, %v811
        %v910 = vpack.c.b16 %v814, %v813
        %v911 = vpack.c.b16 %v816, %v815
        %v912 = vpack.c.b16 %v818, %v817
        %v913 = vpack.c.b16 %v820, %v819
        %v914 = vpack.c.b16 %v822, %v821
        %v915 = vpack.c.b16 %v824, %v823
        %v916 = vpack.c.b16 %v826, %v825
        %v917 = vpack.c.b16 %v828, %v827
        %v918 = vpack.c.b16 %v830, %v829
        %v919 = vpack.c.b16 %v832, %v831
        %v920 = vpack.c.b16 %v834, %v833
        %v921 = vpack.c.b16 %v836, %v835
        %v922 = vpack.c.b16 %v838, %v837
        %v923 = vpack.c.b16 %v840, %v839
        %v924 = vpack.c.b16 %v842, %v841
        %v925 = vpack.c.b16 %v844, %v843
        %v926 = vpack.c.b16 %v846, %v845
        %v927 = vpack.c.b16 %v848, %v847
        %v928 = vpack.c.b16 %v850, %v849
        %v929 = vpack.c.b16 %v852, %v851
        %v930 = vpack.c.b16 %v854, %v853
        %v931 = vpack.c.b16 %v856, %v855
        %v932 = vpack.c.b16 %v858, %v857
        %v933 = vpack.c.b16 %v860, %v859
        %v934 = vpack.c.b16 %v862, %v861
        %v935 = vpack.c.b16 %v864, %v863
        %v936 = vpack.c.b16 %v866, %v865
        %v937 = vpack.c.b16 %v868, %v867
        %v938 = vpack.c.b16 %v870, %v869
        %v939 = vpack.c.b16 %v872, %v871
        %v940 = vpack.c.b16 %v874, %v873
        %v941 = vpack.c.b16 %v876, %v875
        %v942 = vpack.c.b16 %v878, %v877
        %1007 = vmatpush.bf16.msra.mxu0 %v886
        %1008 = vmatpush.bf16.msra.mxu0 %v885
        %1009 = vmatpush.bf16.msra.mxu0 %v884
        %1010 = vmatpush.bf16.msra.mxu0 %v883
        %1011 = vmatpush.bf16.msra.mxu0 %v882
        %1012 = vmatpush.bf16.msra.mxu0 %v881
        %1013 = vmatpush.bf16.msra.mxu0 %v880
        %1014 = vmatpush.bf16.msra.mxu0 %v879
        %1015 = vmatmul.bf16.gmra.mxu0 %v591
        %v1016 = vpop.f32.mrf.mxu0
        %v1017 = vadd.f32 0.0, %v1016
        %v1018 = vpop.f32.mrf.mxu0
        %v1019 = vadd.f32 0.0, %v1018
        %1020 = vmatmul.bf16.gmra.mxu0 %v599
        %v1021 = vpop.f32.mrf.mxu0
        %v1022 = vadd.f32 0.0, %v1021
        %v1023 = vpop.f32.mrf.mxu0
        %v1024 = vadd.f32 0.0, %v1023
        %1025 = vdwg.mxu0
        %1026 = vmatpush.bf16.msra.mxu0 %v894
        %1027 = vmatpush.bf16.msra.mxu0 %v893
        %1028 = vmatpush.bf16.msra.mxu0 %v892
        %1029 = vmatpush.bf16.msra.mxu0 %v891
        %1030 = vmatpush.bf16.msra.mxu0 %v890
        %1031 = vmatpush.bf16.msra.mxu0 %v889
        %1032 = vmatpush.bf16.msra.mxu0 %v888
        %1033 = vmatpush.bf16.msra.mxu0 %v887
        %1034 = vmatmul.bf16.gmra.mxu0 %v592
        %v1035 = vpop.f32.mrf.mxu0
        %v1036 = vadd.f32 %v1017, %v1035
        %v1037 = vpop.f32.mrf.mxu0
        %v1038 = vadd.f32 %v1019, %v1037
        %1039 = vmatmul.bf16.gmra.mxu0 %v600
        %v1040 = vpop.f32.mrf.mxu0
        %v1041 = vadd.f32 %v1022, %v1040
        %v1042 = vpop.f32.mrf.mxu0
        %v1043 = vadd.f32 %v1024, %v1042
        %1044 = vdwg.mxu0
        %1045 = vmatpush.bf16.msra.mxu0 %v902
        %1046 = vmatpush.bf16.msra.mxu0 %v901
        %1047 = vmatpush.bf16.msra.mxu0 %v900
        %1048 = vmatpush.bf16.msra.mxu0 %v899
        %1049 = vmatpush.bf16.msra.mxu0 %v898
        %1050 = vmatpush.bf16.msra.mxu0 %v897
        %1051 = vmatpush.bf16.msra.mxu0 %v896
        %1052 = vmatpush.bf16.msra.mxu0 %v895
        %1053 = vmatmul.bf16.gmra.mxu0 %v593
        %v1054 = vpop.f32.mrf.mxu0
        %v1055 = vadd.f32 %v1036, %v1054
        %v1056 = vpop.f32.mrf.mxu0
        %v1057 = vadd.f32 %v1038, %v1056
        %1058 = vmatmul.bf16.gmra.mxu0 %v601
        %v1059 = vpop.f32.mrf.mxu0
        %v1060 = vadd.f32 %v1041, %v1059
        %v1061 = vpop.f32.mrf.mxu0
        %v1062 = vadd.f32 %v1043, %v1061
        %1063 = vdwg.mxu0
        %1064 = vmatpush.bf16.msra.mxu0 %v910
        %1065 = vmatpush.bf16.msra.mxu0 %v909
        %1066 = vmatpush.bf16.msra.mxu0 %v908
        %1067 = vmatpush.bf16.msra.mxu0 %v907
        %1068 = vmatpush.bf16.msra.mxu0 %v906
        %1069 = vmatpush.bf16.msra.mxu0 %v905
        %1070 = vmatpush.bf16.msra.mxu0 %v904
        %1071 = vmatpush.bf16.msra.mxu0 %v903
        %1072 = vmatmul.bf16.gmra.mxu0 %v594
        %v1073 = vpop.f32.mrf.mxu0
        %v1074 = vadd.f32 %v1055, %v1073
        %v1075 = vpop.f32.mrf.mxu0
        %v1076 = vadd.f32 %v1057, %v1075
        %1077 = vmatmul.bf16.gmra.mxu0 %v602
        %v1078 = vpop.f32.mrf.mxu0
        %v1079 = vadd.f32 %v1060, %v1078
        %v1080 = vpop.f32.mrf.mxu0
        %v1081 = vadd.f32 %v1062, %v1080
        %1082 = vdwg.mxu0
        %1083 = vmatpush.bf16.msra.mxu0 %v918
        %1084 = vmatpush.bf16.msra.mxu0 %v917
        %1085 = vmatpush.bf16.msra.mxu0 %v916
        %1086 = vmatpush.bf16.msra.mxu0 %v915
        %1087 = vmatpush.bf16.msra.mxu0 %v914
        %1088 = vmatpush.bf16.msra.mxu0 %v913
        %1089 = vmatpush.bf16.msra.mxu0 %v912
        %1090 = vmatpush.bf16.msra.mxu0 %v911
        %1091 = vmatmul.bf16.gmra.mxu0 %v595
        %v1092 = vpop.f32.mrf.mxu0
        %v1093 = vadd.f32 %v1074, %v1092
        %v1094 = vpop.f32.mrf.mxu0
        %v1095 = vadd.f32 %v1076, %v1094
        %1096 = vmatmul.bf16.gmra.mxu0 %v603
        %v1097 = vpop.f32.mrf.mxu0
        %v1098 = vadd.f32 %v1079, %v1097
        %v1099 = vpop.f32.mrf.mxu0
        %v1100 = vadd.f32 %v1081, %v1099
        %1101 = vdwg.mxu0
        %1102 = vmatpush.bf16.msra.mxu0 %v926
        %1103 = vmatpush.bf16.msra.mxu0 %v925
        %1104 = vmatpush.bf16.msra.mxu0 %v924
        %1105 = vmatpush.bf16.msra.mxu0 %v923
        %1106 = vmatpush.bf16.msra.mxu0 %v922
        %1107 = vmatpush.bf16.msra.mxu0 %v921
        %1108 = vmatpush.bf16.msra.mxu0 %v920
        %1109 = vmatpush.bf16.msra.mxu0 %v919
        %1110 = vmatmul.bf16.gmra.mxu0 %v596
        %v1111 = vpop.f32.mrf.mxu0
        %v1112 = vadd.f32 %v1093, %v1111
        %v1113 = vpop.f32.mrf.mxu0
        %v1114 = vadd.f32 %v1095, %v1113
        %1115 = vmatmul.bf16.gmra.mxu0 %v604
        %v1116 = vpop.f32.mrf.mxu0
        %v1117 = vadd.f32 %v1098, %v1116
        %v1118 = vpop.f32.mrf.mxu0
        %v1119 = vadd.f32 %v1100, %v1118
        %1120 = vdwg.mxu0
        %1121 = vmatpush.bf16.msra.mxu0 %v934
        %1122 = vmatpush.bf16.msra.mxu0 %v933
        %1123 = vmatpush.bf16.msra.mxu0 %v932
        %1124 = vmatpush.bf16.msra.mxu0 %v931
        %1125 = vmatpush.bf16.msra.mxu0 %v930
        %1126 = vmatpush.bf16.msra.mxu0 %v929
        %1127 = vmatpush.bf16.msra.mxu0 %v928
        %1128 = vmatpush.bf16.msra.mxu0 %v927
        %1129 = vmatmul.bf16.gmra.mxu0 %v597
        %v1130 = vpop.f32.mrf.mxu0
        %v1131 = vadd.f32 %v1112, %v1130
        %v1132 = vpop.f32.mrf.mxu0
        %v1133 = vadd.f32 %v1114, %v1132
        %1134 = vmatmul.bf16.gmra.mxu0 %v605
        %v1135 = vpop.f32.mrf.mxu0
        %v1136 = vadd.f32 %v1117, %v1135
        %v1137 = vpop.f32.mrf.mxu0
        %v1138 = vadd.f32 %v1119, %v1137
        %1139 = vdwg.mxu0
        %1140 = vmatpush.bf16.msra.mxu0 %v942
        %1141 = vmatpush.bf16.msra.mxu0 %v941
        %1142 = vmatpush.bf16.msra.mxu0 %v940
        %1143 = vmatpush.bf16.msra.mxu0 %v939
        %1144 = vmatpush.bf16.msra.mxu0 %v938
        %1145 = vmatpush.bf16.msra.mxu0 %v937
        %1146 = vmatpush.bf16.msra.mxu0 %v936
        %1147 = vmatpush.bf16.msra.mxu0 %v935
        %1148 = vmatmul.bf16.gmra.mxu0 %v598
        %v1149 = vpop.f32.mrf.mxu0
        %v1150 = vadd.f32 %v1131, %v1149
        %v1151 = vpop.f32.mrf.mxu0
        %v1152 = vadd.f32 %v1133, %v1151
        %1153 = vmatmul.bf16.gmra.mxu0 %v606
        %v1154 = vpop.f32.mrf.mxu0
        %v1155 = vadd.f32 %v1136, %v1154
        %v1156 = vpop.f32.mrf.mxu0
        %v1157 = vadd.f32 %v1138, %v1156
        %1158 = vdwg.mxu0
        %v1159 = vadd.f32 %v395, %v1150
        %v1160 = vadd.f32 %v396, %v1152
        %v1161 = vadd.f32 %v397, %v1155
        %v1162 = vadd.f32 %v398, %v1157
        %1163 = vst [vmem:[#allocation2] sm:$0xff] %v1159
        %1164 = vst [vmem:[#allocation2 + $0x8] sm:$0xff] %v1160
        %1165 = vst [vmem:[#allocation2 + $0x10] sm:$0xff] %v1161
        %1166 = vst [vmem:[#allocation2 + $0x18] sm:$0xff] %v1162
        %p1167 = scmp.eq.s32.totalorder %s25, 1
        // Predicated region
        $region76: #{bioclinicalbert_ft_forward.16} parent=62 // pred_check
          %p1168 = pneg %p1167
        $region77: #{bioclinicalbert_ft_forward.16} parent=62 // pred_check_branch
          %1170 = sbr.rel (%p1168) target = $region79
        $region78: #{bioclinicalbert_ft_forward.16} parent=62 // pred_region
          %v1171 = vld [vmem:[#allocation2] sm:$0xff]
          %v1172 = vld [vmem:[#allocation2 + $0x8] sm:$0xff]
          %v1173 = vld [vmem:[#allocation2 + $0x10] sm:$0xff]
          %v1174 = vld [vmem:[#allocation2 + $0x18] sm:$0xff]
          %v1175 = vld [vmem:[%s2] sm:$0x1]
          %v1177 = vperm.slane %v1175, 0
          %v1179 = vadd.f32 %v1171, %v1177
          %v1180 = vadd.f32 %v1172, %v1177
          %v1181 = vadd.f32 %v1173, %v1177
          %v1182 = vadd.f32 %v1174, %v1177
          %v1183 = vld [vmem:[%s379] sm:$0xf]
          %v1184 = vld [vmem:[%s379 + $0x4] sm:$0xf]
          %v1185 = vld [vmem:[%s379 + $0x8] sm:$0xf]
          %v1186 = vld [vmem:[%s379 + $0xc] sm:$0xf]
          %v1187 = vunpack.c.l.bf16 %v1183
          %v1188 = vunpack.c.l.bf16 %v1184
          %v1189 = vunpack.c.l.bf16 %v1185
          %v1190 = vunpack.c.l.bf16 %v1186
          %v1191 = vadd.f32 %v1179, %v1187
          %v1192 = vadd.f32 %v1180, %v1188
          %v1193 = vadd.f32 %v1181, %v1189
          %v1194 = vadd.f32 %v1182, %v1190
          %1195 = vadd.xlane.f32.xlu0 %v1191
          %v1196 = vpop.xlane.xlu0 %1195
          %1197 = vadd.xlane.f32.xlu0 %v1192
          %v1198 = vpop.xlane.xlu0 %1197
          %1199 = vadd.xlane.f32.xlu0 %v1193
          %v1200 = vpop.xlane.xlu0 %1199
          %1201 = vadd.xlane.f32.xlu0 %v1194
          %v1202 = vpop.xlane.xlu0 %1201
          %v1203 = vrcp.pop 128.0
          %v1204 = vmul.f32 128.0, %v1203
          %v1205 = vsub.f32 1.0, %v1204
          %v1206 = vmul.f32 %v1203, %v1205
          %v1207 = vadd.f32 %v1203, %v1206
          %vm1208 = vweird.f32 %v1203
          %v1209 = vsel %vm1208, %v1203, %v1207
          %v1210 = vmul.f32 %v1196, %v1209
          %v1211 = vmul.f32 %v1198, %v1209
          %v1212 = vmul.f32 %v1200, %v1209
          %v1213 = vmul.f32 %v1202, %v1209
          %v1214 = vsub.f32 %v1191, %v1210
          %v1215 = vsub.f32 %v1192, %v1211
          %v1216 = vsub.f32 %v1193, %v1212
          %v1217 = vsub.f32 %v1194, %v1213
          %v1218 = vmul.f32 %v1214, %v1214
          %v1219 = vmul.f32 %v1215, %v1215
          %v1220 = vmul.f32 %v1216, %v1216
          %v1221 = vmul.f32 %v1217, %v1217
          %1222 = vadd.xlane.f32.xlu0 %v1218
          %v1223 = vpop.xlane.xlu0 %1222
          %1224 = vadd.xlane.f32.xlu0 %v1219
          %v1225 = vpop.xlane.xlu0 %1224
          %1226 = vadd.xlane.f32.xlu0 %v1220
          %v1227 = vpop.xlane.xlu0 %1226
          %1228 = vadd.xlane.f32.xlu0 %v1221
          %v1229 = vpop.xlane.xlu0 %1228
          %v1230 = vmul.f32 %v1223, %v1209
          %v1231 = vmul.f32 %v1225, %v1209
          %v1232 = vmul.f32 %v1227, %v1209
          %v1233 = vmul.f32 %v1229, %v1209
          %v1234 = vadd.f32 %v1230, 1e-12
          %v1235 = vadd.f32 %v1231, 1e-12
          %v1236 = vadd.f32 %v1232, 1e-12
          %v1237 = vadd.f32 %v1233, 1e-12
          %v1238 = vrsqrt.pop %v1234
          %v1239 = vmul.f32 %v1238, %v1234
          %v1240 = vmul.f32 %v1239, %v1238
          %v1241 = vmul.f32 0.5, %v1240
          %v1242 = vsub.f32 1.5, %v1241
          %v1243 = vmul.f32 %v1238, %v1242
          %vm1244 = vweird.f32 %v1234
          %vm1245 = vweird.f32 %v1238
          %vm1246 = vmor %vm1244, %vm1245
          %v1247 = vsel %vm1246, %v1238, %v1243
          %v1248 = vrsqrt.pop %v1235
          %v1249 = vmul.f32 %v1248, %v1235
          %v1250 = vmul.f32 %v1249, %v1248
          %v1251 = vmul.f32 0.5, %v1250
          %v1252 = vsub.f32 1.5, %v1251
          %v1253 = vmul.f32 %v1248, %v1252
          %vm1254 = vweird.f32 %v1235
          %vm1255 = vweird.f32 %v1248
          %vm1256 = vmor %vm1254, %vm1255
          %v1257 = vsel %vm1256, %v1248, %v1253
          %v1258 = vrsqrt.pop %v1236
          %v1259 = vmul.f32 %v1258, %v1236
          %v1260 = vmul.f32 %v1259, %v1258
          %v1261 = vmul.f32 0.5, %v1260
          %v1262 = vsub.f32 1.5, %v1261
          %v1263 = vmul.f32 %v1258, %v1262
          %vm1264 = vweird.f32 %v1236
          %vm1265 = vweird.f32 %v1258
          %vm1266 = vmor %vm1264, %vm1265
          %v1267 = vsel %vm1266, %v1258, %v1263
          %v1268 = vrsqrt.pop %v1237
          %v1269 = vmul.f32 %v1268, %v1237
          %v1270 = vmul.f32 %v1269, %v1268
          %v1271 = vmul.f32 0.5, %v1270
          %v1272 = vsub.f32 1.5, %v1271
          %v1273 = vmul.f32 %v1268, %v1272
          %vm1274 = vweird.f32 %v1237
          %vm1275 = vweird.f32 %v1268
          %vm1276 = vmor %vm1274, %vm1275
          %v1277 = vsel %vm1276, %v1268, %v1273
          %v1278 = vmul.f32 %v1214, %v1247
          %v1279 = vmul.f32 %v1215, %v1257
          %v1280 = vmul.f32 %v1216, %v1267
          %v1281 = vmul.f32 %v1217, %v1277
          %v1282 = vld [vmem:[%s4] sm:$0x1]
          %v1284 = vperm.slane %v1282, 0
          %v1286 = vmul.f32 %v1278, %v1284
          %v1287 = vmul.f32 %v1279, %v1284
          %v1288 = vmul.f32 %v1280, %v1284
          %v1289 = vmul.f32 %v1281, %v1284
          %v1290 = vld [vmem:[%s5] sm:$0x1]
          %v1292 = vperm.slane %v1290, 0
          %v1294 = vadd.f32 %v1286, %v1292
          %v1295 = vadd.f32 %v1287, %v1292
          %v1296 = vadd.f32 %v1288, %v1292
          %v1297 = vadd.f32 %v1289, %v1292
          %v1298 = vpack.c.bf16 %v1294, %v1294
          %v1299 = vpack.c.bf16 %v1295, %v1295
          %v1300 = vpack.c.bf16 %v1296, %v1296
          %v1301 = vpack.c.bf16 %v1297, %v1297
          %1302 = vst [vmem:[%s385] sm:$0xf] %v1298
          %1303 = vst [vmem:[%s385 + $0x4] sm:$0xf] %v1299
          %1304 = vst [vmem:[%s385 + $0x8] sm:$0xf] %v1300
          %1305 = vst [vmem:[%s385 + $0xc] sm:$0xf] %v1301
        $region79: #{bioclinicalbert_ft_forward.16} parent=62 // pred_fallthru
          _
        %s1306 = smul.u32 4, %s24
        %p1307 = scmp.lt.s32.totalorder %s1306, 3
        %s1308 = scalar_select %p1307, %s1306, 3
        %s1309 = smul.addr %s1308, 4
        %s1310 = scalar_lea.vmem %s6, %s1309
        // Predicated region
        $region80: #{bioclinicalbert_ft_forward.16} parent=62 // pred_check
          %p1311 = pneg %p193
        $region81: #{bioclinicalbert_ft_forward.16} parent=62 // pred_check_branch
          %1313 = sbr.rel (%p1311) target = $region83
        $region82: #{bioclinicalbert_ft_forward.16} parent=62 // pred_region
          %s1314 = smul.u32 4, %s24
        $region83: #{bioclinicalbert_ft_forward.16} parent=62 // pred_fallthru
          _
        // Predicated region
        $region84: #{bioclinicalbert_ft_forward.16} parent=62 // pred_check
          %p1315 = pneg %p193
        $region85: #{bioclinicalbert_ft_forward.16} parent=62 // pred_check_branch
          %1317 = sbr.rel (%p1315) target = $region87
        $region86: #{bioclinicalbert_ft_forward.16} parent=62 // pred_region
          %s1318 = smul.u32 4, %s24
          %p1319 = scmp.lt.s32.totalorder %s1318, 3
          %s1320 = scalar_select %p1319, %s1318, 3
          %s1321 = smul.addr %s1320, 4
          %s1322 = scalar_lea.vmem %s6, %s1321
        $region87: #{bioclinicalbert_ft_forward.16} parent=62 // pred_fallthru
          _
      $region63: #{bioclinicalbert_ft_forward.16} parent=5 // pred_fallthru
        _
      %p1323 = scmp.le.s32.totalorder 2, %s15
      // Predicated region
      $region88: #{bioclinicalbert_ft_forward.16} parent=5 // pred_check
        %p1324 = pneg %p1323
      $region89: #{bioclinicalbert_ft_forward.16} parent=5 // pred_check_branch
        %1326 = sbr.rel (%p1324) target = $region91
      $region90: #{bioclinicalbert_ft_forward.16} parent=5 // pred_region
        %s1327 = ssub.s32 %s15, 2
      $region91: #{bioclinicalbert_ft_forward.16} parent=5 // pred_fallthru
        _
    $region6: #{bioclinicalbert_ft_forward.16} parent=1 // loop_footer
      %s19 = sadd.s32 1, %s15
    $region7: #{bioclinicalbert_ft_forward.16} parent=1 // loop_footer_branch
      %14 = sbr.rel target = $region3
    $region8: #{bioclinicalbert_ft_forward.16} parent=1 // loop_exit
      _
    %1328 = vsyncpa [#allocation5], 1
    %s1329 = scalar_lea.sflag [#allocation5], 1
    %1330 = vsyncpa %s1329, 1

</llo_original>
